<compile_context>
chip_gen: v7x
topology: tpu7x:2x2x1
jax: 0.10.0
libtpu: 0.0.40
codegen_flags: <defaults>
</compile_context>

<pallas_src>
import functools

import jax
import jax.numpy as jnp
from jax.experimental import pallas as pl
from jax.experimental.pallas import tpu as pltpu


def _round_up(x, m):
    return (x + m - 1) // m * m


def _vmem_limit_bytes():
    # Half of physical VMEM, per generation: v5e/v6e (128 MiB) -> 64 MiB,
    # v7x (64 MiB) -> 32 MiB.  Conservative fallback if the query is missing.
    phys = 64 << 20
    try:
        phys = int(pltpu.get_tpu_info().vmem_capacity_bytes)
    except Exception:
        pass
    return max(32 << 20, min(phys // 2, 64 << 20))


_VMEM_LIMIT = _vmem_limit_bytes()
_BN_EPS = 1e-5


# ---------------- Pallas kernels (hot path) ----------------

def _conv_relu_bn_fit_kernel(p_ref, w_ref, bgb_ref, o_ref,
                             h_ref, sum_ref, sq_ref, *, m_true, tm):
    """Fused conv-matmul + bias + ReLU + training-mode BatchNorm2d, single pass.

    grid = (2, MT).  Phase 0: one matmul per m-tile, pre-BN f32 tile is stashed
    in the VMEM scratch slab `h_ref`, per-channel sum / sum-of-squares are
    accumulated (M-padding rows masked).  Phase 1: normalize + affine from the
    slab and write the bf16 output (no matmul recompute, no extra HBM reads).
    """
    phase = pl.program_id(0)
    mi = pl.program_id(1)
    off = pl.multiple_of(mi * tm, tm)

    @pl.when(jnp.logical_and(phase == 0, mi == 0))
    def _():
        sum_ref[...] = jnp.zeros_like(sum_ref)
        sq_ref[...] = jnp.zeros_like(sq_ref)

    @pl.when(phase == 0)
    def _():
        # bf16 x bf16 -> f32 accumulate on the MXU.
        acc = jnp.dot(p_ref[...], w_ref[...], preferred_element_type=jnp.float32)
        h = jnp.maximum(acc + bgb_ref[0:1, :], 0.0)
        h_ref[pl.ds(off, tm), :] = h
        # Mask rows that are only M-padding so they do not pollute the stats.
        row = mi * tm + jax.lax.broadcasted_iota(jnp.int32, (tm, 1), 0)
        hm = jnp.where(row < m_true, h, 0.0)
        sum_ref[...] = sum_ref[...] + jnp.sum(hm, axis=0, keepdims=True)
        sq_ref[...] = sq_ref[...] + jnp.sum(hm * hm, axis=0, keepdims=True)

    @pl.when(phase == 1)
    def _():
        inv_m = 1.0 / float(m_true)
        mean = sum_ref[...] * inv_m
        # Single-pass biased variance (PyTorch train-mode BN).  f32 throughout.
        var = sq_ref[...] * inv_m - mean * mean
        inv = jax.lax.rsqrt(var + _BN_EPS)
        scale = inv * bgb_ref[1:2, :]
        shift = bgb_ref[2:3, :] - mean * scale
        h = h_ref[pl.ds(off, tm), :]
        o_ref[...] = (h * scale + shift).astype(o_ref.dtype)


def _conv_relu_stats_kernel(p_ref, w_ref, bgb_ref, h_ref, st_ref, *, m_true, tm):
    """Large-M path, kernel A: conv-matmul + bias + ReLU -> bf16 slab + per-tile
    partial BN stats (rows 0/1 of an (8, Cp) block).  Fully parallel over m."""
    mi = pl.program_id(0)
    acc = jnp.dot(p_ref[...], w_ref[...], preferred_element_type=jnp.float32)
    h = jnp.maximum(acc + bgb_ref[0:1, :], 0.0)
    h_ref[...] = h.astype(h_ref.dtype)
    row = mi * tm + jax.lax.broadcasted_iota(jnp.int32, (tm, 1), 0)
    hm = jnp.where(row < m_true, h, 0.0)
    s = jnp.sum(hm, axis=0, keepdims=True)
    q = jnp.sum(hm * hm, axis=0, keepdims=True)
    st_ref[...] = jnp.concatenate(
        [s, q, jnp.zeros((6, s.shape[1]), jnp.float32)], axis=0)[None]


def _bn_apply_kernel(h_ref, ss_ref, o_ref):
    """Large-M path, kernel B: pure-VPU per-channel affine (row 0 = scale,
    row 1 = shift)."""
    h = h_ref[...].astype(jnp.float32)
    o_ref[...] = (h * ss_ref[0:1, :] + ss_ref[1:2, :]).astype(o_ref.dtype)


def _conv_relu_kernel(p_ref, w_ref, bgb_ref, o_ref):
    """Fused conv-matmul + bias + ReLU (final block, no BatchNorm)."""
    acc = jnp.dot(p_ref[...], w_ref[...], preferred_element_type=jnp.float32)
    o_ref[...] = jnp.maximum(acc + bgb_ref[0:1, :], 0.0).astype(o_ref.dtype)


# ---------------- pallas_call wrappers ----------------

def conv_relu_bn_fused(patches, w_mat, bgb, m_true, tm, out_dtype):
    mp, kp = patches.shape
    cp = w_mat.shape[1]
    mt = mp // tm
    ob = jnp.dtype(out_dtype).itemsize
    kern = functools.partial(_conv_relu_bn_fit_kernel, m_true=m_true, tm=tm)
    cost = pl.CostEstimate(
        flops=2 * mp * kp * cp,
        transcendentals=0,
        bytes_accessed=mp * kp * 2 + kp * cp * 2 + mp * cp * ob + 8 * cp * 4)
    return pl.pallas_call(
        kern,
        out_shape=jax.ShapeDtypeStruct((mp, cp), out_dtype),
        grid_spec=pltpu.PrefetchScalarGridSpec(
            num_scalar_prefetch=0,
            grid=(2, mt),
            in_specs=[
                # Phase 1 never touches the patch tile: park its block index at
                # 0 so the Kp-wide patch slab is streamed from HBM only once.
                pl.BlockSpec((tm, kp), lambda ph, m: ((1 - ph) * m, 0)),
                pl.BlockSpec((kp, cp), lambda ph, m: (0, 0)),   # weights (resident)
                pl.BlockSpec((8, cp), lambda ph, m: (0, 0)),    # bias/gamma/beta
            ],
            # Phase 0 never writes the output: park its block index at 0 so
            # there are no throwaway pre-BN writebacks; real flushes are phase 1.
            out_specs=pl.BlockSpec((tm, cp), lambda ph, m: (ph * m, 0)),
            scratch_shapes=[pltpu.VMEM((mp, cp), jnp.float32),   # pre-BN slab
                            pltpu.VMEM((1, cp), jnp.float32),    # sum
                            pltpu.VMEM((1, cp), jnp.float32)],   # sum of squares
        ),
        compiler_params=pltpu.CompilerParams(
            # BN stats reduce over m into shared scratch -> sequential grid.
            # (The large-M split path below gives v7x a fully parallel grid.)
            dimension_semantics=("arbitrary", "arbitrary"),
            vmem_limit_bytes=_VMEM_LIMIT),
        cost_estimate=cost,
    )(patches, w_mat, bgb)


def conv_relu_bn_split(patches, w_mat, bgb, m_true, tm, out_dtype):
    """Two-kernel BN path for activation slabs too large for VMEM residency."""
    mp, kp = patches.shape
    cp = w_mat.shape[1]
    mt = mp // tm
    ob = jnp.dtype(out_dtype).itemsize
    kern = functools.partial(_conv_relu_stats_kernel, m_true=m_true, tm=tm)
    cost_a = pl.CostEstimate(
        flops=2 * mp * kp * cp,
        transcendentals=0,
        bytes_accessed=mp * kp * 2 + kp * cp * 2 + mp * cp * 2 + mt * 8 * cp * 4)
    h_slab, part = pl.pallas_call(
        kern,
        out_shape=(jax.ShapeDtypeStruct((mp, cp), jnp.bfloat16),
                   jax.ShapeDtypeStruct((mt, 8, cp), jnp.float32)),
        grid_spec=pltpu.PrefetchScalarGridSpec(
            num_scalar_prefetch=0,
            grid=(mt,),
            in_specs=[pl.BlockSpec((tm, kp), lambda m: (m, 0)),
                      pl.BlockSpec((kp, cp), lambda m: (0, 0)),
                      pl.BlockSpec((8, cp), lambda m: (0, 0))],
            out_specs=[pl.BlockSpec((tm, cp), lambda m: (m, 0)),
                       pl.BlockSpec((1, 8, cp), lambda m: (m, 0, 0))]),
        compiler_params=pltpu.CompilerParams(
            dimension_semantics=("parallel",),   # shards across v7x's 2 TCs
            vmem_limit_bytes=_VMEM_LIMIT),
        cost_estimate=cost_a,
    )(patches, w_mat, bgb)

    # Tiny per-channel combine + scale/shift in XLA (f32 throughout).
    stats = jnp.sum(part, axis=0)
    inv_m = 1.0 / float(m_true)
    mean = stats[0] * inv_m
    var = stats[1] * inv_m - mean * mean
    inv = jax.lax.rsqrt(var + _BN_EPS)
    scale = inv * bgb[1]
    shift = bgb[2] - mean * scale
    ss = jnp.zeros((8, cp), jnp.float32).at[0].set(scale).at[1].set(shift)

    cost_b = pl.CostEstimate(
        flops=2 * mp * cp,
        transcendentals=0,
        bytes_accessed=mp * cp * 2 + 8 * cp * 4 + mp * cp * ob)
    return pl.pallas_call(
        _bn_apply_kernel,
        out_shape=jax.ShapeDtypeStruct((mp, cp), out_dtype),
        grid_spec=pltpu.PrefetchScalarGridSpec(
            num_scalar_prefetch=0,
            grid=(mt,),
            in_specs=[pl.BlockSpec((tm, cp), lambda m: (m, 0)),
                      pl.BlockSpec((8, cp), lambda m: (0, 0))],
            out_specs=pl.BlockSpec((tm, cp), lambda m: (m, 0))),
        compiler_params=pltpu.CompilerParams(
            dimension_semantics=("parallel",),
            vmem_limit_bytes=_VMEM_LIMIT),
        cost_estimate=cost_b,
    )(h_slab, ss)


def conv_relu_pallas(patches, w_mat, bgb, tm, out_dtype):
    mp, kp = patches.shape
    cp = w_mat.shape[1]
    mt = mp // tm
    ob = jnp.dtype(out_dtype).itemsize
    cost = pl.CostEstimate(
        flops=2 * mp * kp * cp,
        transcendentals=0,
        bytes_accessed=mp * kp * 2 + kp * cp * 2 + mp * cp * ob + 8 * cp * 4)
    return pl.pallas_call(
        _conv_relu_kernel,
        out_shape=jax.ShapeDtypeStruct((mp, cp), out_dtype),
        grid_spec=pltpu.PrefetchScalarGridSpec(
            num_scalar_prefetch=0,
            grid=(mt,),
            in_specs=[pl.BlockSpec((tm, kp), lambda m: (m, 0)),
                      pl.BlockSpec((kp, cp), lambda m: (0, 0)),
                      pl.BlockSpec((8, cp), lambda m: (0, 0))],
            out_specs=pl.BlockSpec((tm, cp), lambda m: (m, 0))),
        compiler_params=pltpu.CompilerParams(
            dimension_semantics=("parallel",),
            vmem_limit_bytes=_VMEM_LIMIT),
        cost_estimate=cost,
    )(patches, w_mat, bgb)


# ---------------- glue: im2col, tiling, layer wrapper, params ----------------

def im2col(x, ksize, stride, pad):
    # x: (N, H, W, C) -> (N*OH*OW, KH*KW*C); feature ordering is (kh, kw, c).
    N, H, W, C = x.shape
    xp = jnp.pad(x, ((0, 0), (pad, pad), (pad, pad), (0, 0)))
    OH = (H + 2 * pad - ksize) // stride + 1
    OW = (W + 2 * pad - ksize) // stride + 1
    cols = []
    for kh in range(ksize):
        for kw in range(ksize):
            cols.append(xp[:, kh:kh + stride * OH:stride,
                           kw:kw + stride * OW:stride, :])
    patches = jnp.stack(cols, axis=3)  # (N, OH, OW, KH*KW, C)
    return patches.reshape(N * OH * OW, ksize * ksize * C), OH, OW


def _choose_tiling(M, Kp, Cp):
    # Budget for the pipelined working set (double-buffered patch + out tiles).
    tile_budget = min(_VMEM_LIMIT // 4, 8 << 20)
    per_row = 2 * Kp * 2 + 2 * Cp * 4
    tm = (tile_budget // per_row) // 16 * 16     # bf16 native tile is (16, 128)
    tm = int(max(16, min(4096, tm)))
    tm = min(tm, _round_up(M, 16))
    mp = _round_up(M, tm)
    # Single-launch BN path keeps the full f32 pre-BN slab resident in VMEM
    # scratch; only possible if it fits alongside the pipelined tiles/weights.
    resident = (mp * Cp * 4 + Kp * Cp * 2 + 8 * Cp * 4
                + 2 * tm * (Kp * 2 + Cp * 4) + 2 * Cp * 4)
    fits = resident <= int(0.7 * _VMEM_LIMIT)
    return tm, mp, fits


def fused_conv_layer(x_nhwc, lp, cfg):
    cin, cout, k, s, p, has_bn = cfg
    N = x_nhwc.shape[0]
    # Activations arrive already in bf16 (BN layers emit bf16); im2col stays bf16.
    patches, OH, OW = im2col(x_nhwc, k, s, p)
    M, K = patches.shape

    Kp = _round_up(max(K, 128), 128)     # lane-dense contraction dim
    Cp = _round_up(max(cout, 128), 128)  # lane-dense output channels -> unmasked vst
    TM, Mp, fits = _choose_tiling(M, Kp, Cp)

    patches = jnp.pad(patches, ((0, Mp - M), (0, Kp - K)))
    # (Cout, Cin, KH, KW) -> (KH, KW, Cin, Cout) -> (KH*KW*Cin, Cout), zero-padded.
    w_mat = jnp.transpose(lp["w"], (2, 3, 1, 0)).reshape(K, cout)
    w_mat = jnp.pad(w_mat, ((0, Kp - K), (0, Cp - cout))).astype(jnp.bfloat16)

    # Pack bias / gamma / beta into a single (8, Cp) f32 operand (rows 0..2).
    bgb = jnp.zeros((8, Cp), jnp.float32).at[0, :cout].set(lp["b"])
    if has_bn:
        bgb = bgb.at[1, :cout].set(lp["gamma"]).at[2, :cout].set(lp["beta"])
        out_dtype = jnp.bfloat16          # next layer's MXU wants bf16 anyway
        if fits:
            out2d = conv_relu_bn_fused(patches, w_mat, bgb, M, TM, out_dtype)
        else:
            out2d = conv_relu_bn_split(patches, w_mat, bgb, M, TM, out_dtype)
    else:
        out_dtype = jnp.float32           # final block output stays f32
        out2d = conv_relu_pallas(patches, w_mat, bgb, TM, out_dtype)

    if Mp != M or Cp != cout:
        out2d = out2d[:M, :cout]          # padded rows/channels (zeros/junk) dropped
    return out2d.reshape(N, OH, OW, cout)


def make_configs(input_nc, ngf, n_layers=2):
    # Mirrors FeatureExtraction.__init__: (cin, cout, k, stride, pad, has_bn).
    cfgs = [(input_nc, ngf, 4, 2, 1, True)]
    out_ngf = ngf
    for i in range(n_layers):
        in_ngf = 2 ** i * ngf if 2 ** i * ngf < 512 else 512
        out_ngf = 2 ** (i + 1) * ngf if 2 ** i * ngf < 512 else 512
        cfgs.append((in_ngf, out_ngf, 4, 2, 1, True))
    cfgs.append((out_ngf, out_ngf, 3, 1, 1, True))
    cfgs.append((out_ngf, out_ngf, 3, 1, 1, False))  # last block: conv + ReLU only
    return tuple(cfgs)


def init_params(key, cfgs):
    # init_type='normal': conv weight ~ N(0, 0.02), conv bias = 0,
    # BN gamma ~ N(1, 0.02), BN beta = 0 (deterministic synthetic init).
    params = []
    for (cin, cout, k, s, p, has_bn) in cfgs:
        key, kw, kg = jax.random.split(key, 3)
        w = 0.02 * jax.random.normal(kw, (cout, cin, k, k), jnp.float32)
        b = jnp.zeros((cout,), jnp.float32)
        gamma = (1.0 + 0.02 * jax.random.normal(kg, (cout,), jnp.float32)
                 if has_bn else None)
        beta = jnp.zeros((cout,), jnp.float32) if has_bn else None
        params.append(dict(w=w, b=b, gamma=gamma, beta=beta))
    return params


def feature_extraction_forward(x_nchw, params, cfgs):
    # PyTorch NCHW in/out; internally NHWC + bf16 activations between layers.
    # BatchNorm uses training-mode batch statistics (nn.BatchNorm2d in train()).
    x = jnp.transpose(x_nchw, (0, 2, 3, 1)).astype(jnp.bfloat16)
    for lp, cfg in zip(params, cfgs):
        x = fused_conv_layer(x, lp, cfg)
    return jnp.transpose(x, (0, 3, 1, 2))


if __name__ == "__main__":
    key = jax.random.PRNGKey(0)
    kx, kp = jax.random.split(key)

    # Small shapes consistent with the module (input_nc=4, ngf=16, n_layers=2):
    # channels 4 -> 16 -> 32 -> 64 -> 64 -> 64, spatial 16 -> 8 -> 4 -> 2 -> 2 -> 2.
    N, C, H, W = 2, 4, 16, 16
    ngf = 16
    x = jax.random.normal(kx, (N, C, H, W), jnp.float32)
    cfgs = make_configs(C, ngf, n_layers=2)
    params = init_params(kp, cfgs)

    fwd = jax.jit(functools.partial(feature_extraction_forward, cfgs=cfgs))
    out = fwd(x, params)
    jax.block_until_ready(out)
    assert out.shape == (N, 4 * ngf, H // 8, W // 8)
    assert out.dtype == jnp.float32
    print("KERNEL_OK")
</pallas_src>

<mosaic_0001>
module attributes {stable_mosaic.version = 11 : i64} {
  func.func @_conv_relu_bn_fit_kernel(%arg0: i32, %arg1: i32, %arg2: memref<128x128xbf16, #tpu.memory_space<vmem>>, %arg3: memref<128x128xbf16, #tpu.memory_space<vmem>>, %arg4: memref<8x128xf32, #tpu.memory_space<vmem>>, %arg5: memref<128x128xbf16, #tpu.memory_space<vmem>>, %arg6: memref<128x128xf32, #tpu.memory_space<vmem>>, %arg7: memref<1x128xf32, #tpu.memory_space<vmem>>, %arg8: memref<1x128xf32, #tpu.memory_space<vmem>>) attributes {dimension_semantics = [#tpu.dimension_semantics<arbitrary>, #tpu.dimension_semantics<arbitrary>], iteration_bounds = array<i64: 2, 1>, scalar_prefetch = 0 : i64, scratch_operands = 3 : i64, tpu.core_type = #tpu.core_type<tc>, window_params = [{transform_indices = @transform_0, window_bounds = array<i64: 128, 128>}, {pipeline_mode = #tpu.pipeline_mode<synchronous>, transform_indices = @transform_1, window_bounds = array<i64: 128, 128>}, {pipeline_mode = #tpu.pipeline_mode<synchronous>, transform_indices = @transform_2, window_bounds = array<i64: 8, 128>}, {transform_indices = @transform_3, window_bounds = array<i64: 128, 128>}]} {
    %c128_i32 = arith.constant 128 : i32
    %0 = arith.muli %arg1, %c128_i32 : i32
    %1 = tpu.assume_multiple %0, 128 : i32
    %c0_i32 = arith.constant 0 : i32
    %2 = arith.cmpi eq, %arg0, %c0_i32 : i32
    %c0_i32_0 = arith.constant 0 : i32
    %3 = arith.cmpi eq, %arg1, %c0_i32_0 : i32
    %4 = arith.andi %2, %3 : i1
    %5 = arith.extui %4 : i1 to i32
    %c0_i32_1 = arith.constant 0 : i32
    %6 = arith.cmpi ne, %5, %c0_i32_1 : i32
    scf.if %6 {
      %cst = arith.constant 0.000000e+00 : f32
      %13 = vector.broadcast %cst : f32 to vector<1x128xf32>
      %c0 = arith.constant 0 : index
      %c0_5 = arith.constant 0 : index
      %14 = vector.load %arg7[%c0, %c0_5] : memref<1x128xf32, #tpu.memory_space<vmem>>, vector<1x128xf32>
      tpu.vector_store %arg7[%c0, %c0_5], %13 {strides = array<i32>} : memref<1x128xf32, #tpu.memory_space<vmem>>, vector<1x128xf32>,
      %cst_6 = arith.constant 0.000000e+00 : f32
      %15 = vector.broadcast %cst_6 : f32 to vector<1x128xf32>
      %c0_7 = arith.constant 0 : index
      %c0_8 = arith.constant 0 : index
      %16 = vector.load %arg8[%c0_7, %c0_8] : memref<1x128xf32, #tpu.memory_space<vmem>>, vector<1x128xf32>
      tpu.vector_store %arg8[%c0_7, %c0_8], %15 {strides = array<i32>} : memref<1x128xf32, #tpu.memory_space<vmem>>, vector<1x128xf32>,
    } else {
    }
    %c0_i32_2 = arith.constant 0 : i32
    %7 = arith.cmpi eq, %arg0, %c0_i32_2 : i32
    %8 = arith.extui %7 : i1 to i32
    %c0_i32_3 = arith.constant 0 : i32
    %9 = arith.cmpi ne, %8, %c0_i32_3 : i32
    scf.if %9 {
      %c0 = arith.constant 0 : index
      %c0_5 = arith.constant 0 : index
      %13 = vector.load %arg2[%c0, %c0_5] : memref<128x128xbf16, #tpu.memory_space<vmem>>, vector<128x128xbf16>
      %c0_6 = arith.constant 0 : index
      %c0_7 = arith.constant 0 : index
      %14 = vector.load %arg3[%c0_6, %c0_7] : memref<128x128xbf16, #tpu.memory_space<vmem>>, vector<128x128xbf16>
      %cst = arith.constant dense<0.000000e+00> : vector<128x128xf32>
      %15 = tpu.matmul %13, %14, %cst {dimension_numbers = #tpu.dot_dimension_numbers<[1], [0], [0], [1], [0, 0, 1, 1], [], []>} : vector<128x128xbf16>, vector<128x128xbf16>, vector<128x128xf32> -> vector<128x128xf32>
      %c0_8 = arith.constant 0 : index
      %c0_9 = arith.constant 0 : index
      %16 = vector.load %arg4[%c0_8, %c0_9] : memref<8x128xf32, #tpu.memory_space<vmem>>, vector<1x128xf32>
      %17 = vector.broadcast %16 : vector<1x128xf32> to vector<128x128xf32>
      %18 = arith.addf %15, %17 : vector<128x128xf32>
      %cst_10 = arith.constant 0.000000e+00 : f32
      %19 = vector.broadcast %cst_10 : f32 to vector<128x128xf32>
      %20 = arith.maximumf %18, %19 : vector<128x128xf32>
      %21 = arith.index_cast %1 : i32 to index
      %c0_11 = arith.constant 0 : index
      %22 = vector.load %arg6[%21, %c0_11] : memref<128x128xf32, #tpu.memory_space<vmem>>, vector<128x128xf32>
      tpu.vector_store %arg6[%21, %c0_11], %20 {strides = array<i32>} : memref<128x128xf32, #tpu.memory_space<vmem>>, vector<128x128xf32>,
      %c128_i32_12 = arith.constant 128 : i32
      %23 = arith.muli %arg1, %c128_i32_12 : i32
      %24 = tpu.iota {dimensions = array<i32: 0>} : vector<128x1xi32>
      %25 = vector.broadcast %23 : i32 to vector<128x1xi32>
      %26 = arith.addi %25, %24 : vector<128x1xi32>
      %c128_i32_13 = arith.constant 128 : i32
      %27 = vector.broadcast %c128_i32_13 : i32 to vector<128x1xi32>
      %28 = arith.cmpi slt, %26, %27 : vector<128x1xi32>
      %cst_14 = arith.constant 0.000000e+00 : f32
      %29 = vector.shape_cast %28 : vector<128x1xi1> to vector<128x1xi1>
      %30 = vector.broadcast %29 : vector<128x1xi1> to vector<128x128xi1>
      %31 = vector.broadcast %cst_14 : f32 to vector<128x128xf32>
      %32 = arith.select %30, %20, %31 : vector<128x128xi1>, vector<128x128xf32>
      %c0_15 = arith.constant 0 : index
      %c0_16 = arith.constant 0 : index
      %33 = vector.load %arg7[%c0_15, %c0_16] : memref<1x128xf32, #tpu.memory_space<vmem>>, vector<1x128xf32>
      %cst_17 = arith.constant dense<0.000000e+00> : vector<128xf32>
      %34 = vector.multi_reduction <add>, %32, %cst_17 [0] : vector<128x128xf32> to vector<128xf32>
      %35 = vector.shape_cast %34 : vector<128xf32> to vector<1x128xf32>
      %36 = arith.addf %33, %35 : vector<1x128xf32>
      %c0_18 = arith.constant 0 : index
      %c0_19 = arith.constant 0 : index
      %37 = vector.load %arg7[%c0_18, %c0_19] : memref<1x128xf32, #tpu.memory_space<vmem>>, vector<1x128xf32>
      tpu.vector_store %arg7[%c0_18, %c0_19], %36 {strides = array<i32>} : memref<1x128xf32, #tpu.memory_space<vmem>>, vector<1x128xf32>,
      %c0_20 = arith.constant 0 : index
      %c0_21 = arith.constant 0 : index
      %38 = vector.load %arg8[%c0_20, %c0_21] : memref<1x128xf32, #tpu.memory_space<vmem>>, vector<1x128xf32>
      %39 = arith.mulf %32, %32 : vector<128x128xf32>
      %cst_22 = arith.constant dense<0.000000e+00> : vector<128xf32>
      %40 = vector.multi_reduction <add>, %39, %cst_22 [0] : vector<128x128xf32> to vector<128xf32>
      %41 = vector.shape_cast %40 : vector<128xf32> to vector<1x128xf32>
      %42 = arith.addf %38, %41 : vector<1x128xf32>
      %c0_23 = arith.constant 0 : index
      %c0_24 = arith.constant 0 : index
      %43 = vector.load %arg8[%c0_23, %c0_24] : memref<1x128xf32, #tpu.memory_space<vmem>>, vector<1x128xf32>
      tpu.vector_store %arg8[%c0_23, %c0_24], %42 {strides = array<i32>} : memref<1x128xf32, #tpu.memory_space<vmem>>, vector<1x128xf32>,
    } else {
    }
    %c1_i32 = arith.constant 1 : i32
    %10 = arith.cmpi eq, %arg0, %c1_i32 : i32
    %11 = arith.extui %10 : i1 to i32
    %c0_i32_4 = arith.constant 0 : i32
    %12 = arith.cmpi ne, %11, %c0_i32_4 : i32
    scf.if %12 {
      %c0 = arith.constant 0 : index
      %c0_5 = arith.constant 0 : index
      %13 = vector.load %arg7[%c0, %c0_5] : memref<1x128xf32, #tpu.memory_space<vmem>>, vector<1x128xf32>
      %cst = arith.constant 7.812500e-03 : f32
      %14 = vector.broadcast %cst : f32 to vector<1x128xf32>
      %15 = arith.mulf %13, %14 : vector<1x128xf32>
      %c0_6 = arith.constant 0 : index
      %c0_7 = arith.constant 0 : index
      %16 = vector.load %arg8[%c0_6, %c0_7] : memref<1x128xf32, #tpu.memory_space<vmem>>, vector<1x128xf32>
      %cst_8 = arith.constant 7.812500e-03 : f32
      %17 = vector.broadcast %cst_8 : f32 to vector<1x128xf32>
      %18 = arith.mulf %16, %17 : vector<1x128xf32>
      %19 = arith.mulf %15, %15 : vector<1x128xf32>
      %20 = arith.subf %18, %19 : vector<1x128xf32>
      %cst_9 = arith.constant 9.99999974E-6 : f32
      %21 = vector.broadcast %cst_9 : f32 to vector<1x128xf32>
      %22 = arith.addf %20, %21 : vector<1x128xf32>
      %23 = math.rsqrt %22 : vector<1x128xf32>
      %c1 = arith.constant 1 : index
      %c0_10 = arith.constant 0 : index
      %24 = vector.load %arg4[%c1, %c0_10] : memref<8x128xf32, #tpu.memory_space<vmem>>, vector<1x128xf32>
      %25 = arith.mulf %23, %24 : vector<1x128xf32>
      %c2 = arith.constant 2 : index
      %c0_11 = arith.constant 0 : index
      %26 = vector.load %arg4[%c2, %c0_11] : memref<8x128xf32, #tpu.memory_space<vmem>>, vector<1x128xf32>
      %27 = arith.mulf %15, %25 : vector<1x128xf32>
      %28 = arith.subf %26, %27 : vector<1x128xf32>
      %29 = arith.index_cast %1 : i32 to index
      %c0_12 = arith.constant 0 : index
      %30 = vector.load %arg6[%29, %c0_12] : memref<128x128xf32, #tpu.memory_space<vmem>>, vector<128x128xf32>
      %31 = vector.broadcast %25 : vector<1x128xf32> to vector<128x128xf32>
      %32 = arith.mulf %30, %31 : vector<128x128xf32>
      %33 = vector.broadcast %28 : vector<1x128xf32> to vector<128x128xf32>
      %34 = arith.addf %32, %33 : vector<128x128xf32>
      %35 = arith.truncf %34 : vector<128x128xf32> to vector<128x128xbf16>
      %c0_13 = arith.constant 0 : index
      %c0_14 = arith.constant 0 : index
      %36 = vector.load %arg5[%c0_13, %c0_14] : memref<128x128xbf16, #tpu.memory_space<vmem>>, vector<128x128xbf16>
      tpu.vector_store %arg5[%c0_13, %c0_14], %35 {strides = array<i32>} : memref<128x128xbf16, #tpu.memory_space<vmem>>, vector<128x128xbf16>,
    } else {
    }
    return
  }
  func.func @transform_0(%arg0: i32, %arg1: i32) -> (i32, i32) {
    %c1_i32 = arith.constant 1 : i32
    %0 = arith.subi %c1_i32, %arg0 : i32
    %1 = arith.muli %0, %arg1 : i32
    %c0_i32 = arith.constant 0 : i32
    %c0_i32_0 = arith.constant 0 : i32
    return %1, %c0_i32 : i32, i32
  }
  func.func @transform_1(%arg0: i32, %arg1: i32) -> (i32, i32) {
    %c0_i32 = arith.constant 0 : i32
    %c0_i32_0 = arith.constant 0 : i32
    %c0_i32_1 = arith.constant 0 : i32
    return %c0_i32, %c0_i32_0 : i32, i32
  }
  func.func @transform_2(%arg0: i32, %arg1: i32) -> (i32, i32) {
    %c0_i32 = arith.constant 0 : i32
    %c0_i32_0 = arith.constant 0 : i32
    %c0_i32_1 = arith.constant 0 : i32
    return %c0_i32, %c0_i32_0 : i32, i32
  }
  func.func @transform_3(%arg0: i32, %arg1: i32) -> (i32, i32) {
    %0 = arith.muli %arg0, %arg1 : i32
    %c0_i32 = arith.constant 0 : i32
    %c0_i32_0 = arith.constant 0 : i32
    return %0, %c0_i32 : i32, i32
  }
}

module attributes {stable_mosaic.version = 11 : i64} {
  func.func @_conv_relu_bn_fit_kernel(%arg0: i32, %arg1: i32, %arg2: memref<32x256xbf16, #tpu.memory_space<vmem>>, %arg3: memref<256x128xbf16, #tpu.memory_space<vmem>>, %arg4: memref<8x128xf32, #tpu.memory_space<vmem>>, %arg5: memref<32x128xbf16, #tpu.memory_space<vmem>>, %arg6: memref<32x128xf32, #tpu.memory_space<vmem>>, %arg7: memref<1x128xf32, #tpu.memory_space<vmem>>, %arg8: memref<1x128xf32, #tpu.memory_space<vmem>>) attributes {dimension_semantics = [#tpu.dimension_semantics<arbitrary>, #tpu.dimension_semantics<arbitrary>], iteration_bounds = array<i64: 2, 1>, scalar_prefetch = 0 : i64, scratch_operands = 3 : i64, tpu.core_type = #tpu.core_type<tc>, window_params = [{transform_indices = @transform_0, window_bounds = array<i64: 32, 256>}, {pipeline_mode = #tpu.pipeline_mode<synchronous>, transform_indices = @transform_1, window_bounds = array<i64: 256, 128>}, {pipeline_mode = #tpu.pipeline_mode<synchronous>, transform_indices = @transform_2, window_bounds = array<i64: 8, 128>}, {transform_indices = @transform_3, window_bounds = array<i64: 32, 128>}]} {
    %c32_i32 = arith.constant 32 : i32
    %0 = arith.muli %arg1, %c32_i32 : i32
    %1 = tpu.assume_multiple %0, 32 : i32
    %c0_i32 = arith.constant 0 : i32
    %2 = arith.cmpi eq, %arg0, %c0_i32 : i32
    %c0_i32_0 = arith.constant 0 : i32
    %3 = arith.cmpi eq, %arg1, %c0_i32_0 : i32
    %4 = arith.andi %2, %3 : i1
    %5 = arith.extui %4 : i1 to i32
    %c0_i32_1 = arith.constant 0 : i32
    %6 = arith.cmpi ne, %5, %c0_i32_1 : i32
    scf.if %6 {
      %cst = arith.constant 0.000000e+00 : f32
      %13 = vector.broadcast %cst : f32 to vector<1x128xf32>
      %c0 = arith.constant 0 : index
      %c0_5 = arith.constant 0 : index
      %14 = vector.load %arg7[%c0, %c0_5] : memref<1x128xf32, #tpu.memory_space<vmem>>, vector<1x128xf32>
      tpu.vector_store %arg7[%c0, %c0_5], %13 {strides = array<i32>} : memref<1x128xf32, #tpu.memory_space<vmem>>, vector<1x128xf32>,
      %cst_6 = arith.constant 0.000000e+00 : f32
      %15 = vector.broadcast %cst_6 : f32 to vector<1x128xf32>
      %c0_7 = arith.constant 0 : index
      %c0_8 = arith.constant 0 : index
      %16 = vector.load %arg8[%c0_7, %c0_8] : memref<1x128xf32, #tpu.memory_space<vmem>>, vector<1x128xf32>
      tpu.vector_store %arg8[%c0_7, %c0_8], %15 {strides = array<i32>} : memref<1x128xf32, #tpu.memory_space<vmem>>, vector<1x128xf32>,
    } else {
    }
    %c0_i32_2 = arith.constant 0 : i32
    %7 = arith.cmpi eq, %arg0, %c0_i32_2 : i32
    %8 = arith.extui %7 : i1 to i32
    %c0_i32_3 = arith.constant 0 : i32
    %9 = arith.cmpi ne, %8, %c0_i32_3 : i32
    scf.if %9 {
      %c0 = arith.constant 0 : index
      %c0_5 = arith.constant 0 : index
      %13 = vector.load %arg2[%c0, %c0_5] : memref<32x256xbf16, #tpu.memory_space<vmem>>, vector<32x256xbf16>
      %c0_6 = arith.constant 0 : index
      %c0_7 = arith.constant 0 : index
      %14 = vector.load %arg3[%c0_6, %c0_7] : memref<256x128xbf16, #tpu.memory_space<vmem>>, vector<256x128xbf16>
      %cst = arith.constant dense<0.000000e+00> : vector<32x128xf32>
      %15 = tpu.matmul %13, %14, %cst {dimension_numbers = #tpu.dot_dimension_numbers<[1], [0], [0], [1], [0, 0, 1, 1], [], []>} : vector<32x256xbf16>, vector<256x128xbf16>, vector<32x128xf32> -> vector<32x128xf32>
      %c0_8 = arith.constant 0 : index
      %c0_9 = arith.constant 0 : index
      %16 = vector.load %arg4[%c0_8, %c0_9] : memref<8x128xf32, #tpu.memory_space<vmem>>, vector<1x128xf32>
      %17 = vector.broadcast %16 : vector<1x128xf32> to vector<32x128xf32>
      %18 = arith.addf %15, %17 : vector<32x128xf32>
      %cst_10 = arith.constant 0.000000e+00 : f32
      %19 = vector.broadcast %cst_10 : f32 to vector<32x128xf32>
      %20 = arith.maximumf %18, %19 : vector<32x128xf32>
      %21 = arith.index_cast %1 : i32 to index
      %c0_11 = arith.constant 0 : index
      %22 = vector.load %arg6[%21, %c0_11] : memref<32x128xf32, #tpu.memory_space<vmem>>, vector<32x128xf32>
      tpu.vector_store %arg6[%21, %c0_11], %20 {strides = array<i32>} : memref<32x128xf32, #tpu.memory_space<vmem>>, vector<32x128xf32>,
      %c32_i32_12 = arith.constant 32 : i32
      %23 = arith.muli %arg1, %c32_i32_12 : i32
      %24 = tpu.iota {dimensions = array<i32: 0>} : vector<32x1xi32>
      %25 = vector.broadcast %23 : i32 to vector<32x1xi32>
      %26 = arith.addi %25, %24 : vector<32x1xi32>
      %c32_i32_13 = arith.constant 32 : i32
      %27 = vector.broadcast %c32_i32_13 : i32 to vector<32x1xi32>
      %28 = arith.cmpi slt, %26, %27 : vector<32x1xi32>
      %cst_14 = arith.constant 0.000000e+00 : f32
      %29 = vector.shape_cast %28 : vector<32x1xi1> to vector<32x1xi1>
      %30 = vector.broadcast %29 : vector<32x1xi1> to vector<32x128xi1>
      %31 = vector.broadcast %cst_14 : f32 to vector<32x128xf32>
      %32 = arith.select %30, %20, %31 : vector<32x128xi1>, vector<32x128xf32>
      %c0_15 = arith.constant 0 : index
      %c0_16 = arith.constant 0 : index
      %33 = vector.load %arg7[%c0_15, %c0_16] : memref<1x128xf32, #tpu.memory_space<vmem>>, vector<1x128xf32>
      %cst_17 = arith.constant dense<0.000000e+00> : vector<128xf32>
      %34 = vector.multi_reduction <add>, %32, %cst_17 [0] : vector<32x128xf32> to vector<128xf32>
      %35 = vector.shape_cast %34 : vector<128xf32> to vector<1x128xf32>
      %36 = arith.addf %33, %35 : vector<1x128xf32>
      %c0_18 = arith.constant 0 : index
      %c0_19 = arith.constant 0 : index
      %37 = vector.load %arg7[%c0_18, %c0_19] : memref<1x128xf32, #tpu.memory_space<vmem>>, vector<1x128xf32>
      tpu.vector_store %arg7[%c0_18, %c0_19], %36 {strides = array<i32>} : memref<1x128xf32, #tpu.memory_space<vmem>>, vector<1x128xf32>,
      %c0_20 = arith.constant 0 : index
      %c0_21 = arith.constant 0 : index
      %38 = vector.load %arg8[%c0_20, %c0_21] : memref<1x128xf32, #tpu.memory_space<vmem>>, vector<1x128xf32>
      %39 = arith.mulf %32, %32 : vector<32x128xf32>
      %cst_22 = arith.constant dense<0.000000e+00> : vector<128xf32>
      %40 = vector.multi_reduction <add>, %39, %cst_22 [0] : vector<32x128xf32> to vector<128xf32>
      %41 = vector.shape_cast %40 : vector<128xf32> to vector<1x128xf32>
      %42 = arith.addf %38, %41 : vector<1x128xf32>
      %c0_23 = arith.constant 0 : index
      %c0_24 = arith.constant 0 : index
      %43 = vector.load %arg8[%c0_23, %c0_24] : memref<1x128xf32, #tpu.memory_space<vmem>>, vector<1x128xf32>
      tpu.vector_store %arg8[%c0_23, %c0_24], %42 {strides = array<i32>} : memref<1x128xf32, #tpu.memory_space<vmem>>, vector<1x128xf32>,
    } else {
    }
    %c1_i32 = arith.constant 1 : i32
    %10 = arith.cmpi eq, %arg0, %c1_i32 : i32
    %11 = arith.extui %10 : i1 to i32
    %c0_i32_4 = arith.constant 0 : i32
    %12 = arith.cmpi ne, %11, %c0_i32_4 : i32
    scf.if %12 {
      %c0 = arith.constant 0 : index
      %c0_5 = arith.constant 0 : index
      %13 = vector.load %arg7[%c0, %c0_5] : memref<1x128xf32, #tpu.memory_space<vmem>>, vector<1x128xf32>
      %cst = arith.constant 3.125000e-02 : f32
      %14 = vector.broadcast %cst : f32 to vector<1x128xf32>
      %15 = arith.mulf %13, %14 : vector<1x128xf32>
      %c0_6 = arith.constant 0 : index
      %c0_7 = arith.constant 0 : index
      %16 = vector.load %arg8[%c0_6, %c0_7] : memref<1x128xf32, #tpu.memory_space<vmem>>, vector<1x128xf32>
      %cst_8 = arith.constant 3.125000e-02 : f32
      %17 = vector.broadcast %cst_8 : f32 to vector<1x128xf32>
      %18 = arith.mulf %16, %17 : vector<1x128xf32>
      %19 = arith.mulf %15, %15 : vector<1x128xf32>
      %20 = arith.subf %18, %19 : vector<1x128xf32>
      %cst_9 = arith.constant 9.99999974E-6 : f32
      %21 = vector.broadcast %cst_9 : f32 to vector<1x128xf32>
      %22 = arith.addf %20, %21 : vector<1x128xf32>
      %23 = math.rsqrt %22 : vector<1x128xf32>
      %c1 = arith.constant 1 : index
      %c0_10 = arith.constant 0 : index
      %24 = vector.load %arg4[%c1, %c0_10] : memref<8x128xf32, #tpu.memory_space<vmem>>, vector<1x128xf32>
      %25 = arith.mulf %23, %24 : vector<1x128xf32>
      %c2 = arith.constant 2 : index
      %c0_11 = arith.constant 0 : index
      %26 = vector.load %arg4[%c2, %c0_11] : memref<8x128xf32, #tpu.memory_space<vmem>>, vector<1x128xf32>
      %27 = arith.mulf %15, %25 : vector<1x128xf32>
      %28 = arith.subf %26, %27 : vector<1x128xf32>
      %29 = arith.index_cast %1 : i32 to index
      %c0_12 = arith.constant 0 : index
      %30 = vector.load %arg6[%29, %c0_12] : memref<32x128xf32, #tpu.memory_space<vmem>>, vector<32x128xf32>
      %31 = vector.broadcast %25 : vector<1x128xf32> to vector<32x128xf32>
      %32 = arith.mulf %30, %31 : vector<32x128xf32>
      %33 = vector.broadcast %28 : vector<1x128xf32> to vector<32x128xf32>
      %34 = arith.addf %32, %33 : vector<32x128xf32>
      %35 = arith.truncf %34 : vector<32x128xf32> to vector<32x128xbf16>
      %c0_13 = arith.constant 0 : index
      %c0_14 = arith.constant 0 : index
      %36 = vector.load %arg5[%c0_13, %c0_14] : memref<32x128xbf16, #tpu.memory_space<vmem>>, vector<32x128xbf16>
      tpu.vector_store %arg5[%c0_13, %c0_14], %35 {strides = array<i32>} : memref<32x128xbf16, #tpu.memory_space<vmem>>, vector<32x128xbf16>,
    } else {
    }
    return
  }
  func.func @transform_0(%arg0: i32, %arg1: i32) -> (i32, i32) {
    %c1_i32 = arith.constant 1 : i32
    %0 = arith.subi %c1_i32, %arg0 : i32
    %1 = arith.muli %0, %arg1 : i32
    %c0_i32 = arith.constant 0 : i32
    %c0_i32_0 = arith.constant 0 : i32
    return %1, %c0_i32 : i32, i32
  }
  func.func @transform_1(%arg0: i32, %arg1: i32) -> (i32, i32) {
    %c0_i32 = arith.constant 0 : i32
    %c0_i32_0 = arith.constant 0 : i32
    %c0_i32_1 = arith.constant 0 : i32
    return %c0_i32, %c0_i32_0 : i32, i32
  }
  func.func @transform_2(%arg0: i32, %arg1: i32) -> (i32, i32) {
    %c0_i32 = arith.constant 0 : i32
    %c0_i32_0 = arith.constant 0 : i32
    %c0_i32_1 = arith.constant 0 : i32
    return %c0_i32, %c0_i32_0 : i32, i32
  }
  func.func @transform_3(%arg0: i32, %arg1: i32) -> (i32, i32) {
    %0 = arith.muli %arg0, %arg1 : i32
    %c0_i32 = arith.constant 0 : i32
    %c0_i32_0 = arith.constant 0 : i32
    return %0, %c0_i32 : i32, i32
  }
}

module attributes {stable_mosaic.version = 11 : i64} {
  func.func @_conv_relu_bn_fit_kernel(%arg0: i32, %arg1: i32, %arg2: memref<16x512xbf16, #tpu.memory_space<vmem>>, %arg3: memref<512x128xbf16, #tpu.memory_space<vmem>>, %arg4: memref<8x128xf32, #tpu.memory_space<vmem>>, %arg5: memref<16x128xbf16, #tpu.memory_space<vmem>>, %arg6: memref<16x128xf32, #tpu.memory_space<vmem>>, %arg7: memref<1x128xf32, #tpu.memory_space<vmem>>, %arg8: memref<1x128xf32, #tpu.memory_space<vmem>>) attributes {dimension_semantics = [#tpu.dimension_semantics<arbitrary>, #tpu.dimension_semantics<arbitrary>], iteration_bounds = array<i64: 2, 1>, scalar_prefetch = 0 : i64, scratch_operands = 3 : i64, tpu.core_type = #tpu.core_type<tc>, window_params = [{transform_indices = @transform_0, window_bounds = array<i64: 16, 512>}, {pipeline_mode = #tpu.pipeline_mode<synchronous>, transform_indices = @transform_1, window_bounds = array<i64: 512, 128>}, {pipeline_mode = #tpu.pipeline_mode<synchronous>, transform_indices = @transform_2, window_bounds = array<i64: 8, 128>}, {transform_indices = @transform_3, window_bounds = array<i64: 16, 128>}]} {
    %c16_i32 = arith.constant 16 : i32
    %0 = arith.muli %arg1, %c16_i32 : i32
    %1 = tpu.assume_multiple %0, 16 : i32
    %c0_i32 = arith.constant 0 : i32
    %2 = arith.cmpi eq, %arg0, %c0_i32 : i32
    %c0_i32_0 = arith.constant 0 : i32
    %3 = arith.cmpi eq, %arg1, %c0_i32_0 : i32
    %4 = arith.andi %2, %3 : i1
    %5 = arith.extui %4 : i1 to i32
    %c0_i32_1 = arith.constant 0 : i32
    %6 = arith.cmpi ne, %5, %c0_i32_1 : i32
    scf.if %6 {
      %cst = arith.constant 0.000000e+00 : f32
      %13 = vector.broadcast %cst : f32 to vector<1x128xf32>
      %c0 = arith.constant 0 : index
      %c0_5 = arith.constant 0 : index
      %14 = vector.load %arg7[%c0, %c0_5] : memref<1x128xf32, #tpu.memory_space<vmem>>, vector<1x128xf32>
      tpu.vector_store %arg7[%c0, %c0_5], %13 {strides = array<i32>} : memref<1x128xf32, #tpu.memory_space<vmem>>, vector<1x128xf32>,
      %cst_6 = arith.constant 0.000000e+00 : f32
      %15 = vector.broadcast %cst_6 : f32 to vector<1x128xf32>
      %c0_7 = arith.constant 0 : index
      %c0_8 = arith.constant 0 : index
      %16 = vector.load %arg8[%c0_7, %c0_8] : memref<1x128xf32, #tpu.memory_space<vmem>>, vector<1x128xf32>
      tpu.vector_store %arg8[%c0_7, %c0_8], %15 {strides = array<i32>} : memref<1x128xf32, #tpu.memory_space<vmem>>, vector<1x128xf32>,
    } else {
    }
    %c0_i32_2 = arith.constant 0 : i32
    %7 = arith.cmpi eq, %arg0, %c0_i32_2 : i32
    %8 = arith.extui %7 : i1 to i32
    %c0_i32_3 = arith.constant 0 : i32
    %9 = arith.cmpi ne, %8, %c0_i32_3 : i32
    scf.if %9 {
      %c0 = arith.constant 0 : index
      %c0_5 = arith.constant 0 : index
      %13 = vector.load %arg2[%c0, %c0_5] : memref<16x512xbf16, #tpu.memory_space<vmem>>, vector<16x512xbf16>
      %c0_6 = arith.constant 0 : index
      %c0_7 = arith.constant 0 : index
      %14 = vector.load %arg3[%c0_6, %c0_7] : memref<512x128xbf16, #tpu.memory_space<vmem>>, vector<512x128xbf16>
      %cst = arith.constant dense<0.000000e+00> : vector<16x128xf32>
      %15 = tpu.matmul %13, %14, %cst {dimension_numbers = #tpu.dot_dimension_numbers<[1], [0], [0], [1], [0, 0, 1, 1], [], []>} : vector<16x512xbf16>, vector<512x128xbf16>, vector<16x128xf32> -> vector<16x128xf32>
      %c0_8 = arith.constant 0 : index
      %c0_9 = arith.constant 0 : index
      %16 = vector.load %arg4[%c0_8, %c0_9] : memref<8x128xf32, #tpu.memory_space<vmem>>, vector<1x128xf32>
      %17 = vector.broadcast %16 : vector<1x128xf32> to vector<16x128xf32>
      %18 = arith.addf %15, %17 : vector<16x128xf32>
      %cst_10 = arith.constant 0.000000e+00 : f32
      %19 = vector.broadcast %cst_10 : f32 to vector<16x128xf32>
      %20 = arith.maximumf %18, %19 : vector<16x128xf32>
      %21 = arith.index_cast %1 : i32 to index
      %c0_11 = arith.constant 0 : index
      %22 = vector.load %arg6[%21, %c0_11] : memref<16x128xf32, #tpu.memory_space<vmem>>, vector<16x128xf32>
      tpu.vector_store %arg6[%21, %c0_11], %20 {strides = array<i32>} : memref<16x128xf32, #tpu.memory_space<vmem>>, vector<16x128xf32>,
      %c16_i32_12 = arith.constant 16 : i32
      %23 = arith.muli %arg1, %c16_i32_12 : i32
      %24 = tpu.iota {dimensions = array<i32: 0>} : vector<16x1xi32>
      %25 = vector.broadcast %23 : i32 to vector<16x1xi32>
      %26 = arith.addi %25, %24 : vector<16x1xi32>
      %c8_i32 = arith.constant 8 : i32
      %27 = vector.broadcast %c8_i32 : i32 to vector<16x1xi32>
      %28 = arith.cmpi slt, %26, %27 : vector<16x1xi32>
      %cst_13 = arith.constant 0.000000e+00 : f32
      %29 = vector.shape_cast %28 : vector<16x1xi1> to vector<16x1xi1>
      %30 = vector.broadcast %29 : vector<16x1xi1> to vector<16x128xi1>
      %31 = vector.broadcast %cst_13 : f32 to vector<16x128xf32>
      %32 = arith.select %30, %20, %31 : vector<16x128xi1>, vector<16x128xf32>
      %c0_14 = arith.constant 0 : index
      %c0_15 = arith.constant 0 : index
      %33 = vector.load %arg7[%c0_14, %c0_15] : memref<1x128xf32, #tpu.memory_space<vmem>>, vector<1x128xf32>
      %cst_16 = arith.constant dense<0.000000e+00> : vector<128xf32>
      %34 = vector.multi_reduction <add>, %32, %cst_16 [0] : vector<16x128xf32> to vector<128xf32>
      %35 = vector.shape_cast %34 : vector<128xf32> to vector<1x128xf32>
      %36 = arith.addf %33, %35 : vector<1x128xf32>
      %c0_17 = arith.constant 0 : index
      %c0_18 = arith.constant 0 : index
      %37 = vector.load %arg7[%c0_17, %c0_18] : memref<1x128xf32, #tpu.memory_space<vmem>>, vector<1x128xf32>
      tpu.vector_store %arg7[%c0_17, %c0_18], %36 {strides = array<i32>} : memref<1x128xf32, #tpu.memory_space<vmem>>, vector<1x128xf32>,
      %c0_19 = arith.constant 0 : index
      %c0_20 = arith.constant 0 : index
      %38 = vector.load %arg8[%c0_19, %c0_20] : memref<1x128xf32, #tpu.memory_space<vmem>>, vector<1x128xf32>
      %39 = arith.mulf %32, %32 : vector<16x128xf32>
      %cst_21 = arith.constant dense<0.000000e+00> : vector<128xf32>
      %40 = vector.multi_reduction <add>, %39, %cst_21 [0] : vector<16x128xf32> to vector<128xf32>
      %41 = vector.shape_cast %40 : vector<128xf32> to vector<1x128xf32>
      %42 = arith.addf %38, %41 : vector<1x128xf32>
      %c0_22 = arith.constant 0 : index
      %c0_23 = arith.constant 0 : index
      %43 = vector.load %arg8[%c0_22, %c0_23] : memref<1x128xf32, #tpu.memory_space<vmem>>, vector<1x128xf32>
      tpu.vector_store %arg8[%c0_22, %c0_23], %42 {strides = array<i32>} : memref<1x128xf32, #tpu.memory_space<vmem>>, vector<1x128xf32>,
    } else {
    }
    %c1_i32 = arith.constant 1 : i32
    %10 = arith.cmpi eq, %arg0, %c1_i32 : i32
    %11 = arith.extui %10 : i1 to i32
    %c0_i32_4 = arith.constant 0 : i32
    %12 = arith.cmpi ne, %11, %c0_i32_4 : i32
    scf.if %12 {
      %c0 = arith.constant 0 : index
      %c0_5 = arith.constant 0 : index
      %13 = vector.load %arg7[%c0, %c0_5] : memref<1x128xf32, #tpu.memory_space<vmem>>, vector<1x128xf32>
      %cst = arith.constant 1.250000e-01 : f32
      %14 = vector.broadcast %cst : f32 to vector<1x128xf32>
      %15 = arith.mulf %13, %14 : vector<1x128xf32>
      %c0_6 = arith.constant 0 : index
      %c0_7 = arith.constant 0 : index
      %16 = vector.load %arg8[%c0_6, %c0_7] : memref<1x128xf32, #tpu.memory_space<vmem>>, vector<1x128xf32>
      %cst_8 = arith.constant 1.250000e-01 : f32
      %17 = vector.broadcast %cst_8 : f32 to vector<1x128xf32>
      %18 = arith.mulf %16, %17 : vector<1x128xf32>
      %19 = arith.mulf %15, %15 : vector<1x128xf32>
      %20 = arith.subf %18, %19 : vector<1x128xf32>
      %cst_9 = arith.constant 9.99999974E-6 : f32
      %21 = vector.broadcast %cst_9 : f32 to vector<1x128xf32>
      %22 = arith.addf %20, %21 : vector<1x128xf32>
      %23 = math.rsqrt %22 : vector<1x128xf32>
      %c1 = arith.constant 1 : index
      %c0_10 = arith.constant 0 : index
      %24 = vector.load %arg4[%c1, %c0_10] : memref<8x128xf32, #tpu.memory_space<vmem>>, vector<1x128xf32>
      %25 = arith.mulf %23, %24 : vector<1x128xf32>
      %c2 = arith.constant 2 : index
      %c0_11 = arith.constant 0 : index
      %26 = vector.load %arg4[%c2, %c0_11] : memref<8x128xf32, #tpu.memory_space<vmem>>, vector<1x128xf32>
      %27 = arith.mulf %15, %25 : vector<1x128xf32>
      %28 = arith.subf %26, %27 : vector<1x128xf32>
      %29 = arith.index_cast %1 : i32 to index
      %c0_12 = arith.constant 0 : index
      %30 = vector.load %arg6[%29, %c0_12] : memref<16x128xf32, #tpu.memory_space<vmem>>, vector<16x128xf32>
      %31 = vector.broadcast %25 : vector<1x128xf32> to vector<16x128xf32>
      %32 = arith.mulf %30, %31 : vector<16x128xf32>
      %33 = vector.broadcast %28 : vector<1x128xf32> to vector<16x128xf32>
      %34 = arith.addf %32, %33 : vector<16x128xf32>
      %35 = arith.truncf %34 : vector<16x128xf32> to vector<16x128xbf16>
      %c0_13 = arith.constant 0 : index
      %c0_14 = arith.constant 0 : index
      %36 = vector.load %arg5[%c0_13, %c0_14] : memref<16x128xbf16, #tpu.memory_space<vmem>>, vector<16x128xbf16>
      tpu.vector_store %arg5[%c0_13, %c0_14], %35 {strides = array<i32>} : memref<16x128xbf16, #tpu.memory_space<vmem>>, vector<16x128xbf16>,
    } else {
    }
    return
  }
  func.func @transform_0(%arg0: i32, %arg1: i32) -> (i32, i32) {
    %c1_i32 = arith.constant 1 : i32
    %0 = arith.subi %c1_i32, %arg0 : i32
    %1 = arith.muli %0, %arg1 : i32
    %c0_i32 = arith.constant 0 : i32
    %c0_i32_0 = arith.constant 0 : i32
    return %1, %c0_i32 : i32, i32
  }
  func.func @transform_1(%arg0: i32, %arg1: i32) -> (i32, i32) {
    %c0_i32 = arith.constant 0 : i32
    %c0_i32_0 = arith.constant 0 : i32
    %c0_i32_1 = arith.constant 0 : i32
    return %c0_i32, %c0_i32_0 : i32, i32
  }
  func.func @transform_2(%arg0: i32, %arg1: i32) -> (i32, i32) {
    %c0_i32 = arith.constant 0 : i32
    %c0_i32_0 = arith.constant 0 : i32
    %c0_i32_1 = arith.constant 0 : i32
    return %c0_i32, %c0_i32_0 : i32, i32
  }
  func.func @transform_3(%arg0: i32, %arg1: i32) -> (i32, i32) {
    %0 = arith.muli %arg0, %arg1 : i32
    %c0_i32 = arith.constant 0 : i32
    %c0_i32_0 = arith.constant 0 : i32
    return %0, %c0_i32 : i32, i32
  }
}

module attributes {stable_mosaic.version = 11 : i64} {
  func.func @_conv_relu_bn_fit_kernel(%arg0: i32, %arg1: i32, %arg2: memref<16x640xbf16, #tpu.memory_space<vmem>>, %arg3: memref<640x128xbf16, #tpu.memory_space<vmem>>, %arg4: memref<8x128xf32, #tpu.memory_space<vmem>>, %arg5: memref<16x128xbf16, #tpu.memory_space<vmem>>, %arg6: memref<16x128xf32, #tpu.memory_space<vmem>>, %arg7: memref<1x128xf32, #tpu.memory_space<vmem>>, %arg8: memref<1x128xf32, #tpu.memory_space<vmem>>) attributes {dimension_semantics = [#tpu.dimension_semantics<arbitrary>, #tpu.dimension_semantics<arbitrary>], iteration_bounds = array<i64: 2, 1>, scalar_prefetch = 0 : i64, scratch_operands = 3 : i64, tpu.core_type = #tpu.core_type<tc>, window_params = [{transform_indices = @transform_0, window_bounds = array<i64: 16, 640>}, {pipeline_mode = #tpu.pipeline_mode<synchronous>, transform_indices = @transform_1, window_bounds = array<i64: 640, 128>}, {pipeline_mode = #tpu.pipeline_mode<synchronous>, transform_indices = @transform_2, window_bounds = array<i64: 8, 128>}, {transform_indices = @transform_3, window_bounds = array<i64: 16, 128>}]} {
    %c16_i32 = arith.constant 16 : i32
    %0 = arith.muli %arg1, %c16_i32 : i32
    %1 = tpu.assume_multiple %0, 16 : i32
    %c0_i32 = arith.constant 0 : i32
    %2 = arith.cmpi eq, %arg0, %c0_i32 : i32
    %c0_i32_0 = arith.constant 0 : i32
    %3 = arith.cmpi eq, %arg1, %c0_i32_0 : i32
    %4 = arith.andi %2, %3 : i1
    %5 = arith.extui %4 : i1 to i32
    %c0_i32_1 = arith.constant 0 : i32
    %6 = arith.cmpi ne, %5, %c0_i32_1 : i32
    scf.if %6 {
      %cst = arith.constant 0.000000e+00 : f32
      %13 = vector.broadcast %cst : f32 to vector<1x128xf32>
      %c0 = arith.constant 0 : index
      %c0_5 = arith.constant 0 : index
      %14 = vector.load %arg7[%c0, %c0_5] : memref<1x128xf32, #tpu.memory_space<vmem>>, vector<1x128xf32>
      tpu.vector_store %arg7[%c0, %c0_5], %13 {strides = array<i32>} : memref<1x128xf32, #tpu.memory_space<vmem>>, vector<1x128xf32>,
      %cst_6 = arith.constant 0.000000e+00 : f32
      %15 = vector.broadcast %cst_6 : f32 to vector<1x128xf32>
      %c0_7 = arith.constant 0 : index
      %c0_8 = arith.constant 0 : index
      %16 = vector.load %arg8[%c0_7, %c0_8] : memref<1x128xf32, #tpu.memory_space<vmem>>, vector<1x128xf32>
      tpu.vector_store %arg8[%c0_7, %c0_8], %15 {strides = array<i32>} : memref<1x128xf32, #tpu.memory_space<vmem>>, vector<1x128xf32>,
    } else {
    }
    %c0_i32_2 = arith.constant 0 : i32
    %7 = arith.cmpi eq, %arg0, %c0_i32_2 : i32
    %8 = arith.extui %7 : i1 to i32
    %c0_i32_3 = arith.constant 0 : i32
    %9 = arith.cmpi ne, %8, %c0_i32_3 : i32
    scf.if %9 {
      %c0 = arith.constant 0 : index
      %c0_5 = arith.constant 0 : index
      %13 = vector.load %arg2[%c0, %c0_5] : memref<16x640xbf16, #tpu.memory_space<vmem>>, vector<16x640xbf16>
      %c0_6 = arith.constant 0 : index
      %c0_7 = arith.constant 0 : index
      %14 = vector.load %arg3[%c0_6, %c0_7] : memref<640x128xbf16, #tpu.memory_space<vmem>>, vector<640x128xbf16>
      %cst = arith.constant dense<0.000000e+00> : vector<16x128xf32>
      %15 = tpu.matmul %13, %14, %cst {dimension_numbers = #tpu.dot_dimension_numbers<[1], [0], [0], [1], [0, 0, 1, 1], [], []>} : vector<16x640xbf16>, vector<640x128xbf16>, vector<16x128xf32> -> vector<16x128xf32>
      %c0_8 = arith.constant 0 : index
      %c0_9 = arith.constant 0 : index
      %16 = vector.load %arg4[%c0_8, %c0_9] : memref<8x128xf32, #tpu.memory_space<vmem>>, vector<1x128xf32>
      %17 = vector.broadcast %16 : vector<1x128xf32> to vector<16x128xf32>
      %18 = arith.addf %15, %17 : vector<16x128xf32>
      %cst_10 = arith.constant 0.000000e+00 : f32
      %19 = vector.broadcast %cst_10 : f32 to vector<16x128xf32>
      %20 = arith.maximumf %18, %19 : vector<16x128xf32>
      %21 = arith.index_cast %1 : i32 to index
      %c0_11 = arith.constant 0 : index
      %22 = vector.load %arg6[%21, %c0_11] : memref<16x128xf32, #tpu.memory_space<vmem>>, vector<16x128xf32>
      tpu.vector_store %arg6[%21, %c0_11], %20 {strides = array<i32>} : memref<16x128xf32, #tpu.memory_space<vmem>>, vector<16x128xf32>,
      %c16_i32_12 = arith.constant 16 : i32
      %23 = arith.muli %arg1, %c16_i32_12 : i32
      %24 = tpu.iota {dimensions = array<i32: 0>} : vector<16x1xi32>
      %25 = vector.broadcast %23 : i32 to vector<16x1xi32>
      %26 = arith.addi %25, %24 : vector<16x1xi32>
      %c8_i32 = arith.constant 8 : i32
      %27 = vector.broadcast %c8_i32 : i32 to vector<16x1xi32>
      %28 = arith.cmpi slt, %26, %27 : vector<16x1xi32>
      %cst_13 = arith.constant 0.000000e+00 : f32
      %29 = vector.shape_cast %28 : vector<16x1xi1> to vector<16x1xi1>
      %30 = vector.broadcast %29 : vector<16x1xi1> to vector<16x128xi1>
      %31 = vector.broadcast %cst_13 : f32 to vector<16x128xf32>
      %32 = arith.select %30, %20, %31 : vector<16x128xi1>, vector<16x128xf32>
      %c0_14 = arith.constant 0 : index
      %c0_15 = arith.constant 0 : index
      %33 = vector.load %arg7[%c0_14, %c0_15] : memref<1x128xf32, #tpu.memory_space<vmem>>, vector<1x128xf32>
      %cst_16 = arith.constant dense<0.000000e+00> : vector<128xf32>
      %34 = vector.multi_reduction <add>, %32, %cst_16 [0] : vector<16x128xf32> to vector<128xf32>
      %35 = vector.shape_cast %34 : vector<128xf32> to vector<1x128xf32>
      %36 = arith.addf %33, %35 : vector<1x128xf32>
      %c0_17 = arith.constant 0 : index
      %c0_18 = arith.constant 0 : index
      %37 = vector.load %arg7[%c0_17, %c0_18] : memref<1x128xf32, #tpu.memory_space<vmem>>, vector<1x128xf32>
      tpu.vector_store %arg7[%c0_17, %c0_18], %36 {strides = array<i32>} : memref<1x128xf32, #tpu.memory_space<vmem>>, vector<1x128xf32>,
      %c0_19 = arith.constant 0 : index
      %c0_20 = arith.constant 0 : index
      %38 = vector.load %arg8[%c0_19, %c0_20] : memref<1x128xf32, #tpu.memory_space<vmem>>, vector<1x128xf32>
      %39 = arith.mulf %32, %32 : vector<16x128xf32>
      %cst_21 = arith.constant dense<0.000000e+00> : vector<128xf32>
      %40 = vector.multi_reduction <add>, %39, %cst_21 [0] : vector<16x128xf32> to vector<128xf32>
      %41 = vector.shape_cast %40 : vector<128xf32> to vector<1x128xf32>
      %42 = arith.addf %38, %41 : vector<1x128xf32>
      %c0_22 = arith.constant 0 : index
      %c0_23 = arith.constant 0 : index
      %43 = vector.load %arg8[%c0_22, %c0_23] : memref<1x128xf32, #tpu.memory_space<vmem>>, vector<1x128xf32>
      tpu.vector_store %arg8[%c0_22, %c0_23], %42 {strides = array<i32>} : memref<1x128xf32, #tpu.memory_space<vmem>>, vector<1x128xf32>,
    } else {
    }
    %c1_i32 = arith.constant 1 : i32
    %10 = arith.cmpi eq, %arg0, %c1_i32 : i32
    %11 = arith.extui %10 : i1 to i32
    %c0_i32_4 = arith.constant 0 : i32
    %12 = arith.cmpi ne, %11, %c0_i32_4 : i32
    scf.if %12 {
      %c0 = arith.constant 0 : index
      %c0_5 = arith.constant 0 : index
      %13 = vector.load %arg7[%c0, %c0_5] : memref<1x128xf32, #tpu.memory_space<vmem>>, vector<1x128xf32>
      %cst = arith.constant 1.250000e-01 : f32
      %14 = vector.broadcast %cst : f32 to vector<1x128xf32>
      %15 = arith.mulf %13, %14 : vector<1x128xf32>
      %c0_6 = arith.constant 0 : index
      %c0_7 = arith.constant 0 : index
      %16 = vector.load %arg8[%c0_6, %c0_7] : memref<1x128xf32, #tpu.memory_space<vmem>>, vector<1x128xf32>
      %cst_8 = arith.constant 1.250000e-01 : f32
      %17 = vector.broadcast %cst_8 : f32 to vector<1x128xf32>
      %18 = arith.mulf %16, %17 : vector<1x128xf32>
      %19 = arith.mulf %15, %15 : vector<1x128xf32>
      %20 = arith.subf %18, %19 : vector<1x128xf32>
      %cst_9 = arith.constant 9.99999974E-6 : f32
      %21 = vector.broadcast %cst_9 : f32 to vector<1x128xf32>
      %22 = arith.addf %20, %21 : vector<1x128xf32>
      %23 = math.rsqrt %22 : vector<1x128xf32>
      %c1 = arith.constant 1 : index
      %c0_10 = arith.constant 0 : index
      %24 = vector.load %arg4[%c1, %c0_10] : memref<8x128xf32, #tpu.memory_space<vmem>>, vector<1x128xf32>
      %25 = arith.mulf %23, %24 : vector<1x128xf32>
      %c2 = arith.constant 2 : index
      %c0_11 = arith.constant 0 : index
      %26 = vector.load %arg4[%c2, %c0_11] : memref<8x128xf32, #tpu.memory_space<vmem>>, vector<1x128xf32>
      %27 = arith.mulf %15, %25 : vector<1x128xf32>
      %28 = arith.subf %26, %27 : vector<1x128xf32>
      %29 = arith.index_cast %1 : i32 to index
      %c0_12 = arith.constant 0 : index
      %30 = vector.load %arg6[%29, %c0_12] : memref<16x128xf32, #tpu.memory_space<vmem>>, vector<16x128xf32>
      %31 = vector.broadcast %25 : vector<1x128xf32> to vector<16x128xf32>
      %32 = arith.mulf %30, %31 : vector<16x128xf32>
      %33 = vector.broadcast %28 : vector<1x128xf32> to vector<16x128xf32>
      %34 = arith.addf %32, %33 : vector<16x128xf32>
      %35 = arith.truncf %34 : vector<16x128xf32> to vector<16x128xbf16>
      %c0_13 = arith.constant 0 : index
      %c0_14 = arith.constant 0 : index
      %36 = vector.load %arg5[%c0_13, %c0_14] : memref<16x128xbf16, #tpu.memory_space<vmem>>, vector<16x128xbf16>
      tpu.vector_store %arg5[%c0_13, %c0_14], %35 {strides = array<i32>} : memref<16x128xbf16, #tpu.memory_space<vmem>>, vector<16x128xbf16>,
    } else {
    }
    return
  }
  func.func @transform_0(%arg0: i32, %arg1: i32) -> (i32, i32) {
    %c1_i32 = arith.constant 1 : i32
    %0 = arith.subi %c1_i32, %arg0 : i32
    %1 = arith.muli %0, %arg1 : i32
    %c0_i32 = arith.constant 0 : i32
    %c0_i32_0 = arith.constant 0 : i32
    return %1, %c0_i32 : i32, i32
  }
  func.func @transform_1(%arg0: i32, %arg1: i32) -> (i32, i32) {
    %c0_i32 = arith.constant 0 : i32
    %c0_i32_0 = arith.constant 0 : i32
    %c0_i32_1 = arith.constant 0 : i32
    return %c0_i32, %c0_i32_0 : i32, i32
  }
  func.func @transform_2(%arg0: i32, %arg1: i32) -> (i32, i32) {
    %c0_i32 = arith.constant 0 : i32
    %c0_i32_0 = arith.constant 0 : i32
    %c0_i32_1 = arith.constant 0 : i32
    return %c0_i32, %c0_i32_0 : i32, i32
  }
  func.func @transform_3(%arg0: i32, %arg1: i32) -> (i32, i32) {
    %0 = arith.muli %arg0, %arg1 : i32
    %c0_i32 = arith.constant 0 : i32
    %c0_i32_0 = arith.constant 0 : i32
    return %0, %c0_i32 : i32, i32
  }
}

module attributes {stable_mosaic.version = 11 : i64} {
  func.func @_conv_relu_kernel(%arg0: i32, %arg1: memref<16x640xbf16, #tpu.memory_space<vmem>>, %arg2: memref<640x128xbf16, #tpu.memory_space<vmem>>, %arg3: memref<8x128xf32, #tpu.memory_space<vmem>>, %arg4: memref<16x128xf32, #tpu.memory_space<vmem>>) attributes {dimension_semantics = [#tpu.dimension_semantics<parallel>], iteration_bounds = array<i64: 1>, scalar_prefetch = 0 : i64, scratch_operands = 0 : i64, tpu.core_type = #tpu.core_type<tc>, window_params = [{transform_indices = @transform_0, window_bounds = array<i64: 16, 640>}, {pipeline_mode = #tpu.pipeline_mode<synchronous>, transform_indices = @transform_1, window_bounds = array<i64: 640, 128>}, {pipeline_mode = #tpu.pipeline_mode<synchronous>, transform_indices = @transform_2, window_bounds = array<i64: 8, 128>}, {transform_indices = @transform_3, window_bounds = array<i64: 16, 128>}]} {
    %c0 = arith.constant 0 : index
    %c0_0 = arith.constant 0 : index
    %0 = vector.load %arg1[%c0, %c0_0] : memref<16x640xbf16, #tpu.memory_space<vmem>>, vector<16x640xbf16>
    %c0_1 = arith.constant 0 : index
    %c0_2 = arith.constant 0 : index
    %1 = vector.load %arg2[%c0_1, %c0_2] : memref<640x128xbf16, #tpu.memory_space<vmem>>, vector<640x128xbf16>
    %cst = arith.constant dense<0.000000e+00> : vector<16x128xf32>
    %2 = tpu.matmul %0, %1, %cst {dimension_numbers = #tpu.dot_dimension_numbers<[1], [0], [0], [1], [0, 0, 1, 1], [], []>} : vector<16x640xbf16>, vector<640x128xbf16>, vector<16x128xf32> -> vector<16x128xf32>
    %c0_3 = arith.constant 0 : index
    %c0_4 = arith.constant 0 : index
    %3 = vector.load %arg3[%c0_3, %c0_4] : memref<8x128xf32, #tpu.memory_space<vmem>>, vector<1x128xf32>
    %4 = vector.broadcast %3 : vector<1x128xf32> to vector<16x128xf32>
    %5 = arith.addf %2, %4 : vector<16x128xf32>
    %cst_5 = arith.constant 0.000000e+00 : f32
    %6 = vector.broadcast %cst_5 : f32 to vector<16x128xf32>
    %7 = arith.maximumf %5, %6 : vector<16x128xf32>
    %c0_6 = arith.constant 0 : index
    %c0_7 = arith.constant 0 : index
    %8 = vector.load %arg4[%c0_6, %c0_7] : memref<16x128xf32, #tpu.memory_space<vmem>>, vector<16x128xf32>
    tpu.vector_store %arg4[%c0_6, %c0_7], %7 {strides = array<i32>} : memref<16x128xf32, #tpu.memory_space<vmem>>, vector<16x128xf32>,
    return
  }
  func.func @transform_0(%arg0: i32) -> (i32, i32) {
    %c0_i32 = arith.constant 0 : i32
    %c0_i32_0 = arith.constant 0 : i32
    return %arg0, %c0_i32 : i32, i32
  }
  func.func @transform_1(%arg0: i32) -> (i32, i32) {
    %c0_i32 = arith.constant 0 : i32
    %c0_i32_0 = arith.constant 0 : i32
    %c0_i32_1 = arith.constant 0 : i32
    return %c0_i32, %c0_i32_0 : i32, i32
  }
  func.func @transform_2(%arg0: i32) -> (i32, i32) {
    %c0_i32 = arith.constant 0 : i32
    %c0_i32_0 = arith.constant 0 : i32
    %c0_i32_1 = arith.constant 0 : i32
    return %c0_i32, %c0_i32_0 : i32, i32
  }
  func.func @transform_3(%arg0: i32) -> (i32, i32) {
    %c0_i32 = arith.constant 0 : i32
    %c0_i32_0 = arith.constant 0 : i32
    return %arg0, %c0_i32 : i32, i32
  }
}

</mosaic_0001>

<llo_original>
// kernel: feature_extraction_forward.5
$region0: #{feature_extraction_forward.5}
  #allocation0 [shape = 'u32[]', space=smem, size = 0x4, offset = 0x4, fixed_abs, tag = 'smem constant byte address 0x4 - core index']
  #allocation1 [shape = 'u32[144,128]{1,0:T(1,128)}', space=vmem, size = 0x12000, scoped, tag = 'internal scratch']
  #allocation2 [shape = 'f32[128,128]{1,0:T(8,128)}', space=vmem, size = 0x10000, scoped, tag = 'scratch operand']
  #allocation3 [shape = 'f32[1,128]{1,0:T(1,128)}', space=vmem, size = 0x200, scoped, tag = 'scratch operand']
  #allocation4 [shape = 'f32[1,128]{1,0:T(1,128)}', space=vmem, size = 0x200, scoped, tag = 'scratch operand']
  %s0 = inlined_call_operand.vmem [shape: bf16[128,128], index: 0, kind: input, shape index: {}]
  %s1 = inlined_call_operand.vmem [shape: bf16[128,128], index: 1, kind: input, shape index: {}]
  %s2 = inlined_call_operand.vmem [shape: f32[8,128], index: 2, kind: input, shape index: {}]
  %s3 = inlined_call_operand.vmem [shape: bf16[128,128], index: 3, kind: output, shape index: {}]
  %s4 = sld [smem:[#allocation0]]
  $region57: #{feature_extraction_forward.5} parent=0
    _
  %s6 = ssub.s32 1, %s4
  %s7 = scalar_select 0, %s6, %s4
  loop: start=0, step=1, limit=4
  $region2: #{feature_extraction_forward.5} parent=0 // loop_pre_header
    _
  $region3: #{feature_extraction_forward.5} parent=0 // loop_header
    %s9 = sphi 0, %s13
    %p10 = scmp.ge.s32.totalorder %s9, 4
    %s16 = sphi 0, %s28
    %s17 = sphi 0, %s24
    %s18 = sphi 0, %s16
    %s19 = sphi 0, %s17
    %s20 = sphi 0, %s18
    %s21 = sphi 0, %s19
    %s35 = sphi 0, %s37
    %s38 = sphi 0, %s35
    %s39 = sphi 0, %s38
    %s55 = sphi 0, %s39
    %s59 = sphi 0, %s59
    %s61 = sphi 0, %s59
    %s62 = sphi 0, %s61
    %s76 = sphi 0, %s62
    %s80 = sphi 0, %s80
    %s82 = sphi 0, %s80
    %s83 = sphi 0, %s82
    %s97 = sphi 0, %s83
    %s105 = sphi 0, %s107
    %s108 = sphi 0, %s105
    %s109 = sphi 0, %s108
    %s125 = sphi 0, %s109
  $region4: #{feature_extraction_forward.5} parent=0 // loop_header_branch
    %12 = sbr.rel (%p10) target = $region8
  $region5: #{feature_extraction_forward.5} parent=0 // loop_body
    %s14 = ssub.s32 %s9, 1
    %s15 = ssub.s32 %s9, 2
    %s22 = sadd.s32 1, %s17
    %p23 = scmp.ge.s32.totalorder %s22, 1
    %s24 = scalar_select %p23, 0, %s22
    %s25 = sadd.s32 1, %s16
    %s26 = scalar_select %p23, %s25, %s16
    %p27 = scmp.ge.s32.totalorder %s26, 2
    %s28 = scalar_select %p27, 0, %s26
    %s29 = ssub.s32 1, %s16
    %s30 = smul.u32 %s29, %s17
    %s31 = ssub.s32 1, %s28
    %s32 = smul.u32 %s31, %s24
    %s33 = ssub.s32 %s30, %s32
    %p34 = scmp.eq.s32.totalorder %s33, 0
    %s36 = sadd.s32 %s35, 1
    %s37 = scalar_select %p34, %s35, %s36
    %p40 = pneg %p34
    %p41 = scmp.eq.s32.totalorder %s9, 1
    %p42 = por %p40, %p41
    %p43 = scmp.ne.s32.totalorder %s35, %s38
    %p44 = scmp.eq.s32.totalorder %s9, 0
    %p45 = por %p43, %p44
    %p46 = scmp.ne.s32.totalorder %s35, %s38
    %p47 = scmp.eq.s32.totalorder %s14, 1
    %p48 = por %p46, %p47
    %p49 = scmp.ne.s32.totalorder %s38, %s39
    %p50 = scmp.eq.s32.totalorder %s14, 0
    %p51 = por %p49, %p50
    %p52 = scmp.ne.s32.totalorder %s38, %s39
    %p53 = scmp.eq.s32.totalorder %s15, 1
    %p54 = por %p52, %p53
    %p56 = scmp.ne.s32.totalorder %s39, %s55
    %p57 = scmp.eq.s32.totalorder %s15, 0
    %p58 = por %p56, %p57
    %s60 = sadd.s32 %s59, 1
    %p63 = scmp.eq.s32.totalorder %s9, 1
    %p64 = scmp.ne.s32.totalorder %s59, %s61
    %p65 = scmp.eq.s32.totalorder %s9, 0
    %p66 = por %p64, %p65
    %p67 = scmp.ne.s32.totalorder %s59, %s61
    %p68 = scmp.eq.s32.totalorder %s14, 1
    %p69 = por %p67, %p68
    %p70 = scmp.ne.s32.totalorder %s61, %s62
    %p71 = scmp.eq.s32.totalorder %s14, 0
    %p72 = por %p70, %p71
    %p73 = scmp.ne.s32.totalorder %s61, %s62
    %p74 = scmp.eq.s32.totalorder %s15, 1
    %p75 = por %p73, %p74
    %p77 = scmp.ne.s32.totalorder %s62, %s76
    %p78 = scmp.eq.s32.totalorder %s15, 0
    %p79 = por %p77, %p78
    %s81 = sadd.s32 %s80, 1
    %p84 = scmp.eq.s32.totalorder %s9, 1
    %p85 = scmp.ne.s32.totalorder %s80, %s82
    %p86 = scmp.eq.s32.totalorder %s9, 0
    %p87 = por %p85, %p86
    %p88 = scmp.ne.s32.totalorder %s80, %s82
    %p89 = scmp.eq.s32.totalorder %s14, 1
    %p90 = por %p88, %p89
    %p91 = scmp.ne.s32.totalorder %s82, %s83
    %p92 = scmp.eq.s32.totalorder %s14, 0
    %p93 = por %p91, %p92
    %p94 = scmp.ne.s32.totalorder %s82, %s83
    %p95 = scmp.eq.s32.totalorder %s15, 1
    %p96 = por %p94, %p95
    %p98 = scmp.ne.s32.totalorder %s83, %s97
    %p99 = scmp.eq.s32.totalorder %s15, 0
    %p100 = por %p98, %p99
    %s101 = smul.u32 %s16, %s17
    %s102 = smul.u32 %s28, %s24
    %s103 = ssub.s32 %s101, %s102
    %p104 = scmp.eq.s32.totalorder %s103, 0
    %s106 = sadd.s32 %s105, 1
    %s107 = scalar_select %p104, %s105, %s106
    %p110 = pneg %p104
    %p111 = scmp.eq.s32.totalorder %s9, 1
    %p112 = por %p110, %p111
    %p113 = scmp.ne.s32.totalorder %s105, %s108
    %p114 = scmp.eq.s32.totalorder %s9, 0
    %p115 = por %p113, %p114
    %p116 = scmp.ne.s32.totalorder %s105, %s108
    %p117 = scmp.eq.s32.totalorder %s14, 1
    %p118 = por %p116, %p117
    %p119 = scmp.ne.s32.totalorder %s108, %s109
    %p120 = scmp.eq.s32.totalorder %s14, 0
    %p121 = por %p119, %p120
    %p122 = scmp.ne.s32.totalorder %s108, %s109
    %p123 = scmp.eq.s32.totalorder %s15, 1
    %p124 = por %p122, %p123
    %p126 = scmp.ne.s32.totalorder %s109, %s125
    %p127 = scmp.eq.s32.totalorder %s15, 0
    %p128 = por %p126, %p127
    %p129 = scmp.le.s32.totalorder 1, %s9
    %p130 = scmp.lt.s32.totalorder %s9, 3
    %p131 = pnand %p129, %p130
    %p132 = pneg %p131
    // Predicated region
    $region9: #{feature_extraction_forward.5} parent=5 // pred_check
      _
    $region10: #{feature_extraction_forward.5} parent=5 // pred_check_branch
      %134 = sbr.rel (%p131) target = $region12
    $region11: #{feature_extraction_forward.5} parent=5 // pred_region
      %s135 = ssub.s32 %s9, 1
      // Predicated region
      $region13: #{feature_extraction_forward.5} parent=11 // pred_check
        %p136 = pneg %p72
      $region14: #{feature_extraction_forward.5} parent=11 // pred_check_branch
        %138 = sbr.rel (%p136) target = $region16
      $region15: #{feature_extraction_forward.5} parent=11 // pred_region
        _
      $region16: #{feature_extraction_forward.5} parent=11 // pred_fallthru
        _
      // Predicated region
      $region17: #{feature_extraction_forward.5} parent=11 // pred_check
        %p139 = pneg %p93
      $region18: #{feature_extraction_forward.5} parent=11 // pred_check_branch
        %141 = sbr.rel (%p139) target = $region20
      $region19: #{feature_extraction_forward.5} parent=11 // pred_region
        _
      $region20: #{feature_extraction_forward.5} parent=11 // pred_fallthru
        _
    $region12: #{feature_extraction_forward.5} parent=5 // pred_fallthru
      _
    %p142 = scmp.lt.s32.totalorder %s9, 2
    // Predicated region
    $region21: #{feature_extraction_forward.5} parent=5 // pred_check
      %p143 = pneg %p142
    $region22: #{feature_extraction_forward.5} parent=5 // pred_check_branch
      %145 = sbr.rel (%p143) target = $region24
    $region23: #{feature_extraction_forward.5} parent=5 // pred_region
      // Predicated region
      $region25: #{feature_extraction_forward.5} parent=23 // pred_check
        %p146 = pneg %p45
      $region26: #{feature_extraction_forward.5} parent=23 // pred_check_branch
        %148 = sbr.rel (%p146) target = $region28
      $region27: #{feature_extraction_forward.5} parent=23 // pred_region
        %s149 = ssub.s32 1, %s16
        %s150 = smul.u32 %s149, %s17
        %s151 = smul.u32 16, %s150
        %p152 = scmp.lt.s32.totalorder %s151, 15
        %s153 = scalar_select %p152, %s151, 15
        %s154 = smul.addr %s153, 4
        %s155 = scalar_lea.vmem %s0, %s154
        %s156 = ssub.s32 1, %s16
        %s157 = smul.u32 %s156, %s17
        %s158 = smul.u32 16, %s157
      $region28: #{feature_extraction_forward.5} parent=23 // pred_fallthru
        _
    $region24: #{feature_extraction_forward.5} parent=5 // pred_fallthru
      _
    %p159 = scmp.le.s32.totalorder 1, %s9
    %p160 = scmp.lt.s32.totalorder %s9, 3
    %p161 = pnand %p159, %p160
    %p162 = pneg %p161
    // Predicated region
    $region29: #{feature_extraction_forward.5} parent=5 // pred_check
      _
    $region30: #{feature_extraction_forward.5} parent=5 // pred_check_branch
      %164 = sbr.rel (%p161) target = $region32
    $region31: #{feature_extraction_forward.5} parent=5 // pred_region
      %s165 = ssub.s32 %s9, 1
      %s166 = ssub.s32 1, %s18
      %s167 = smul.u32 %s166, %s19
      %s168 = smul.u32 16, %s167
      %p169 = scmp.lt.s32.totalorder %s168, 15
      %s170 = scalar_select %p169, %s168, 15
      %s171 = smul.addr %s170, 4
      %s172 = scalar_lea.vmem %s0, %s171
      %p173 = pneg %p51
      %p174 = pneg %p48
      %p175 = pneg %p72
      %p176 = pneg %p69
      %p177 = pneg %p93
      %p178 = pneg %p90
      %p179 = pneg %p121
      %p180 = pneg %p118
      %s181 = smul.u32 %s18, %s19
      %s182 = smul.u32 16, %s181
      %p183 = scmp.lt.s32.totalorder %s182, 15
      %s184 = scalar_select %p183, %s182, 15
      %s185 = smul.addr %s184, 4
      %s186 = scalar_lea.vmem %s3, %s185
      %s187 = ssub.s32 1, %s18
      %s188 = smul.u32 %s187, %s19
      %s189 = smul.u32 16, %s188
      %p190 = scmp.lt.s32.totalorder %s189, 15
      %s191 = scalar_select %p190, %s189, 15
      %s192 = smul.addr %s191, 4
      %s193 = scalar_lea.vmem %s0, %s192
      %s194 = ssub.s32 1, %s18
      %s195 = smul.u32 %s194, %s19
      %s196 = smul.u32 16, %s195
      %s197 = smul.u32 %s18, %s19
      %s198 = smul.u32 16, %s197
      %p199 = scmp.lt.s32.totalorder %s198, 15
      %s200 = scalar_select %p199, %s198, 15
      %s201 = smul.addr %s200, 4
      %s202 = scalar_lea.vmem %s3, %s201
      %s203 = smul.u32 %s18, %s19
      %s204 = smul.u32 16, %s203
      %s206 = smul.u32 %s19, 128
      %p207 = scmp.eq.s32.totalorder %s18, 0
      %p208 = scmp.eq.s32.totalorder %s19, 0
      %p209 = pnand %p207, %p208
      %p210 = pneg %p209
      // Predicated region
      $region33: #{feature_extraction_forward.5} parent=31 // pred_check
        _
      $region34: #{feature_extraction_forward.5} parent=31 // pred_check_branch
        %212 = sbr.rel (%p209) target = $region36
      $region35: #{feature_extraction_forward.5} parent=31 // pred_region
        %213 = vst [vmem:[#allocation3] sm:$0x1] 0.0
        %214 = vst [vmem:[#allocation4] sm:$0x1] 0.0
      $region36: #{feature_extraction_forward.5} parent=31 // pred_fallthru
        _
      // Predicated region
      $region37: #{feature_extraction_forward.5} parent=31 // pred_check
        %p215 = pneg %p207
      $region38: #{feature_extraction_forward.5} parent=31 // pred_check_branch
        %217 = sbr.rel (%p215) target = $region40
      $region39: #{feature_extraction_forward.5} parent=31 // pred_region
        %v218 = vld [vmem:[%s193] sm:$0xf]
        %v219 = vld [vmem:[%s193 + $0x4] sm:$0xf]
        %v220 = vld [vmem:[%s193 + $0x8] sm:$0xf]
        %v221 = vld [vmem:[%s193 + $0xc] sm:$0xf]
        %v222 = vld [vmem:[%s193 + $0x10] sm:$0xf]
        %v223 = vld [vmem:[%s193 + $0x14] sm:$0xf]
        %v224 = vld [vmem:[%s193 + $0x18] sm:$0xf]
        %v225 = vld [vmem:[%s193 + $0x1c] sm:$0xf]
        %v226 = vld [vmem:[%s193 + $0x20] sm:$0xf]
        %v227 = vld [vmem:[%s193 + $0x24] sm:$0xf]
        %v228 = vld [vmem:[%s193 + $0x28] sm:$0xf]
        %v229 = vld [vmem:[%s193 + $0x2c] sm:$0xf]
        %v230 = vld [vmem:[%s193 + $0x30] sm:$0xf]
        %v231 = vld [vmem:[%s193 + $0x34] sm:$0xf]
        %v232 = vld [vmem:[%s193 + $0x38] sm:$0xf]
        %v233 = vld [vmem:[%s193 + $0x3c] sm:$0xf]
        %v234 = vld [vmem:[%s1] sm:$0xf]
        %v235 = vld [vmem:[%s1 + $0x4] sm:$0xf]
        %v236 = vld [vmem:[%s1 + $0x8] sm:$0xf]
        %v237 = vld [vmem:[%s1 + $0xc] sm:$0xf]
        %v238 = vld [vmem:[%s1 + $0x10] sm:$0xf]
        %v239 = vld [vmem:[%s1 + $0x14] sm:$0xf]
        %v240 = vld [vmem:[%s1 + $0x18] sm:$0xf]
        %v241 = vld [vmem:[%s1 + $0x1c] sm:$0xf]
        %v242 = vld [vmem:[%s1 + $0x20] sm:$0xf]
        %v243 = vld [vmem:[%s1 + $0x24] sm:$0xf]
        %v244 = vld [vmem:[%s1 + $0x28] sm:$0xf]
        %v245 = vld [vmem:[%s1 + $0x2c] sm:$0xf]
        %v246 = vld [vmem:[%s1 + $0x30] sm:$0xf]
        %v247 = vld [vmem:[%s1 + $0x34] sm:$0xf]
        %v248 = vld [vmem:[%s1 + $0x38] sm:$0xf]
        %v249 = vld [vmem:[%s1 + $0x3c] sm:$0xf]
        %v250 = vld [vmem:[%s2] sm:$0x1]
        %v251 = vlaneseq
        %v252 = vshrl.u32 %v251, 7
        %v253 = vsub.s32 0, %v252
        %v254 = vrot.slane %v250, %v253
        %v271 = vunpack.c.l.b16 %v218
        %v272 = vunpack.c.l.b16 %v219
        %v273 = vunpack.c.l.b16 %v220
        %v274 = vunpack.c.l.b16 %v221
        %v275 = vunpack.c.l.b16 %v222
        %v276 = vunpack.c.l.b16 %v223
        %v277 = vunpack.c.l.b16 %v224
        %v278 = vunpack.c.l.b16 %v225
        %v279 = vunpack.c.l.b16 %v226
        %v280 = vunpack.c.l.b16 %v227
        %v281 = vunpack.c.l.b16 %v228
        %v282 = vunpack.c.l.b16 %v229
        %v283 = vunpack.c.l.b16 %v230
        %v284 = vunpack.c.l.b16 %v231
        %v285 = vunpack.c.l.b16 %v232
        %v286 = vunpack.c.l.b16 %v233
        %v287 = vpack.c.b16 %v272, %v271
        %v288 = vpack.c.b16 %v274, %v273
        %v289 = vpack.c.b16 %v276, %v275
        %v290 = vpack.c.b16 %v278, %v277
        %v291 = vpack.c.b16 %v280, %v279
        %v292 = vpack.c.b16 %v282, %v281
        %v293 = vpack.c.b16 %v284, %v283
        %v294 = vpack.c.b16 %v286, %v285
        %v319 = vunpack.c.l.b16 %v234
        %v320 = vunpack.c.l.b16 %v235
        %v321 = vunpack.c.l.b16 %v236
        %v322 = vunpack.c.l.b16 %v237
        %v323 = vunpack.c.l.b16 %v238
        %v324 = vunpack.c.l.b16 %v239
        %v325 = vunpack.c.l.b16 %v240
        %v326 = vunpack.c.l.b16 %v241
        %v327 = vunpack.c.l.b16 %v242
        %v328 = vunpack.c.l.b16 %v243
        %v329 = vunpack.c.l.b16 %v244
        %v330 = vunpack.c.l.b16 %v245
        %v331 = vunpack.c.l.b16 %v246
        %v332 = vunpack.c.l.b16 %v247
        %v333 = vunpack.c.l.b16 %v248
        %v334 = vunpack.c.l.b16 %v249
        %v335 = vpack.c.b16 %v320, %v319
        %v336 = vpack.c.b16 %v322, %v321
        %v337 = vpack.c.b16 %v324, %v323
        %v338 = vpack.c.b16 %v326, %v325
        %v339 = vpack.c.b16 %v328, %v327
        %v340 = vpack.c.b16 %v330, %v329
        %v341 = vpack.c.b16 %v332, %v331
        %v342 = vpack.c.b16 %v334, %v333
        %351 = vmatprep.subr.bf16.mxu0 0
        %352 = vmatpush1.bf16.msra.mxu0 %v335
        %353 = vmatprep.subr.bf16.mxu0 0
        %354 = vmatpush1.bf16.msra.mxu0 %v336
        %355 = vmatprep.subr.bf16.mxu0 0
        %356 = vmatpush1.bf16.msra.mxu0 %v337
        %357 = vmatprep.subr.bf16.mxu0 0
        %358 = vmatpush1.bf16.msra.mxu0 %v338
        %359 = vmatprep.subr.bf16.mxu0 0
        %360 = vmatpush1.bf16.msra.mxu0 %v339
        %361 = vmatprep.subr.bf16.mxu0 0
        %362 = vmatpush1.bf16.msra.mxu0 %v340
        %363 = vmatprep.subr.bf16.mxu0 0
        %364 = vmatpush1.bf16.msra.mxu0 %v341
        %365 = vmatprep.subr.bf16.mxu0 0
        %366 = vmatpush1.bf16.msra.mxu0 %v342
        %367 = vmatprep.subr.bf16.mxu0 0
        %368 = vmatpush1.bf16.msra.mxu0 0
        %369 = vmatprep.subr.bf16.mxu0 0
        %370 = vmatpush1.bf16.msra.mxu0 0
        %371 = vmatprep.subr.bf16.mxu0 0
        %372 = vmatpush1.bf16.msra.mxu0 0
        %373 = vmatprep.subr.bf16.mxu0 0
        %374 = vmatpush1.bf16.msra.mxu0 0
        %375 = vmatprep.subr.bf16.mxu0 0
        %376 = vmatpush1.bf16.msra.mxu0 0
        %377 = vmatprep.subr.bf16.mxu0 0
        %378 = vmatpush1.bf16.msra.mxu0 0
        %379 = vmatprep.subr.bf16.mxu0 0
        %380 = vmatpush1.bf16.msra.mxu0 0
        %381 = vmatprep.subr.bf16.mxu0 0
        %382 = vmatpush1.bf16.msra.mxu0 0
        %383 = vmatprep.mubr.bf16.mxu0 0
        %384 = vmatmul.mubr.bf16.gmra.mrb[0].mxu0 %v287
        %v385 = vpop.f32.mrb[0].mxu0
        %v386 = vadd.f32 %v254, %v385
        %v387 = vpop.f32.mrb[0].mxu0
        %v388 = vpop.f32.mrb[0].mxu0
        %v389 = vadd.f32 %v254, %v388
        %v390 = vpop.f32.mrb[0].mxu0
        %391 = vmatprep.mubr.bf16.mxu0 0
        %392 = vmatmul.mubr.bf16.gmra.mrb[0].mxu0 %v288
        %v393 = vpop.f32.mrb[0].mxu0
        %v394 = vadd.f32 %v254, %v393
        %v395 = vpop.f32.mrb[0].mxu0
        %v396 = vpop.f32.mrb[0].mxu0
        %v397 = vadd.f32 %v254, %v396
        %v398 = vpop.f32.mrb[0].mxu0
        %399 = vmatprep.mubr.bf16.mxu0 0
        %400 = vmatmul.mubr.bf16.gmra.mrb[0].mxu0 %v289
        %v401 = vpop.f32.mrb[0].mxu0
        %v402 = vadd.f32 %v254, %v401
        %v403 = vpop.f32.mrb[0].mxu0
        %v404 = vpop.f32.mrb[0].mxu0
        %v405 = vadd.f32 %v254, %v404
        %v406 = vpop.f32.mrb[0].mxu0
        %407 = vmatprep.mubr.bf16.mxu0 0
        %408 = vmatmul.mubr.bf16.gmra.mrb[0].mxu0 %v290
        %v409 = vpop.f32.mrb[0].mxu0
        %v410 = vadd.f32 %v254, %v409
        %v411 = vpop.f32.mrb[0].mxu0
        %v412 = vpop.f32.mrb[0].mxu0
        %v413 = vadd.f32 %v254, %v412
        %v414 = vpop.f32.mrb[0].mxu0
        %415 = vmatprep.mubr.bf16.mxu0 0
        %416 = vmatmul.mubr.bf16.gmra.mrb[0].mxu0 %v291
        %v417 = vpop.f32.mrb[0].mxu0
        %v418 = vadd.f32 %v254, %v417
        %v419 = vpop.f32.mrb[0].mxu0
        %v420 = vpop.f32.mrb[0].mxu0
        %v421 = vadd.f32 %v254, %v420
        %v422 = vpop.f32.mrb[0].mxu0
        %423 = vmatprep.mubr.bf16.mxu0 0
        %424 = vmatmul.mubr.bf16.gmra.mrb[0].mxu0 %v292
        %v425 = vpop.f32.mrb[0].mxu0
        %v426 = vadd.f32 %v254, %v425
        %v427 = vpop.f32.mrb[0].mxu0
        %v428 = vpop.f32.mrb[0].mxu0
        %v429 = vadd.f32 %v254, %v428
        %v430 = vpop.f32.mrb[0].mxu0
        %431 = vmatprep.mubr.bf16.mxu0 0
        %432 = vmatmul.mubr.bf16.gmra.mrb[0].mxu0 %v293
        %v433 = vpop.f32.mrb[0].mxu0
        %v434 = vadd.f32 %v254, %v433
        %v435 = vpop.f32.mrb[0].mxu0
        %v436 = vpop.f32.mrb[0].mxu0
        %v437 = vadd.f32 %v254, %v436
        %v438 = vpop.f32.mrb[0].mxu0
        %439 = vmatprep.mubr.bf16.mxu0 0
        %440 = vmatmul.mubr.bf16.gmra.mrb[0].mxu0 %v294
        %v441 = vpop.f32.mrb[0].mxu0
        %v442 = vadd.f32 %v254, %v441
        %v443 = vpop.f32.mrb[0].mxu0
        %v444 = vpop.f32.mrb[0].mxu0
        %v445 = vadd.f32 %v254, %v444
        %v446 = vpop.f32.mrb[0].mxu0
        %447 = vdwg.mxu0
        %v448 = vmax.f32 %v386, 0.0
        %v449 = vmax.f32 %v389, 0.0
        %v450 = vmax.f32 %v394, 0.0
        %v451 = vmax.f32 %v397, 0.0
        %v452 = vmax.f32 %v402, 0.0
        %v453 = vmax.f32 %v405, 0.0
        %v454 = vmax.f32 %v410, 0.0
        %v455 = vmax.f32 %v413, 0.0
        %v456 = vmax.f32 %v418, 0.0
        %v457 = vmax.f32 %v421, 0.0
        %v458 = vmax.f32 %v426, 0.0
        %v459 = vmax.f32 %v429, 0.0
        %v460 = vmax.f32 %v434, 0.0
        %v461 = vmax.f32 %v437, 0.0
        %v462 = vmax.f32 %v442, 0.0
        %v463 = vmax.f32 %v445, 0.0
        %s464 = scalar_lea.vmem [#allocation2], %s206
        %465 = vst [vmem:[%s464] sm:$0xff] %v448
        %466 = vst [vmem:[%s464 + $0x8] sm:$0xff] %v449
        %467 = vst [vmem:[%s464 + $0x10] sm:$0xff] %v450
        %468 = vst [vmem:[%s464 + $0x18] sm:$0xff] %v451
        %469 = vst [vmem:[%s464 + $0x20] sm:$0xff] %v452
        %470 = vst [vmem:[%s464 + $0x28] sm:$0xff] %v453
        %471 = vst [vmem:[%s464 + $0x30] sm:$0xff] %v454
        %472 = vst [vmem:[%s464 + $0x38] sm:$0xff] %v455
        %473 = vst [vmem:[%s464 + $0x40] sm:$0xff] %v456
        %474 = vst [vmem:[%s464 + $0x48] sm:$0xff] %v457
        %475 = vst [vmem:[%s464 + $0x50] sm:$0xff] %v458
        %476 = vst [vmem:[%s464 + $0x58] sm:$0xff] %v459
        %477 = vst [vmem:[%s464 + $0x60] sm:$0xff] %v460
        %478 = vst [vmem:[%s464 + $0x68] sm:$0xff] %v461
        %479 = vst [vmem:[%s464 + $0x70] sm:$0xff] %v462
        %480 = vst [vmem:[%s464 + $0x78] sm:$0xff] %v463
        %v481 = vlaneseq
        %v482 = vshrl.u32 %v481, 7
        %v483 = vadd.s32 %v482, 8
        %v484 = vadd.s32 %v482, 16
        %v485 = vadd.s32 %v482, 24
        %v486 = vadd.s32 %v482, 32
        %v487 = vadd.s32 %v482, 40
        %v488 = vadd.s32 %v482, 48
        %v489 = vadd.s32 %v482, 56
        %v490 = vadd.s32 %v482, 64
        %v491 = vadd.s32 %v482, 72
        %v492 = vadd.s32 %v482, 80
        %v493 = vadd.s32 %v482, 88
        %v494 = vadd.s32 %v482, 96
        %v495 = vadd.s32 %v482, 104
        %v496 = vadd.s32 %v482, 112
        %v497 = vadd.s32 %v482, 120
        %v498 = vstv %s206
        %v499 = vadd.s32 %v498, %v482
        %v500 = vadd.s32 %v498, %v483
        %v501 = vadd.s32 %v498, %v484
        %v502 = vadd.s32 %v498, %v485
        %v503 = vadd.s32 %v498, %v486
        %v504 = vadd.s32 %v498, %v487
        %v505 = vadd.s32 %v498, %v488
        %v506 = vadd.s32 %v498, %v489
        %v507 = vadd.s32 %v498, %v490
        %v508 = vadd.s32 %v498, %v491
        %v509 = vadd.s32 %v498, %v492
        %v510 = vadd.s32 %v498, %v493
        %v511 = vadd.s32 %v498, %v494
        %v512 = vadd.s32 %v498, %v495
        %v513 = vadd.s32 %v498, %v496
        %v514 = vadd.s32 %v498, %v497
        %vm515 = vcmp.lt.s32.totalorder %v499, 128
        %vm516 = vcmp.lt.s32.totalorder %v500, 128
        %vm517 = vcmp.lt.s32.totalorder %v501, 128
        %vm518 = vcmp.lt.s32.totalorder %v502, 128
        %vm519 = vcmp.lt.s32.totalorder %v503, 128
        %vm520 = vcmp.lt.s32.totalorder %v504, 128
        %vm521 = vcmp.lt.s32.totalorder %v505, 128
        %vm522 = vcmp.lt.s32.totalorder %v506, 128
        %vm523 = vcmp.lt.s32.totalorder %v507, 128
        %vm524 = vcmp.lt.s32.totalorder %v508, 128
        %vm525 = vcmp.lt.s32.totalorder %v509, 128
        %vm526 = vcmp.lt.s32.totalorder %v510, 128
        %vm527 = vcmp.lt.s32.totalorder %v511, 128
        %vm528 = vcmp.lt.s32.totalorder %v512, 128
        %vm529 = vcmp.lt.s32.totalorder %v513, 128
        %vm530 = vcmp.lt.s32.totalorder %v514, 128
        %v531 = vsel %vm515, 1, 0
        %v532 = vsel %vm516, 1, 0
        %v533 = vsel %vm517, 1, 0
        %v534 = vsel %vm518, 1, 0
        %v535 = vsel %vm519, 1, 0
        %v536 = vsel %vm520, 1, 0
        %v537 = vsel %vm521, 1, 0
        %v538 = vsel %vm522, 1, 0
        %v539 = vsel %vm523, 1, 0
        %v540 = vsel %vm524, 1, 0
        %v541 = vsel %vm525, 1, 0
        %v542 = vsel %vm526, 1, 0
        %v543 = vsel %vm527, 1, 0
        %v544 = vsel %vm528, 1, 0
        %v545 = vsel %vm529, 1, 0
        %v546 = vsel %vm530, 1, 0
        %vm547 = vcmp.eq.s32.totalorder %v531, 1
        %vm548 = vcmp.eq.s32.totalorder %v532, 1
        %vm549 = vcmp.eq.s32.totalorder %v533, 1
        %vm550 = vcmp.eq.s32.totalorder %v534, 1
        %vm551 = vcmp.eq.s32.totalorder %v535, 1
        %vm552 = vcmp.eq.s32.totalorder %v536, 1
        %vm553 = vcmp.eq.s32.totalorder %v537, 1
        %vm554 = vcmp.eq.s32.totalorder %v538, 1
        %vm555 = vcmp.eq.s32.totalorder %v539, 1
        %vm556 = vcmp.eq.s32.totalorder %v540, 1
        %vm557 = vcmp.eq.s32.totalorder %v541, 1
        %vm558 = vcmp.eq.s32.totalorder %v542, 1
        %vm559 = vcmp.eq.s32.totalorder %v543, 1
        %vm560 = vcmp.eq.s32.totalorder %v544, 1
        %vm561 = vcmp.eq.s32.totalorder %v545, 1
        %vm562 = vcmp.eq.s32.totalorder %v546, 1
        %v563 = vsel %vm547, %v448, 0.0
        %v564 = vsel %vm548, %v449, 0.0
        %v565 = vsel %vm549, %v450, 0.0
        %v566 = vsel %vm550, %v451, 0.0
        %v567 = vsel %vm551, %v452, 0.0
        %v568 = vsel %vm552, %v453, 0.0
        %v569 = vsel %vm553, %v454, 0.0
        %v570 = vsel %vm554, %v455, 0.0
        %v571 = vsel %vm555, %v456, 0.0
        %v572 = vsel %vm556, %v457, 0.0
        %v573 = vsel %vm557, %v458, 0.0
        %v574 = vsel %vm558, %v459, 0.0
        %v575 = vsel %vm559, %v460, 0.0
        %v576 = vsel %vm560, %v461, 0.0
        %v577 = vsel %vm561, %v462, 0.0
        %v578 = vsel %vm562, %v463, 0.0
        %v579 = vld [vmem:[#allocation3] sm:$0x1]
        %v580 = vadd.f32 %v563, %v564
        %v581 = vadd.f32 %v580, %v565
        %v582 = vadd.f32 %v581, %v566
        %v583 = vadd.f32 %v582, %v567
        %v584 = vadd.f32 %v583, %v568
        %v585 = vadd.f32 %v584, %v569
        %v586 = vadd.f32 %v585, %v570
        %v587 = vadd.f32 %v586, %v571
        %v588 = vadd.f32 %v587, %v572
        %v589 = vadd.f32 %v588, %v573
        %v590 = vadd.f32 %v589, %v574
        %v591 = vadd.f32 %v590, %v575
        %v592 = vadd.f32 %v591, %v576
        %v593 = vadd.f32 %v592, %v577
        %v594 = vadd.f32 %v593, %v578
        %v595 = vrot.slane %v594, 4
        %v596 = vadd.f32 %v594, %v595
        %v597 = vrot.slane %v596, 2
        %v598 = vadd.f32 %v596, %v597
        %v599 = vrot.slane %v598, 1
        %v600 = vadd.f32 %v598, %v599
        %v601 = vadd.f32 %v579, %v600
        %602 = vst [vmem:[#allocation3] sm:$0x1] %v601
        %v603 = vld [vmem:[#allocation4] sm:$0x1]
        %v604 = vmul.f32 %v563, %v563
        %v605 = vmul.f32 %v564, %v564
        %v606 = vmul.f32 %v565, %v565
        %v607 = vmul.f32 %v566, %v566
        %v608 = vmul.f32 %v567, %v567
        %v609 = vmul.f32 %v568, %v568
        %v610 = vmul.f32 %v569, %v569
        %v611 = vmul.f32 %v570, %v570
        %v612 = vmul.f32 %v571, %v571
        %v613 = vmul.f32 %v572, %v572
        %v614 = vmul.f32 %v573, %v573
        %v615 = vmul.f32 %v574, %v574
        %v616 = vmul.f32 %v575, %v575
        %v617 = vmul.f32 %v576, %v576
        %v618 = vmul.f32 %v577, %v577
        %v619 = vmul.f32 %v578, %v578
        %v620 = vadd.f32 %v604, %v605
        %v621 = vadd.f32 %v620, %v606
        %v622 = vadd.f32 %v621, %v607
        %v623 = vadd.f32 %v622, %v608
        %v624 = vadd.f32 %v623, %v609
        %v625 = vadd.f32 %v624, %v610
        %v626 = vadd.f32 %v625, %v611
        %v627 = vadd.f32 %v626, %v612
        %v628 = vadd.f32 %v627, %v613
        %v629 = vadd.f32 %v628, %v614
        %v630 = vadd.f32 %v629, %v615
        %v631 = vadd.f32 %v630, %v616
        %v632 = vadd.f32 %v631, %v617
        %v633 = vadd.f32 %v632, %v618
        %v634 = vadd.f32 %v633, %v619
        %v635 = vrot.slane %v634, 4
        %v636 = vadd.f32 %v634, %v635
        %v637 = vrot.slane %v636, 2
        %v638 = vadd.f32 %v636, %v637
        %v639 = vrot.slane %v638, 1
        %v640 = vadd.f32 %v638, %v639
        %v641 = vadd.f32 %v603, %v640
        %642 = vst [vmem:[#allocation4] sm:$0x1] %v641
      $region40: #{feature_extraction_forward.5} parent=31 // pred_fallthru
        _
      %p643 = scmp.eq.s32.totalorder %s18, 1
      // Predicated region
      $region41: #{feature_extraction_forward.5} parent=31 // pred_check
        %p644 = pneg %p643
      $region42: #{feature_extraction_forward.5} parent=31 // pred_check_branch
        %646 = sbr.rel (%p644) target = $region44
      $region43: #{feature_extraction_forward.5} parent=31 // pred_region
        %v647 = vld [vmem:[#allocation3] sm:$0x1]
        %v648 = vmul.f32 %v647, 0.0078125
        %v649 = vld [vmem:[#allocation4] sm:$0x1]
        %v650 = vmul.f32 %v649, 0.0078125
        %v651 = vmul.f32 %v648, %v648
        %v652 = vsub.f32 %v650, %v651
        %v653 = vadd.f32 %v652, 1e-05
        %v654 = vrsqrt.pop %v653
        %v655 = vld [vmem:[%s2 + $0x1] sm:$0x1]
        %v656 = vmul.f32 %v654, %v655
        %v657 = vld [vmem:[%s2 + $0x2] sm:$0x1]
        %v658 = vmul.f32 %v648, %v656
        %v659 = vsub.f32 %v657, %v658
        %s660 = scalar_lea.vmem [#allocation2], %s206
        %v661 = vld [vmem:[%s660] sm:$0xff]
        %v662 = vld [vmem:[%s660 + $0x8] sm:$0xff]
        %v663 = vld [vmem:[%s660 + $0x10] sm:$0xff]
        %v664 = vld [vmem:[%s660 + $0x18] sm:$0xff]
        %v665 = vld [vmem:[%s660 + $0x20] sm:$0xff]
        %v666 = vld [vmem:[%s660 + $0x28] sm:$0xff]
        %v667 = vld [vmem:[%s660 + $0x30] sm:$0xff]
        %v668 = vld [vmem:[%s660 + $0x38] sm:$0xff]
        %v669 = vld [vmem:[%s660 + $0x40] sm:$0xff]
        %v670 = vld [vmem:[%s660 + $0x48] sm:$0xff]
        %v671 = vld [vmem:[%s660 + $0x50] sm:$0xff]
        %v672 = vld [vmem:[%s660 + $0x58] sm:$0xff]
        %v673 = vld [vmem:[%s660 + $0x60] sm:$0xff]
        %v674 = vld [vmem:[%s660 + $0x68] sm:$0xff]
        %v675 = vld [vmem:[%s660 + $0x70] sm:$0xff]
        %v676 = vld [vmem:[%s660 + $0x78] sm:$0xff]
        %v678 = vlaneseq
        %v679 = vshrl.u32 %v678, 7
        %v680 = vsub.s32 0, %v679
        %v681 = vrot.slane %v656, %v680
        %v683 = vmul.f32 %v661, %v681
        %v684 = vmul.f32 %v662, %v681
        %v685 = vmul.f32 %v663, %v681
        %v686 = vmul.f32 %v664, %v681
        %v687 = vmul.f32 %v665, %v681
        %v688 = vmul.f32 %v666, %v681
        %v689 = vmul.f32 %v667, %v681
        %v690 = vmul.f32 %v668, %v681
        %v691 = vmul.f32 %v669, %v681
        %v692 = vmul.f32 %v670, %v681
        %v693 = vmul.f32 %v671, %v681
        %v694 = vmul.f32 %v672, %v681
        %v695 = vmul.f32 %v673, %v681
        %v696 = vmul.f32 %v674, %v681
        %v697 = vmul.f32 %v675, %v681
        %v698 = vmul.f32 %v676, %v681
        %v699 = vlaneseq
        %v700 = vshrl.u32 %v699, 7
        %v701 = vsub.s32 0, %v700
        %v702 = vrot.slane %v659, %v701
        %v703 = vadd.f32 %v683, %v702
        %v704 = vadd.f32 %v684, %v702
        %v705 = vadd.f32 %v685, %v702
        %v706 = vadd.f32 %v686, %v702
        %v707 = vadd.f32 %v687, %v702
        %v708 = vadd.f32 %v688, %v702
        %v709 = vadd.f32 %v689, %v702
        %v710 = vadd.f32 %v690, %v702
        %v711 = vadd.f32 %v691, %v702
        %v712 = vadd.f32 %v692, %v702
        %v713 = vadd.f32 %v693, %v702
        %v714 = vadd.f32 %v694, %v702
        %v715 = vadd.f32 %v695, %v702
        %v716 = vadd.f32 %v696, %v702
        %v717 = vadd.f32 %v697, %v702
        %v718 = vadd.f32 %v698, %v702
        %v719 = vpack.c.bf16 %v704, %v703
        %v720 = vpack.c.bf16 %v706, %v705
        %v721 = vpack.c.bf16 %v708, %v707
        %v722 = vpack.c.bf16 %v710, %v709
        %v723 = vpack.c.bf16 %v712, %v711
        %v724 = vpack.c.bf16 %v714, %v713
        %v725 = vpack.c.bf16 %v716, %v715
        %v726 = vpack.c.bf16 %v718, %v717
        %v735 = vunpack.c.l.b16 %v719
        %v736 = vunpack.c.h.b16 %v719
        %v737 = vunpack.c.l.b16 %v720
        %v738 = vunpack.c.h.b16 %v720
        %v739 = vunpack.c.l.b16 %v721
        %v740 = vunpack.c.h.b16 %v721
        %v741 = vunpack.c.l.b16 %v722
        %v742 = vunpack.c.h.b16 %v722
        %v743 = vunpack.c.l.b16 %v723
        %v744 = vunpack.c.h.b16 %v723
        %v745 = vunpack.c.l.b16 %v724
        %v746 = vunpack.c.h.b16 %v724
        %v747 = vunpack.c.l.b16 %v725
        %v748 = vunpack.c.h.b16 %v725
        %v749 = vunpack.c.l.b16 %v726
        %v750 = vunpack.c.h.b16 %v726
        %v751 = vpack.c.b16 %v735, %v735
        %v752 = vpack.c.b16 %v736, %v736
        %v753 = vpack.c.b16 %v737, %v737
        %v754 = vpack.c.b16 %v738, %v738
        %v755 = vpack.c.b16 %v739, %v739
        %v756 = vpack.c.b16 %v740, %v740
        %v757 = vpack.c.b16 %v741, %v741
        %v758 = vpack.c.b16 %v742, %v742
        %v759 = vpack.c.b16 %v743, %v743
        %v760 = vpack.c.b16 %v744, %v744
        %v761 = vpack.c.b16 %v745, %v745
        %v762 = vpack.c.b16 %v746, %v746
        %v763 = vpack.c.b16 %v747, %v747
        %v764 = vpack.c.b16 %v748, %v748
        %v765 = vpack.c.b16 %v749, %v749
        %v766 = vpack.c.b16 %v750, %v750
        %783 = vst [vmem:[%s202] sm:$0xf] %v751
        %784 = vst [vmem:[%s202 + $0x4] sm:$0xf] %v752
        %785 = vst [vmem:[%s202 + $0x8] sm:$0xf] %v753
        %786 = vst [vmem:[%s202 + $0xc] sm:$0xf] %v754
        %787 = vst [vmem:[%s202 + $0x10] sm:$0xf] %v755
        %788 = vst [vmem:[%s202 + $0x14] sm:$0xf] %v756
        %789 = vst [vmem:[%s202 + $0x18] sm:$0xf] %v757
        %790 = vst [vmem:[%s202 + $0x1c] sm:$0xf] %v758
        %791 = vst [vmem:[%s202 + $0x20] sm:$0xf] %v759
        %792 = vst [vmem:[%s202 + $0x24] sm:$0xf] %v760
        %793 = vst [vmem:[%s202 + $0x28] sm:$0xf] %v761
        %794 = vst [vmem:[%s202 + $0x2c] sm:$0xf] %v762
        %795 = vst [vmem:[%s202 + $0x30] sm:$0xf] %v763
        %796 = vst [vmem:[%s202 + $0x34] sm:$0xf] %v764
        %797 = vst [vmem:[%s202 + $0x38] sm:$0xf] %v765
        %798 = vst [vmem:[%s202 + $0x3c] sm:$0xf] %v766
      $region44: #{feature_extraction_forward.5} parent=31 // pred_fallthru
        _
      %s799 = smul.u32 %s18, %s19
      %s800 = smul.u32 16, %s799
      %p801 = scmp.lt.s32.totalorder %s800, 15
      %s802 = scalar_select %p801, %s800, 15
      %s803 = smul.addr %s802, 4
      %s804 = scalar_lea.vmem %s3, %s803
      // Predicated region
      $region45: #{feature_extraction_forward.5} parent=31 // pred_check
        %p805 = pneg %p118
      $region46: #{feature_extraction_forward.5} parent=31 // pred_check_branch
        %807 = sbr.rel (%p805) target = $region48
      $region47: #{feature_extraction_forward.5} parent=31 // pred_region
        %s808 = smul.u32 %s18, %s19
        %s809 = smul.u32 16, %s808
      $region48: #{feature_extraction_forward.5} parent=31 // pred_fallthru
        _
    $region32: #{feature_extraction_forward.5} parent=5 // pred_fallthru
      _
    %p810 = scmp.le.s32.totalorder 2, %s9
    // Predicated region
    $region49: #{feature_extraction_forward.5} parent=5 // pred_check
      %p811 = pneg %p810
    $region50: #{feature_extraction_forward.5} parent=5 // pred_check_branch
      %813 = sbr.rel (%p811) target = $region52
    $region51: #{feature_extraction_forward.5} parent=5 // pred_region
      %s814 = ssub.s32 %s9, 2
      // Predicated region
      $region53: #{feature_extraction_forward.5} parent=51 // pred_check
        %p815 = pneg %p124
      $region54: #{feature_extraction_forward.5} parent=51 // pred_check_branch
        %817 = sbr.rel (%p815) target = $region56
      $region55: #{feature_extraction_forward.5} parent=51 // pred_region
        %s818 = smul.u32 %s20, %s21
        %s819 = smul.u32 16, %s818
        %p820 = scmp.lt.s32.totalorder %s819, 15
        %s821 = scalar_select %p820, %s819, 15
        %s822 = smul.addr %s821, 4
        %s823 = scalar_lea.vmem %s3, %s822
      $region56: #{feature_extraction_forward.5} parent=51 // pred_fallthru
        _
    $region52: #{feature_extraction_forward.5} parent=5 // pred_fallthru
      _
  $region6: #{feature_extraction_forward.5} parent=0 // loop_footer
    %s13 = sadd.s32 1, %s9
  $region7: #{feature_extraction_forward.5} parent=0 // loop_footer_branch
    %8 = sbr.rel target = $region3
  $region8: #{feature_extraction_forward.5} parent=0 // loop_exit
    _

// kernel: feature_extraction_forward.6
$region0: #{feature_extraction_forward.6}
  #allocation0 [shape = 'u32[]', space=smem, size = 0x4, offset = 0x4, fixed_abs, tag = 'smem constant byte address 0x4 - core index']
  #allocation1 [shape = 'u32[144,128]{1,0:T(1,128)}', space=vmem, size = 0x12000, scoped, tag = 'internal scratch']
  #allocation2 [shape = 'f32[32,128]{1,0:T(8,128)}', space=vmem, size = 0x4000, scoped, tag = 'scratch operand']
  #allocation3 [shape = 'f32[1,128]{1,0:T(1,128)}', space=vmem, size = 0x200, scoped, tag = 'scratch operand']
  #allocation4 [shape = 'f32[1,128]{1,0:T(1,128)}', space=vmem, size = 0x200, scoped, tag = 'scratch operand']
  %s0 = inlined_call_operand.vmem [shape: bf16[32,256], index: 0, kind: input, shape index: {}]
  %s1 = inlined_call_operand.vmem [shape: bf16[256,128], index: 1, kind: input, shape index: {}]
  %s2 = inlined_call_operand.vmem [shape: f32[8,128], index: 2, kind: input, shape index: {}]
  %s3 = inlined_call_operand.vmem [shape: bf16[32,128], index: 3, kind: output, shape index: {}]
  %s4 = sld [smem:[#allocation0]]
  $region57: #{feature_extraction_forward.6} parent=0
    _
  %s6 = ssub.s32 1, %s4
  %s7 = scalar_select 0, %s6, %s4
  loop: start=0, step=1, limit=4
  $region2: #{feature_extraction_forward.6} parent=0 // loop_pre_header
    _
  $region3: #{feature_extraction_forward.6} parent=0 // loop_header
    %s9 = sphi 0, %s13
    %p10 = scmp.ge.s32.totalorder %s9, 4
    %s16 = sphi 0, %s28
    %s17 = sphi 0, %s24
    %s18 = sphi 0, %s16
    %s19 = sphi 0, %s17
    %s20 = sphi 0, %s18
    %s21 = sphi 0, %s19
    %s35 = sphi 0, %s37
    %s38 = sphi 0, %s35
    %s39 = sphi 0, %s38
    %s55 = sphi 0, %s39
    %s59 = sphi 0, %s59
    %s61 = sphi 0, %s59
    %s62 = sphi 0, %s61
    %s76 = sphi 0, %s62
    %s80 = sphi 0, %s80
    %s82 = sphi 0, %s80
    %s83 = sphi 0, %s82
    %s97 = sphi 0, %s83
    %s105 = sphi 0, %s107
    %s108 = sphi 0, %s105
    %s109 = sphi 0, %s108
    %s125 = sphi 0, %s109
  $region4: #{feature_extraction_forward.6} parent=0 // loop_header_branch
    %12 = sbr.rel (%p10) target = $region8
  $region5: #{feature_extraction_forward.6} parent=0 // loop_body
    %s14 = ssub.s32 %s9, 1
    %s15 = ssub.s32 %s9, 2
    %s22 = sadd.s32 1, %s17
    %p23 = scmp.ge.s32.totalorder %s22, 1
    %s24 = scalar_select %p23, 0, %s22
    %s25 = sadd.s32 1, %s16
    %s26 = scalar_select %p23, %s25, %s16
    %p27 = scmp.ge.s32.totalorder %s26, 2
    %s28 = scalar_select %p27, 0, %s26
    %s29 = ssub.s32 1, %s16
    %s30 = smul.u32 %s29, %s17
    %s31 = ssub.s32 1, %s28
    %s32 = smul.u32 %s31, %s24
    %s33 = ssub.s32 %s30, %s32
    %p34 = scmp.eq.s32.totalorder %s33, 0
    %s36 = sadd.s32 %s35, 1
    %s37 = scalar_select %p34, %s35, %s36
    %p40 = pneg %p34
    %p41 = scmp.eq.s32.totalorder %s9, 1
    %p42 = por %p40, %p41
    %p43 = scmp.ne.s32.totalorder %s35, %s38
    %p44 = scmp.eq.s32.totalorder %s9, 0
    %p45 = por %p43, %p44
    %p46 = scmp.ne.s32.totalorder %s35, %s38
    %p47 = scmp.eq.s32.totalorder %s14, 1
    %p48 = por %p46, %p47
    %p49 = scmp.ne.s32.totalorder %s38, %s39
    %p50 = scmp.eq.s32.totalorder %s14, 0
    %p51 = por %p49, %p50
    %p52 = scmp.ne.s32.totalorder %s38, %s39
    %p53 = scmp.eq.s32.totalorder %s15, 1
    %p54 = por %p52, %p53
    %p56 = scmp.ne.s32.totalorder %s39, %s55
    %p57 = scmp.eq.s32.totalorder %s15, 0
    %p58 = por %p56, %p57
    %s60 = sadd.s32 %s59, 1
    %p63 = scmp.eq.s32.totalorder %s9, 1
    %p64 = scmp.ne.s32.totalorder %s59, %s61
    %p65 = scmp.eq.s32.totalorder %s9, 0
    %p66 = por %p64, %p65
    %p67 = scmp.ne.s32.totalorder %s59, %s61
    %p68 = scmp.eq.s32.totalorder %s14, 1
    %p69 = por %p67, %p68
    %p70 = scmp.ne.s32.totalorder %s61, %s62
    %p71 = scmp.eq.s32.totalorder %s14, 0
    %p72 = por %p70, %p71
    %p73 = scmp.ne.s32.totalorder %s61, %s62
    %p74 = scmp.eq.s32.totalorder %s15, 1
    %p75 = por %p73, %p74
    %p77 = scmp.ne.s32.totalorder %s62, %s76
    %p78 = scmp.eq.s32.totalorder %s15, 0
    %p79 = por %p77, %p78
    %s81 = sadd.s32 %s80, 1
    %p84 = scmp.eq.s32.totalorder %s9, 1
    %p85 = scmp.ne.s32.totalorder %s80, %s82
    %p86 = scmp.eq.s32.totalorder %s9, 0
    %p87 = por %p85, %p86
    %p88 = scmp.ne.s32.totalorder %s80, %s82
    %p89 = scmp.eq.s32.totalorder %s14, 1
    %p90 = por %p88, %p89
    %p91 = scmp.ne.s32.totalorder %s82, %s83
    %p92 = scmp.eq.s32.totalorder %s14, 0
    %p93 = por %p91, %p92
    %p94 = scmp.ne.s32.totalorder %s82, %s83
    %p95 = scmp.eq.s32.totalorder %s15, 1
    %p96 = por %p94, %p95
    %p98 = scmp.ne.s32.totalorder %s83, %s97
    %p99 = scmp.eq.s32.totalorder %s15, 0
    %p100 = por %p98, %p99
    %s101 = smul.u32 %s16, %s17
    %s102 = smul.u32 %s28, %s24
    %s103 = ssub.s32 %s101, %s102
    %p104 = scmp.eq.s32.totalorder %s103, 0
    %s106 = sadd.s32 %s105, 1
    %s107 = scalar_select %p104, %s105, %s106
    %p110 = pneg %p104
    %p111 = scmp.eq.s32.totalorder %s9, 1
    %p112 = por %p110, %p111
    %p113 = scmp.ne.s32.totalorder %s105, %s108
    %p114 = scmp.eq.s32.totalorder %s9, 0
    %p115 = por %p113, %p114
    %p116 = scmp.ne.s32.totalorder %s105, %s108
    %p117 = scmp.eq.s32.totalorder %s14, 1
    %p118 = por %p116, %p117
    %p119 = scmp.ne.s32.totalorder %s108, %s109
    %p120 = scmp.eq.s32.totalorder %s14, 0
    %p121 = por %p119, %p120
    %p122 = scmp.ne.s32.totalorder %s108, %s109
    %p123 = scmp.eq.s32.totalorder %s15, 1
    %p124 = por %p122, %p123
    %p126 = scmp.ne.s32.totalorder %s109, %s125
    %p127 = scmp.eq.s32.totalorder %s15, 0
    %p128 = por %p126, %p127
    %p129 = scmp.le.s32.totalorder 1, %s9
    %p130 = scmp.lt.s32.totalorder %s9, 3
    %p131 = pnand %p129, %p130
    %p132 = pneg %p131
    // Predicated region
    $region9: #{feature_extraction_forward.6} parent=5 // pred_check
      _
    $region10: #{feature_extraction_forward.6} parent=5 // pred_check_branch
      %134 = sbr.rel (%p131) target = $region12
    $region11: #{feature_extraction_forward.6} parent=5 // pred_region
      %s135 = ssub.s32 %s9, 1
      // Predicated region
      $region13: #{feature_extraction_forward.6} parent=11 // pred_check
        %p136 = pneg %p72
      $region14: #{feature_extraction_forward.6} parent=11 // pred_check_branch
        %138 = sbr.rel (%p136) target = $region16
      $region15: #{feature_extraction_forward.6} parent=11 // pred_region
        _
      $region16: #{feature_extraction_forward.6} parent=11 // pred_fallthru
        _
      // Predicated region
      $region17: #{feature_extraction_forward.6} parent=11 // pred_check
        %p139 = pneg %p93
      $region18: #{feature_extraction_forward.6} parent=11 // pred_check_branch
        %141 = sbr.rel (%p139) target = $region20
      $region19: #{feature_extraction_forward.6} parent=11 // pred_region
        _
      $region20: #{feature_extraction_forward.6} parent=11 // pred_fallthru
        _
    $region12: #{feature_extraction_forward.6} parent=5 // pred_fallthru
      _
    %p142 = scmp.lt.s32.totalorder %s9, 2
    // Predicated region
    $region21: #{feature_extraction_forward.6} parent=5 // pred_check
      %p143 = pneg %p142
    $region22: #{feature_extraction_forward.6} parent=5 // pred_check_branch
      %145 = sbr.rel (%p143) target = $region24
    $region23: #{feature_extraction_forward.6} parent=5 // pred_region
      // Predicated region
      $region25: #{feature_extraction_forward.6} parent=23 // pred_check
        %p146 = pneg %p45
      $region26: #{feature_extraction_forward.6} parent=23 // pred_check_branch
        %148 = sbr.rel (%p146) target = $region28
      $region27: #{feature_extraction_forward.6} parent=23 // pred_region
        %s149 = ssub.s32 1, %s16
        %s150 = smul.u32 %s149, %s17
        %s151 = smul.u32 4, %s150
        %p152 = scmp.lt.s32.totalorder %s151, 3
        %s153 = scalar_select %p152, %s151, 3
        %s154 = smul.addr %s153, 2
        %s155 = smul.addr %s154, 4
        %s156 = scalar_lea.vmem %s0, %s155
        %s157 = ssub.s32 1, %s16
        %s158 = smul.u32 %s157, %s17
        %s159 = smul.u32 4, %s158
      $region28: #{feature_extraction_forward.6} parent=23 // pred_fallthru
        _
    $region24: #{feature_extraction_forward.6} parent=5 // pred_fallthru
      _
    %p160 = scmp.le.s32.totalorder 1, %s9
    %p161 = scmp.lt.s32.totalorder %s9, 3
    %p162 = pnand %p160, %p161
    %p163 = pneg %p162
    // Predicated region
    $region29: #{feature_extraction_forward.6} parent=5 // pred_check
      _
    $region30: #{feature_extraction_forward.6} parent=5 // pred_check_branch
      %165 = sbr.rel (%p162) target = $region32
    $region31: #{feature_extraction_forward.6} parent=5 // pred_region
      %s166 = ssub.s32 %s9, 1
      %s167 = ssub.s32 1, %s18
      %s168 = smul.u32 %s167, %s19
      %s169 = smul.u32 4, %s168
      %p170 = scmp.lt.s32.totalorder %s169, 3
      %s171 = scalar_select %p170, %s169, 3
      %s172 = smul.addr %s171, 2
      %s173 = smul.addr %s172, 4
      %s174 = scalar_lea.vmem %s0, %s173
      %p175 = pneg %p51
      %p176 = pneg %p48
      %p177 = pneg %p72
      %p178 = pneg %p69
      %p179 = pneg %p93
      %p180 = pneg %p90
      %p181 = pneg %p121
      %p182 = pneg %p118
      %s183 = smul.u32 %s18, %s19
      %s184 = smul.u32 4, %s183
      %p185 = scmp.lt.s32.totalorder %s184, 3
      %s186 = scalar_select %p185, %s184, 3
      %s187 = smul.addr %s186, 4
      %s188 = scalar_lea.vmem %s3, %s187
      %s189 = ssub.s32 1, %s18
      %s190 = smul.u32 %s189, %s19
      %s191 = smul.u32 4, %s190
      %p192 = scmp.lt.s32.totalorder %s191, 3
      %s193 = scalar_select %p192, %s191, 3
      %s194 = smul.addr %s193, 2
      %s195 = smul.addr %s194, 4
      %s196 = scalar_lea.vmem %s0, %s195
      %s197 = ssub.s32 1, %s18
      %s198 = smul.u32 %s197, %s19
      %s199 = smul.u32 4, %s198
      %s200 = smul.u32 %s18, %s19
      %s201 = smul.u32 4, %s200
      %p202 = scmp.lt.s32.totalorder %s201, 3
      %s203 = scalar_select %p202, %s201, 3
      %s204 = smul.addr %s203, 4
      %s205 = scalar_lea.vmem %s3, %s204
      %s206 = smul.u32 %s18, %s19
      %s207 = smul.u32 4, %s206
      %s209 = smul.u32 %s19, 32
      %p210 = scmp.eq.s32.totalorder %s18, 0
      %p211 = scmp.eq.s32.totalorder %s19, 0
      %p212 = pnand %p210, %p211
      %p213 = pneg %p212
      // Predicated region
      $region33: #{feature_extraction_forward.6} parent=31 // pred_check
        _
      $region34: #{feature_extraction_forward.6} parent=31 // pred_check_branch
        %215 = sbr.rel (%p212) target = $region36
      $region35: #{feature_extraction_forward.6} parent=31 // pred_region
        %216 = vst [vmem:[#allocation3] sm:$0x1] 0.0
        %217 = vst [vmem:[#allocation4] sm:$0x1] 0.0
      $region36: #{feature_extraction_forward.6} parent=31 // pred_fallthru
        _
      // Predicated region
      $region37: #{feature_extraction_forward.6} parent=31 // pred_check
        %p218 = pneg %p210
      $region38: #{feature_extraction_forward.6} parent=31 // pred_check_branch
        %220 = sbr.rel (%p218) target = $region40
      $region39: #{feature_extraction_forward.6} parent=31 // pred_region
        %v221 = vld [vmem:[%s196] sm:$0xff]
        %v222 = vld [vmem:[%s196 + $0x8] sm:$0xff]
        %v223 = vld [vmem:[%s196 + $0x10] sm:$0xff]
        %v224 = vld [vmem:[%s196 + $0x18] sm:$0xff]
        %v225 = vld [vmem:[%s1] sm:$0xf]
        %v226 = vld [vmem:[%s1 + $0x4] sm:$0xf]
        %v227 = vld [vmem:[%s1 + $0x8] sm:$0xf]
        %v228 = vld [vmem:[%s1 + $0xc] sm:$0xf]
        %v229 = vld [vmem:[%s1 + $0x10] sm:$0xf]
        %v230 = vld [vmem:[%s1 + $0x14] sm:$0xf]
        %v231 = vld [vmem:[%s1 + $0x18] sm:$0xf]
        %v232 = vld [vmem:[%s1 + $0x1c] sm:$0xf]
        %v233 = vld [vmem:[%s1 + $0x20] sm:$0xf]
        %v234 = vld [vmem:[%s1 + $0x24] sm:$0xf]
        %v235 = vld [vmem:[%s1 + $0x28] sm:$0xf]
        %v236 = vld [vmem:[%s1 + $0x2c] sm:$0xf]
        %v237 = vld [vmem:[%s1 + $0x30] sm:$0xf]
        %v238 = vld [vmem:[%s1 + $0x34] sm:$0xf]
        %v239 = vld [vmem:[%s1 + $0x38] sm:$0xf]
        %v240 = vld [vmem:[%s1 + $0x3c] sm:$0xf]
        %v241 = vld [vmem:[%s1 + $0x40] sm:$0xf]
        %v242 = vld [vmem:[%s1 + $0x44] sm:$0xf]
        %v243 = vld [vmem:[%s1 + $0x48] sm:$0xf]
        %v244 = vld [vmem:[%s1 + $0x4c] sm:$0xf]
        %v245 = vld [vmem:[%s1 + $0x50] sm:$0xf]
        %v246 = vld [vmem:[%s1 + $0x54] sm:$0xf]
        %v247 = vld [vmem:[%s1 + $0x58] sm:$0xf]
        %v248 = vld [vmem:[%s1 + $0x5c] sm:$0xf]
        %v249 = vld [vmem:[%s1 + $0x60] sm:$0xf]
        %v250 = vld [vmem:[%s1 + $0x64] sm:$0xf]
        %v251 = vld [vmem:[%s1 + $0x68] sm:$0xf]
        %v252 = vld [vmem:[%s1 + $0x6c] sm:$0xf]
        %v253 = vld [vmem:[%s1 + $0x70] sm:$0xf]
        %v254 = vld [vmem:[%s1 + $0x74] sm:$0xf]
        %v255 = vld [vmem:[%s1 + $0x78] sm:$0xf]
        %v256 = vld [vmem:[%s1 + $0x7c] sm:$0xf]
        %v257 = vld [vmem:[%s2] sm:$0x1]
        %v258 = vlaneseq
        %v259 = vshrl.u32 %v258, 7
        %v260 = vsub.s32 0, %v259
        %v261 = vrot.slane %v257, %v260
        %v266 = vunpack.c.l.b16 %v221
        %v267 = vunpack.c.h.b16 %v221
        %v268 = vunpack.c.l.b16 %v222
        %v269 = vunpack.c.h.b16 %v222
        %v270 = vunpack.c.l.b16 %v223
        %v271 = vunpack.c.h.b16 %v223
        %v272 = vunpack.c.l.b16 %v224
        %v273 = vunpack.c.h.b16 %v224
        %v274 = vpack.c.b16 %v268, %v266
        %v275 = vpack.c.b16 %v269, %v267
        %v276 = vpack.c.b16 %v272, %v270
        %v277 = vpack.c.b16 %v273, %v271
        %v314 = vunpack.c.l.b16 %v225
        %v315 = vunpack.c.l.b16 %v226
        %v316 = vunpack.c.l.b16 %v227
        %v317 = vunpack.c.l.b16 %v228
        %v318 = vunpack.c.l.b16 %v229
        %v319 = vunpack.c.l.b16 %v230
        %v320 = vunpack.c.l.b16 %v231
        %v321 = vunpack.c.l.b16 %v232
        %v322 = vunpack.c.l.b16 %v233
        %v323 = vunpack.c.l.b16 %v234
        %v324 = vunpack.c.l.b16 %v235
        %v325 = vunpack.c.l.b16 %v236
        %v326 = vunpack.c.l.b16 %v237
        %v327 = vunpack.c.l.b16 %v238
        %v328 = vunpack.c.l.b16 %v239
        %v329 = vunpack.c.l.b16 %v240
        %v330 = vunpack.c.l.b16 %v241
        %v331 = vunpack.c.l.b16 %v242
        %v332 = vunpack.c.l.b16 %v243
        %v333 = vunpack.c.l.b16 %v244
        %v334 = vunpack.c.l.b16 %v245
        %v335 = vunpack.c.l.b16 %v246
        %v336 = vunpack.c.l.b16 %v247
        %v337 = vunpack.c.l.b16 %v248
        %v338 = vunpack.c.l.b16 %v249
        %v339 = vunpack.c.l.b16 %v250
        %v340 = vunpack.c.l.b16 %v251
        %v341 = vunpack.c.l.b16 %v252
        %v342 = vunpack.c.l.b16 %v253
        %v343 = vunpack.c.l.b16 %v254
        %v344 = vunpack.c.l.b16 %v255
        %v345 = vunpack.c.l.b16 %v256
        %v346 = vpack.c.b16 %v315, %v314
        %v347 = vpack.c.b16 %v317, %v316
        %v348 = vpack.c.b16 %v319, %v318
        %v349 = vpack.c.b16 %v321, %v320
        %v350 = vpack.c.b16 %v323, %v322
        %v351 = vpack.c.b16 %v325, %v324
        %v352 = vpack.c.b16 %v327, %v326
        %v353 = vpack.c.b16 %v329, %v328
        %v354 = vpack.c.b16 %v331, %v330
        %v355 = vpack.c.b16 %v333, %v332
        %v356 = vpack.c.b16 %v335, %v334
        %v357 = vpack.c.b16 %v337, %v336
        %v358 = vpack.c.b16 %v339, %v338
        %v359 = vpack.c.b16 %v341, %v340
        %v360 = vpack.c.b16 %v343, %v342
        %v361 = vpack.c.b16 %v345, %v344
        %378 = vmatprep.subr.bf16.mxu0 0
        %379 = vmatpush1.bf16.msra.mxu0 %v346
        %380 = vmatprep.subr.bf16.mxu0 0
        %381 = vmatpush1.bf16.msra.mxu0 %v347
        %382 = vmatprep.subr.bf16.mxu0 0
        %383 = vmatpush1.bf16.msra.mxu0 %v348
        %384 = vmatprep.subr.bf16.mxu0 0
        %385 = vmatpush1.bf16.msra.mxu0 %v349
        %386 = vmatprep.subr.bf16.mxu0 0
        %387 = vmatpush1.bf16.msra.mxu0 %v350
        %388 = vmatprep.subr.bf16.mxu0 0
        %389 = vmatpush1.bf16.msra.mxu0 %v351
        %390 = vmatprep.subr.bf16.mxu0 0
        %391 = vmatpush1.bf16.msra.mxu0 %v352
        %392 = vmatprep.subr.bf16.mxu0 0
        %393 = vmatpush1.bf16.msra.mxu0 %v353
        %394 = vmatprep.subr.bf16.mxu0 0
        %395 = vmatpush1.bf16.msra.mxu0 %v354
        %396 = vmatprep.subr.bf16.mxu0 0
        %397 = vmatpush1.bf16.msra.mxu0 %v355
        %398 = vmatprep.subr.bf16.mxu0 0
        %399 = vmatpush1.bf16.msra.mxu0 %v356
        %400 = vmatprep.subr.bf16.mxu0 0
        %401 = vmatpush1.bf16.msra.mxu0 %v357
        %402 = vmatprep.subr.bf16.mxu0 0
        %403 = vmatpush1.bf16.msra.mxu0 %v358
        %404 = vmatprep.subr.bf16.mxu0 0
        %405 = vmatpush1.bf16.msra.mxu0 %v359
        %406 = vmatprep.subr.bf16.mxu0 0
        %407 = vmatpush1.bf16.msra.mxu0 %v360
        %408 = vmatprep.subr.bf16.mxu0 0
        %409 = vmatpush1.bf16.msra.mxu0 %v361
        %410 = vmatprep.mubr.bf16.mxu0 %v275
        %411 = vmatmul.mubr.bf16.gmra.mrb[0].mxu0 %v274
        %v412 = vpop.f32.mrb[0].mxu0
        %v413 = vadd.f32 %v261, %v412
        %v414 = vpop.f32.mrb[0].mxu0
        %v415 = vpop.f32.mrb[0].mxu0
        %v416 = vadd.f32 %v261, %v415
        %v417 = vpop.f32.mrb[0].mxu0
        %418 = vmatprep.mubr.bf16.mxu0 %v277
        %419 = vmatmul.mubr.bf16.gmra.mrb[0].mxu0 %v276
        %v420 = vpop.f32.mrb[0].mxu0
        %v421 = vadd.f32 %v261, %v420
        %v422 = vpop.f32.mrb[0].mxu0
        %v423 = vpop.f32.mrb[0].mxu0
        %v424 = vadd.f32 %v261, %v423
        %v425 = vpop.f32.mrb[0].mxu0
        %426 = vdwg.mxu0
        %v427 = vmax.f32 %v413, 0.0
        %v428 = vmax.f32 %v416, 0.0
        %v429 = vmax.f32 %v421, 0.0
        %v430 = vmax.f32 %v424, 0.0
        %s431 = scalar_lea.vmem [#allocation2], %s209
        %432 = vst [vmem:[%s431] sm:$0xff] %v427
        %433 = vst [vmem:[%s431 + $0x8] sm:$0xff] %v428
        %434 = vst [vmem:[%s431 + $0x10] sm:$0xff] %v429
        %435 = vst [vmem:[%s431 + $0x18] sm:$0xff] %v430
        %v436 = vlaneseq
        %v437 = vshrl.u32 %v436, 7
        %v438 = vadd.s32 %v437, 8
        %v439 = vadd.s32 %v437, 16
        %v440 = vadd.s32 %v437, 24
        %v441 = vstv %s209
        %v442 = vadd.s32 %v441, %v437
        %v443 = vadd.s32 %v441, %v438
        %v444 = vadd.s32 %v441, %v439
        %v445 = vadd.s32 %v441, %v440
        %vm446 = vcmp.lt.s32.totalorder %v442, 32
        %vm447 = vcmp.lt.s32.totalorder %v443, 32
        %vm448 = vcmp.lt.s32.totalorder %v444, 32
        %vm449 = vcmp.lt.s32.totalorder %v445, 32
        %v450 = vsel %vm446, 1, 0
        %v451 = vsel %vm447, 1, 0
        %v452 = vsel %vm448, 1, 0
        %v453 = vsel %vm449, 1, 0
        %vm454 = vcmp.eq.s32.totalorder %v450, 1
        %vm455 = vcmp.eq.s32.totalorder %v451, 1
        %vm456 = vcmp.eq.s32.totalorder %v452, 1
        %vm457 = vcmp.eq.s32.totalorder %v453, 1
        %v458 = vsel %vm454, %v427, 0.0
        %v459 = vsel %vm455, %v428, 0.0
        %v460 = vsel %vm456, %v429, 0.0
        %v461 = vsel %vm457, %v430, 0.0
        %v462 = vld [vmem:[#allocation3] sm:$0x1]
        %v463 = vadd.f32 %v458, %v459
        %v464 = vadd.f32 %v463, %v460
        %v465 = vadd.f32 %v464, %v461
        %v466 = vrot.slane %v465, 4
        %v467 = vadd.f32 %v465, %v466
        %v468 = vrot.slane %v467, 2
        %v469 = vadd.f32 %v467, %v468
        %v470 = vrot.slane %v469, 1
        %v471 = vadd.f32 %v469, %v470
        %v472 = vadd.f32 %v462, %v471
        %473 = vst [vmem:[#allocation3] sm:$0x1] %v472
        %v474 = vld [vmem:[#allocation4] sm:$0x1]
        %v475 = vmul.f32 %v458, %v458
        %v476 = vmul.f32 %v459, %v459
        %v477 = vmul.f32 %v460, %v460
        %v478 = vmul.f32 %v461, %v461
        %v479 = vadd.f32 %v475, %v476
        %v480 = vadd.f32 %v479, %v477
        %v481 = vadd.f32 %v480, %v478
        %v482 = vrot.slane %v481, 4
        %v483 = vadd.f32 %v481, %v482
        %v484 = vrot.slane %v483, 2
        %v485 = vadd.f32 %v483, %v484
        %v486 = vrot.slane %v485, 1
        %v487 = vadd.f32 %v485, %v486
        %v488 = vadd.f32 %v474, %v487
        %489 = vst [vmem:[#allocation4] sm:$0x1] %v488
      $region40: #{feature_extraction_forward.6} parent=31 // pred_fallthru
        _
      %p490 = scmp.eq.s32.totalorder %s18, 1
      // Predicated region
      $region41: #{feature_extraction_forward.6} parent=31 // pred_check
        %p491 = pneg %p490
      $region42: #{feature_extraction_forward.6} parent=31 // pred_check_branch
        %493 = sbr.rel (%p491) target = $region44
      $region43: #{feature_extraction_forward.6} parent=31 // pred_region
        %v494 = vld [vmem:[#allocation3] sm:$0x1]
        %v495 = vmul.f32 %v494, 0.03125
        %v496 = vld [vmem:[#allocation4] sm:$0x1]
        %v497 = vmul.f32 %v496, 0.03125
        %v498 = vmul.f32 %v495, %v495
        %v499 = vsub.f32 %v497, %v498
        %v500 = vadd.f32 %v499, 1e-05
        %v501 = vrsqrt.pop %v500
        %v502 = vld [vmem:[%s2 + $0x1] sm:$0x1]
        %v503 = vmul.f32 %v501, %v502
        %v504 = vld [vmem:[%s2 + $0x2] sm:$0x1]
        %v505 = vmul.f32 %v495, %v503
        %v506 = vsub.f32 %v504, %v505
        %s507 = scalar_lea.vmem [#allocation2], %s209
        %v508 = vld [vmem:[%s507] sm:$0xff]
        %v509 = vld [vmem:[%s507 + $0x8] sm:$0xff]
        %v510 = vld [vmem:[%s507 + $0x10] sm:$0xff]
        %v511 = vld [vmem:[%s507 + $0x18] sm:$0xff]
        %v513 = vlaneseq
        %v514 = vshrl.u32 %v513, 7
        %v515 = vsub.s32 0, %v514
        %v516 = vrot.slane %v503, %v515
        %v518 = vmul.f32 %v508, %v516
        %v519 = vmul.f32 %v509, %v516
        %v520 = vmul.f32 %v510, %v516
        %v521 = vmul.f32 %v511, %v516
        %v522 = vlaneseq
        %v523 = vshrl.u32 %v522, 7
        %v524 = vsub.s32 0, %v523
        %v525 = vrot.slane %v506, %v524
        %v526 = vadd.f32 %v518, %v525
        %v527 = vadd.f32 %v519, %v525
        %v528 = vadd.f32 %v520, %v525
        %v529 = vadd.f32 %v521, %v525
        %v530 = vpack.c.bf16 %v527, %v526
        %v531 = vpack.c.bf16 %v529, %v528
        %v534 = vunpack.c.l.b16 %v530
        %v535 = vunpack.c.h.b16 %v530
        %v536 = vunpack.c.l.b16 %v531
        %v537 = vunpack.c.h.b16 %v531
        %v538 = vpack.c.b16 %v534, %v534
        %v539 = vpack.c.b16 %v535, %v535
        %v540 = vpack.c.b16 %v536, %v536
        %v541 = vpack.c.b16 %v537, %v537
        %546 = vst [vmem:[%s205] sm:$0xf] %v538
        %547 = vst [vmem:[%s205 + $0x4] sm:$0xf] %v539
        %548 = vst [vmem:[%s205 + $0x8] sm:$0xf] %v540
        %549 = vst [vmem:[%s205 + $0xc] sm:$0xf] %v541
      $region44: #{feature_extraction_forward.6} parent=31 // pred_fallthru
        _
      %s550 = smul.u32 %s18, %s19
      %s551 = smul.u32 4, %s550
      %p552 = scmp.lt.s32.totalorder %s551, 3
      %s553 = scalar_select %p552, %s551, 3
      %s554 = smul.addr %s553, 4
      %s555 = scalar_lea.vmem %s3, %s554
      // Predicated region
      $region45: #{feature_extraction_forward.6} parent=31 // pred_check
        %p556 = pneg %p118
      $region46: #{feature_extraction_forward.6} parent=31 // pred_check_branch
        %558 = sbr.rel (%p556) target = $region48
      $region47: #{feature_extraction_forward.6} parent=31 // pred_region
        %s559 = smul.u32 %s18, %s19
        %s560 = smul.u32 4, %s559
      $region48: #{feature_extraction_forward.6} parent=31 // pred_fallthru
        _
    $region32: #{feature_extraction_forward.6} parent=5 // pred_fallthru
      _
    %p561 = scmp.le.s32.totalorder 2, %s9
    // Predicated region
    $region49: #{feature_extraction_forward.6} parent=5 // pred_check
      %p562 = pneg %p561
    $region50: #{feature_extraction_forward.6} parent=5 // pred_check_branch
      %564 = sbr.rel (%p562) target = $region52
    $region51: #{feature_extraction_forward.6} parent=5 // pred_region
      %s565 = ssub.s32 %s9, 2
      // Predicated region
      $region53: #{feature_extraction_forward.6} parent=51 // pred_check
        %p566 = pneg %p124
      $region54: #{feature_extraction_forward.6} parent=51 // pred_check_branch
        %568 = sbr.rel (%p566) target = $region56
      $region55: #{feature_extraction_forward.6} parent=51 // pred_region
        %s569 = smul.u32 %s20, %s21
        %s570 = smul.u32 4, %s569
        %p571 = scmp.lt.s32.totalorder %s570, 3
        %s572 = scalar_select %p571, %s570, 3
        %s573 = smul.addr %s572, 4
        %s574 = scalar_lea.vmem %s3, %s573
      $region56: #{feature_extraction_forward.6} parent=51 // pred_fallthru
        _
    $region52: #{feature_extraction_forward.6} parent=5 // pred_fallthru
      _
  $region6: #{feature_extraction_forward.6} parent=0 // loop_footer
    %s13 = sadd.s32 1, %s9
  $region7: #{feature_extraction_forward.6} parent=0 // loop_footer_branch
    %8 = sbr.rel target = $region3
  $region8: #{feature_extraction_forward.6} parent=0 // loop_exit
    _

// kernel: feature_extraction_forward.7
$region0: #{feature_extraction_forward.7}
  #allocation0 [shape = 'u32[]', space=smem, size = 0x4, offset = 0x4, fixed_abs, tag = 'smem constant byte address 0x4 - core index']
  #allocation1 [shape = 'u32[144,128]{1,0:T(1,128)}', space=vmem, size = 0x12000, scoped, tag = 'internal scratch']
  #allocation2 [shape = 'f32[16,128]{1,0:T(8,128)}', space=vmem, size = 0x2000, scoped, tag = 'scratch operand']
  #allocation3 [shape = 'f32[1,128]{1,0:T(1,128)}', space=vmem, size = 0x200, scoped, tag = 'scratch operand']
  #allocation4 [shape = 'f32[1,128]{1,0:T(1,128)}', space=vmem, size = 0x200, scoped, tag = 'scratch operand']
  %s0 = inlined_call_operand.vmem [shape: bf16[16,512], index: 0, kind: input, shape index: {}]
  %s1 = inlined_call_operand.vmem [shape: bf16[512,128], index: 1, kind: input, shape index: {}]
  %s2 = inlined_call_operand.vmem [shape: f32[8,128], index: 2, kind: input, shape index: {}]
  %s3 = inlined_call_operand.vmem [shape: bf16[16,128], index: 3, kind: output, shape index: {}]
  %s4 = sld [smem:[#allocation0]]
  $region57: #{feature_extraction_forward.7} parent=0
    _
  %s6 = ssub.s32 1, %s4
  %s7 = scalar_select 0, %s6, %s4
  loop: start=0, step=1, limit=4
  $region2: #{feature_extraction_forward.7} parent=0 // loop_pre_header
    _
  $region3: #{feature_extraction_forward.7} parent=0 // loop_header
    %s9 = sphi 0, %s13
    %p10 = scmp.ge.s32.totalorder %s9, 4
    %s16 = sphi 0, %s28
    %s17 = sphi 0, %s24
    %s18 = sphi 0, %s16
    %s19 = sphi 0, %s17
    %s20 = sphi 0, %s18
    %s21 = sphi 0, %s19
    %s35 = sphi 0, %s37
    %s38 = sphi 0, %s35
    %s39 = sphi 0, %s38
    %s55 = sphi 0, %s39
    %s59 = sphi 0, %s59
    %s61 = sphi 0, %s59
    %s62 = sphi 0, %s61
    %s76 = sphi 0, %s62
    %s80 = sphi 0, %s80
    %s82 = sphi 0, %s80
    %s83 = sphi 0, %s82
    %s97 = sphi 0, %s83
    %s105 = sphi 0, %s107
    %s108 = sphi 0, %s105
    %s109 = sphi 0, %s108
    %s125 = sphi 0, %s109
  $region4: #{feature_extraction_forward.7} parent=0 // loop_header_branch
    %12 = sbr.rel (%p10) target = $region8
  $region5: #{feature_extraction_forward.7} parent=0 // loop_body
    %s14 = ssub.s32 %s9, 1
    %s15 = ssub.s32 %s9, 2
    %s22 = sadd.s32 1, %s17
    %p23 = scmp.ge.s32.totalorder %s22, 1
    %s24 = scalar_select %p23, 0, %s22
    %s25 = sadd.s32 1, %s16
    %s26 = scalar_select %p23, %s25, %s16
    %p27 = scmp.ge.s32.totalorder %s26, 2
    %s28 = scalar_select %p27, 0, %s26
    %s29 = ssub.s32 1, %s16
    %s30 = smul.u32 %s29, %s17
    %s31 = ssub.s32 1, %s28
    %s32 = smul.u32 %s31, %s24
    %s33 = ssub.s32 %s30, %s32
    %p34 = scmp.eq.s32.totalorder %s33, 0
    %s36 = sadd.s32 %s35, 1
    %s37 = scalar_select %p34, %s35, %s36
    %p40 = pneg %p34
    %p41 = scmp.eq.s32.totalorder %s9, 1
    %p42 = por %p40, %p41
    %p43 = scmp.ne.s32.totalorder %s35, %s38
    %p44 = scmp.eq.s32.totalorder %s9, 0
    %p45 = por %p43, %p44
    %p46 = scmp.ne.s32.totalorder %s35, %s38
    %p47 = scmp.eq.s32.totalorder %s14, 1
    %p48 = por %p46, %p47
    %p49 = scmp.ne.s32.totalorder %s38, %s39
    %p50 = scmp.eq.s32.totalorder %s14, 0
    %p51 = por %p49, %p50
    %p52 = scmp.ne.s32.totalorder %s38, %s39
    %p53 = scmp.eq.s32.totalorder %s15, 1
    %p54 = por %p52, %p53
    %p56 = scmp.ne.s32.totalorder %s39, %s55
    %p57 = scmp.eq.s32.totalorder %s15, 0
    %p58 = por %p56, %p57
    %s60 = sadd.s32 %s59, 1
    %p63 = scmp.eq.s32.totalorder %s9, 1
    %p64 = scmp.ne.s32.totalorder %s59, %s61
    %p65 = scmp.eq.s32.totalorder %s9, 0
    %p66 = por %p64, %p65
    %p67 = scmp.ne.s32.totalorder %s59, %s61
    %p68 = scmp.eq.s32.totalorder %s14, 1
    %p69 = por %p67, %p68
    %p70 = scmp.ne.s32.totalorder %s61, %s62
    %p71 = scmp.eq.s32.totalorder %s14, 0
    %p72 = por %p70, %p71
    %p73 = scmp.ne.s32.totalorder %s61, %s62
    %p74 = scmp.eq.s32.totalorder %s15, 1
    %p75 = por %p73, %p74
    %p77 = scmp.ne.s32.totalorder %s62, %s76
    %p78 = scmp.eq.s32.totalorder %s15, 0
    %p79 = por %p77, %p78
    %s81 = sadd.s32 %s80, 1
    %p84 = scmp.eq.s32.totalorder %s9, 1
    %p85 = scmp.ne.s32.totalorder %s80, %s82
    %p86 = scmp.eq.s32.totalorder %s9, 0
    %p87 = por %p85, %p86
    %p88 = scmp.ne.s32.totalorder %s80, %s82
    %p89 = scmp.eq.s32.totalorder %s14, 1
    %p90 = por %p88, %p89
    %p91 = scmp.ne.s32.totalorder %s82, %s83
    %p92 = scmp.eq.s32.totalorder %s14, 0
    %p93 = por %p91, %p92
    %p94 = scmp.ne.s32.totalorder %s82, %s83
    %p95 = scmp.eq.s32.totalorder %s15, 1
    %p96 = por %p94, %p95
    %p98 = scmp.ne.s32.totalorder %s83, %s97
    %p99 = scmp.eq.s32.totalorder %s15, 0
    %p100 = por %p98, %p99
    %s101 = smul.u32 %s16, %s17
    %s102 = smul.u32 %s28, %s24
    %s103 = ssub.s32 %s101, %s102
    %p104 = scmp.eq.s32.totalorder %s103, 0
    %s106 = sadd.s32 %s105, 1
    %s107 = scalar_select %p104, %s105, %s106
    %p110 = pneg %p104
    %p111 = scmp.eq.s32.totalorder %s9, 1
    %p112 = por %p110, %p111
    %p113 = scmp.ne.s32.totalorder %s105, %s108
    %p114 = scmp.eq.s32.totalorder %s9, 0
    %p115 = por %p113, %p114
    %p116 = scmp.ne.s32.totalorder %s105, %s108
    %p117 = scmp.eq.s32.totalorder %s14, 1
    %p118 = por %p116, %p117
    %p119 = scmp.ne.s32.totalorder %s108, %s109
    %p120 = scmp.eq.s32.totalorder %s14, 0
    %p121 = por %p119, %p120
    %p122 = scmp.ne.s32.totalorder %s108, %s109
    %p123 = scmp.eq.s32.totalorder %s15, 1
    %p124 = por %p122, %p123
    %p126 = scmp.ne.s32.totalorder %s109, %s125
    %p127 = scmp.eq.s32.totalorder %s15, 0
    %p128 = por %p126, %p127
    %p129 = scmp.le.s32.totalorder 1, %s9
    %p130 = scmp.lt.s32.totalorder %s9, 3
    %p131 = pnand %p129, %p130
    %p132 = pneg %p131
    // Predicated region
    $region9: #{feature_extraction_forward.7} parent=5 // pred_check
      _
    $region10: #{feature_extraction_forward.7} parent=5 // pred_check_branch
      %134 = sbr.rel (%p131) target = $region12
    $region11: #{feature_extraction_forward.7} parent=5 // pred_region
      %s135 = ssub.s32 %s9, 1
      // Predicated region
      $region13: #{feature_extraction_forward.7} parent=11 // pred_check
        %p136 = pneg %p72
      $region14: #{feature_extraction_forward.7} parent=11 // pred_check_branch
        %138 = sbr.rel (%p136) target = $region16
      $region15: #{feature_extraction_forward.7} parent=11 // pred_region
        _
      $region16: #{feature_extraction_forward.7} parent=11 // pred_fallthru
        _
      // Predicated region
      $region17: #{feature_extraction_forward.7} parent=11 // pred_check
        %p139 = pneg %p93
      $region18: #{feature_extraction_forward.7} parent=11 // pred_check_branch
        %141 = sbr.rel (%p139) target = $region20
      $region19: #{feature_extraction_forward.7} parent=11 // pred_region
        _
      $region20: #{feature_extraction_forward.7} parent=11 // pred_fallthru
        _
    $region12: #{feature_extraction_forward.7} parent=5 // pred_fallthru
      _
    %p142 = scmp.lt.s32.totalorder %s9, 2
    // Predicated region
    $region21: #{feature_extraction_forward.7} parent=5 // pred_check
      %p143 = pneg %p142
    $region22: #{feature_extraction_forward.7} parent=5 // pred_check_branch
      %145 = sbr.rel (%p143) target = $region24
    $region23: #{feature_extraction_forward.7} parent=5 // pred_region
      // Predicated region
      $region25: #{feature_extraction_forward.7} parent=23 // pred_check
        %p146 = pneg %p45
      $region26: #{feature_extraction_forward.7} parent=23 // pred_check_branch
        %148 = sbr.rel (%p146) target = $region28
      $region27: #{feature_extraction_forward.7} parent=23 // pred_region
        %s149 = ssub.s32 1, %s16
        %s150 = smul.u32 %s149, %s17
        %s151 = smul.u32 2, %s150
        %p152 = scmp.lt.s32.totalorder %s151, 1
        %s153 = scalar_select %p152, %s151, 1
        %s154 = smul.addr %s153, 4
        %s155 = smul.addr %s154, 4
        %s156 = scalar_lea.vmem %s0, %s155
        %s157 = ssub.s32 1, %s16
        %s158 = smul.u32 %s157, %s17
        %s159 = smul.u32 2, %s158
      $region28: #{feature_extraction_forward.7} parent=23 // pred_fallthru
        _
    $region24: #{feature_extraction_forward.7} parent=5 // pred_fallthru
      _
    %p160 = scmp.le.s32.totalorder 1, %s9
    %p161 = scmp.lt.s32.totalorder %s9, 3
    %p162 = pnand %p160, %p161
    %p163 = pneg %p162
    // Predicated region
    $region29: #{feature_extraction_forward.7} parent=5 // pred_check
      _
    $region30: #{feature_extraction_forward.7} parent=5 // pred_check_branch
      %165 = sbr.rel (%p162) target = $region32
    $region31: #{feature_extraction_forward.7} parent=5 // pred_region
      %s166 = ssub.s32 %s9, 1
      %s167 = ssub.s32 1, %s18
      %s168 = smul.u32 %s167, %s19
      %s169 = smul.u32 2, %s168
      %p170 = scmp.lt.s32.totalorder %s169, 1
      %s171 = scalar_select %p170, %s169, 1
      %s172 = smul.addr %s171, 4
      %s173 = smul.addr %s172, 4
      %s174 = scalar_lea.vmem %s0, %s173
      %p175 = pneg %p51
      %p176 = pneg %p48
      %p177 = pneg %p72
      %p178 = pneg %p69
      %p179 = pneg %p93
      %p180 = pneg %p90
      %p181 = pneg %p121
      %p182 = pneg %p118
      %s183 = smul.u32 %s18, %s19
      %s184 = smul.u32 2, %s183
      %p185 = scmp.lt.s32.totalorder %s184, 1
      %s186 = scalar_select %p185, %s184, 1
      %s187 = smul.addr %s186, 4
      %s188 = scalar_lea.vmem %s3, %s187
      %s189 = ssub.s32 1, %s18
      %s190 = smul.u32 %s189, %s19
      %s191 = smul.u32 2, %s190
      %p192 = scmp.lt.s32.totalorder %s191, 1
      %s193 = scalar_select %p192, %s191, 1
      %s194 = smul.addr %s193, 4
      %s195 = smul.addr %s194, 4
      %s196 = scalar_lea.vmem %s0, %s195
      %s197 = ssub.s32 1, %s18
      %s198 = smul.u32 %s197, %s19
      %s199 = smul.u32 2, %s198
      %s200 = smul.u32 %s18, %s19
      %s201 = smul.u32 2, %s200
      %p202 = scmp.lt.s32.totalorder %s201, 1
      %s203 = scalar_select %p202, %s201, 1
      %s204 = smul.addr %s203, 4
      %s205 = scalar_lea.vmem %s3, %s204
      %s206 = smul.u32 %s18, %s19
      %s207 = smul.u32 2, %s206
      %s209 = smul.u32 %s19, 16
      %p210 = scmp.eq.s32.totalorder %s18, 0
      %p211 = scmp.eq.s32.totalorder %s19, 0
      %p212 = pnand %p210, %p211
      %p213 = pneg %p212
      // Predicated region
      $region33: #{feature_extraction_forward.7} parent=31 // pred_check
        _
      $region34: #{feature_extraction_forward.7} parent=31 // pred_check_branch
        %215 = sbr.rel (%p212) target = $region36
      $region35: #{feature_extraction_forward.7} parent=31 // pred_region
        %216 = vst [vmem:[#allocation3] sm:$0x1] 0.0
        %217 = vst [vmem:[#allocation4] sm:$0x1] 0.0
      $region36: #{feature_extraction_forward.7} parent=31 // pred_fallthru
        _
      // Predicated region
      $region37: #{feature_extraction_forward.7} parent=31 // pred_check
        %p218 = pneg %p210
      $region38: #{feature_extraction_forward.7} parent=31 // pred_check_branch
        %220 = sbr.rel (%p218) target = $region40
      $region39: #{feature_extraction_forward.7} parent=31 // pred_region
        %v221 = vld [vmem:[%s196] sm:$0xff]
        %v222 = vld [vmem:[%s196 + $0x8] sm:$0xff]
        %v223 = vld [vmem:[%s196 + $0x10] sm:$0xff]
        %v224 = vld [vmem:[%s196 + $0x18] sm:$0xff]
        %v225 = vld [vmem:[%s1] sm:$0xf]
        %v226 = vld [vmem:[%s1 + $0x4] sm:$0xf]
        %v227 = vld [vmem:[%s1 + $0x8] sm:$0xf]
        %v228 = vld [vmem:[%s1 + $0xc] sm:$0xf]
        %v229 = vld [vmem:[%s1 + $0x10] sm:$0xf]
        %v230 = vld [vmem:[%s1 + $0x14] sm:$0xf]
        %v231 = vld [vmem:[%s1 + $0x18] sm:$0xf]
        %v232 = vld [vmem:[%s1 + $0x1c] sm:$0xf]
        %v233 = vld [vmem:[%s1 + $0x20] sm:$0xf]
        %v234 = vld [vmem:[%s1 + $0x24] sm:$0xf]
        %v235 = vld [vmem:[%s1 + $0x28] sm:$0xf]
        %v236 = vld [vmem:[%s1 + $0x2c] sm:$0xf]
        %v237 = vld [vmem:[%s1 + $0x30] sm:$0xf]
        %v238 = vld [vmem:[%s1 + $0x34] sm:$0xf]
        %v239 = vld [vmem:[%s1 + $0x38] sm:$0xf]
        %v240 = vld [vmem:[%s1 + $0x3c] sm:$0xf]
        %v241 = vld [vmem:[%s1 + $0x40] sm:$0xf]
        %v242 = vld [vmem:[%s1 + $0x44] sm:$0xf]
        %v243 = vld [vmem:[%s1 + $0x48] sm:$0xf]
        %v244 = vld [vmem:[%s1 + $0x4c] sm:$0xf]
        %v245 = vld [vmem:[%s1 + $0x50] sm:$0xf]
        %v246 = vld [vmem:[%s1 + $0x54] sm:$0xf]
        %v247 = vld [vmem:[%s1 + $0x58] sm:$0xf]
        %v248 = vld [vmem:[%s1 + $0x5c] sm:$0xf]
        %v249 = vld [vmem:[%s1 + $0x60] sm:$0xf]
        %v250 = vld [vmem:[%s1 + $0x64] sm:$0xf]
        %v251 = vld [vmem:[%s1 + $0x68] sm:$0xf]
        %v252 = vld [vmem:[%s1 + $0x6c] sm:$0xf]
        %v253 = vld [vmem:[%s1 + $0x70] sm:$0xf]
        %v254 = vld [vmem:[%s1 + $0x74] sm:$0xf]
        %v255 = vld [vmem:[%s1 + $0x78] sm:$0xf]
        %v256 = vld [vmem:[%s1 + $0x7c] sm:$0xf]
        %v257 = vld [vmem:[%s1 + $0x80] sm:$0xf]
        %v258 = vld [vmem:[%s1 + $0x84] sm:$0xf]
        %v259 = vld [vmem:[%s1 + $0x88] sm:$0xf]
        %v260 = vld [vmem:[%s1 + $0x8c] sm:$0xf]
        %v261 = vld [vmem:[%s1 + $0x90] sm:$0xf]
        %v262 = vld [vmem:[%s1 + $0x94] sm:$0xf]
        %v263 = vld [vmem:[%s1 + $0x98] sm:$0xf]
        %v264 = vld [vmem:[%s1 + $0x9c] sm:$0xf]
        %v265 = vld [vmem:[%s1 + $0xa0] sm:$0xf]
        %v266 = vld [vmem:[%s1 + $0xa4] sm:$0xf]
        %v267 = vld [vmem:[%s1 + $0xa8] sm:$0xf]
        %v268 = vld [vmem:[%s1 + $0xac] sm:$0xf]
        %v269 = vld [vmem:[%s1 + $0xb0] sm:$0xf]
        %v270 = vld [vmem:[%s1 + $0xb4] sm:$0xf]
        %v271 = vld [vmem:[%s1 + $0xb8] sm:$0xf]
        %v272 = vld [vmem:[%s1 + $0xbc] sm:$0xf]
        %v273 = vld [vmem:[%s1 + $0xc0] sm:$0xf]
        %v274 = vld [vmem:[%s1 + $0xc4] sm:$0xf]
        %v275 = vld [vmem:[%s1 + $0xc8] sm:$0xf]
        %v276 = vld [vmem:[%s1 + $0xcc] sm:$0xf]
        %v277 = vld [vmem:[%s1 + $0xd0] sm:$0xf]
        %v278 = vld [vmem:[%s1 + $0xd4] sm:$0xf]
        %v279 = vld [vmem:[%s1 + $0xd8] sm:$0xf]
        %v280 = vld [vmem:[%s1 + $0xdc] sm:$0xf]
        %v281 = vld [vmem:[%s1 + $0xe0] sm:$0xf]
        %v282 = vld [vmem:[%s1 + $0xe4] sm:$0xf]
        %v283 = vld [vmem:[%s1 + $0xe8] sm:$0xf]
        %v284 = vld [vmem:[%s1 + $0xec] sm:$0xf]
        %v285 = vld [vmem:[%s1 + $0xf0] sm:$0xf]
        %v286 = vld [vmem:[%s1 + $0xf4] sm:$0xf]
        %v287 = vld [vmem:[%s1 + $0xf8] sm:$0xf]
        %v288 = vld [vmem:[%s1 + $0xfc] sm:$0xf]
        %v289 = vld [vmem:[%s2] sm:$0x1]
        %v290 = vlaneseq
        %v291 = vshrl.u32 %v290, 7
        %v292 = vsub.s32 0, %v291
        %v293 = vrot.slane %v289, %v292
        %v298 = vunpack.c.l.b16 %v221
        %v299 = vunpack.c.h.b16 %v221
        %v300 = vunpack.c.l.b16 %v222
        %v301 = vunpack.c.h.b16 %v222
        %v302 = vunpack.c.l.b16 %v223
        %v303 = vunpack.c.h.b16 %v223
        %v304 = vunpack.c.l.b16 %v224
        %v305 = vunpack.c.h.b16 %v224
        %v306 = vpack.c.b16 %v302, %v298
        %v307 = vpack.c.b16 %v303, %v299
        %v308 = vpack.c.b16 %v304, %v300
        %v309 = vpack.c.b16 %v305, %v301
        %v378 = vunpack.c.l.b16 %v225
        %v379 = vunpack.c.l.b16 %v226
        %v380 = vunpack.c.l.b16 %v227
        %v381 = vunpack.c.l.b16 %v228
        %v382 = vunpack.c.l.b16 %v229
        %v383 = vunpack.c.l.b16 %v230
        %v384 = vunpack.c.l.b16 %v231
        %v385 = vunpack.c.l.b16 %v232
        %v386 = vunpack.c.l.b16 %v233
        %v387 = vunpack.c.l.b16 %v234
        %v388 = vunpack.c.l.b16 %v235
        %v389 = vunpack.c.l.b16 %v236
        %v390 = vunpack.c.l.b16 %v237
        %v391 = vunpack.c.l.b16 %v238
        %v392 = vunpack.c.l.b16 %v239
        %v393 = vunpack.c.l.b16 %v240
        %v394 = vunpack.c.l.b16 %v241
        %v395 = vunpack.c.l.b16 %v242
        %v396 = vunpack.c.l.b16 %v243
        %v397 = vunpack.c.l.b16 %v244
        %v398 = vunpack.c.l.b16 %v245
        %v399 = vunpack.c.l.b16 %v246
        %v400 = vunpack.c.l.b16 %v247
        %v401 = vunpack.c.l.b16 %v248
        %v402 = vunpack.c.l.b16 %v249
        %v403 = vunpack.c.l.b16 %v250
        %v404 = vunpack.c.l.b16 %v251
        %v405 = vunpack.c.l.b16 %v252
        %v406 = vunpack.c.l.b16 %v253
        %v407 = vunpack.c.l.b16 %v254
        %v408 = vunpack.c.l.b16 %v255
        %v409 = vunpack.c.l.b16 %v256
        %v410 = vunpack.c.l.b16 %v257
        %v411 = vunpack.c.l.b16 %v258
        %v412 = vunpack.c.l.b16 %v259
        %v413 = vunpack.c.l.b16 %v260
        %v414 = vunpack.c.l.b16 %v261
        %v415 = vunpack.c.l.b16 %v262
        %v416 = vunpack.c.l.b16 %v263
        %v417 = vunpack.c.l.b16 %v264
        %v418 = vunpack.c.l.b16 %v265
        %v419 = vunpack.c.l.b16 %v266
        %v420 = vunpack.c.l.b16 %v267
        %v421 = vunpack.c.l.b16 %v268
        %v422 = vunpack.c.l.b16 %v269
        %v423 = vunpack.c.l.b16 %v270
        %v424 = vunpack.c.l.b16 %v271
        %v425 = vunpack.c.l.b16 %v272
        %v426 = vunpack.c.l.b16 %v273
        %v427 = vunpack.c.l.b16 %v274
        %v428 = vunpack.c.l.b16 %v275
        %v429 = vunpack.c.l.b16 %v276
        %v430 = vunpack.c.l.b16 %v277
        %v431 = vunpack.c.l.b16 %v278
        %v432 = vunpack.c.l.b16 %v279
        %v433 = vunpack.c.l.b16 %v280
        %v434 = vunpack.c.l.b16 %v281
        %v435 = vunpack.c.l.b16 %v282
        %v436 = vunpack.c.l.b16 %v283
        %v437 = vunpack.c.l.b16 %v284
        %v438 = vunpack.c.l.b16 %v285
        %v439 = vunpack.c.l.b16 %v286
        %v440 = vunpack.c.l.b16 %v287
        %v441 = vunpack.c.l.b16 %v288
        %v442 = vpack.c.b16 %v379, %v378
        %v443 = vpack.c.b16 %v381, %v380
        %v444 = vpack.c.b16 %v383, %v382
        %v445 = vpack.c.b16 %v385, %v384
        %v446 = vpack.c.b16 %v387, %v386
        %v447 = vpack.c.b16 %v389, %v388
        %v448 = vpack.c.b16 %v391, %v390
        %v449 = vpack.c.b16 %v393, %v392
        %v450 = vpack.c.b16 %v395, %v394
        %v451 = vpack.c.b16 %v397, %v396
        %v452 = vpack.c.b16 %v399, %v398
        %v453 = vpack.c.b16 %v401, %v400
        %v454 = vpack.c.b16 %v403, %v402
        %v455 = vpack.c.b16 %v405, %v404
        %v456 = vpack.c.b16 %v407, %v406
        %v457 = vpack.c.b16 %v409, %v408
        %v458 = vpack.c.b16 %v411, %v410
        %v459 = vpack.c.b16 %v413, %v412
        %v460 = vpack.c.b16 %v415, %v414
        %v461 = vpack.c.b16 %v417, %v416
        %v462 = vpack.c.b16 %v419, %v418
        %v463 = vpack.c.b16 %v421, %v420
        %v464 = vpack.c.b16 %v423, %v422
        %v465 = vpack.c.b16 %v425, %v424
        %v466 = vpack.c.b16 %v427, %v426
        %v467 = vpack.c.b16 %v429, %v428
        %v468 = vpack.c.b16 %v431, %v430
        %v469 = vpack.c.b16 %v433, %v432
        %v470 = vpack.c.b16 %v435, %v434
        %v471 = vpack.c.b16 %v437, %v436
        %v472 = vpack.c.b16 %v439, %v438
        %v473 = vpack.c.b16 %v441, %v440
        %506 = vmatprep.subr.bf16.mxu0 0
        %507 = vmatpush1.bf16.msra.mxu0 %v442
        %508 = vmatprep.subr.bf16.mxu0 0
        %509 = vmatpush1.bf16.msra.mxu0 %v443
        %510 = vmatprep.subr.bf16.mxu0 0
        %511 = vmatpush1.bf16.msra.mxu0 %v444
        %512 = vmatprep.subr.bf16.mxu0 0
        %513 = vmatpush1.bf16.msra.mxu0 %v445
        %514 = vmatprep.subr.bf16.mxu0 0
        %515 = vmatpush1.bf16.msra.mxu0 %v446
        %516 = vmatprep.subr.bf16.mxu0 0
        %517 = vmatpush1.bf16.msra.mxu0 %v447
        %518 = vmatprep.subr.bf16.mxu0 0
        %519 = vmatpush1.bf16.msra.mxu0 %v448
        %520 = vmatprep.subr.bf16.mxu0 0
        %521 = vmatpush1.bf16.msra.mxu0 %v449
        %522 = vmatprep.subr.bf16.mxu0 0
        %523 = vmatpush1.bf16.msra.mxu0 %v450
        %524 = vmatprep.subr.bf16.mxu0 0
        %525 = vmatpush1.bf16.msra.mxu0 %v451
        %526 = vmatprep.subr.bf16.mxu0 0
        %527 = vmatpush1.bf16.msra.mxu0 %v452
        %528 = vmatprep.subr.bf16.mxu0 0
        %529 = vmatpush1.bf16.msra.mxu0 %v453
        %530 = vmatprep.subr.bf16.mxu0 0
        %531 = vmatpush1.bf16.msra.mxu0 %v454
        %532 = vmatprep.subr.bf16.mxu0 0
        %533 = vmatpush1.bf16.msra.mxu0 %v455
        %534 = vmatprep.subr.bf16.mxu0 0
        %535 = vmatpush1.bf16.msra.mxu0 %v456
        %536 = vmatprep.subr.bf16.mxu0 0
        %537 = vmatpush1.bf16.msra.mxu0 %v457
        %538 = vmatprep.mubr.bf16.mxu0 %v307
        %539 = vmatmul.mubr.bf16.gmra.mrb[0].mxu0 %v306
        %v540 = vpop.f32.mrb[0].mxu0
        %v541 = vadd.f32 %v293, %v540
        %v542 = vpop.f32.mrb[0].mxu0
        %v543 = vpop.f32.mrb[0].mxu0
        %v544 = vadd.f32 %v293, %v543
        %v545 = vpop.f32.mrb[0].mxu0
        %546 = vdwg.mxu0
        %547 = vmatprep.subr.bf16.mxu0 0
        %548 = vmatpush1.bf16.msra.mxu0 %v458
        %549 = vmatprep.subr.bf16.mxu0 0
        %550 = vmatpush1.bf16.msra.mxu0 %v459
        %551 = vmatprep.subr.bf16.mxu0 0
        %552 = vmatpush1.bf16.msra.mxu0 %v460
        %553 = vmatprep.subr.bf16.mxu0 0
        %554 = vmatpush1.bf16.msra.mxu0 %v461
        %555 = vmatprep.subr.bf16.mxu0 0
        %556 = vmatpush1.bf16.msra.mxu0 %v462
        %557 = vmatprep.subr.bf16.mxu0 0
        %558 = vmatpush1.bf16.msra.mxu0 %v463
        %559 = vmatprep.subr.bf16.mxu0 0
        %560 = vmatpush1.bf16.msra.mxu0 %v464
        %561 = vmatprep.subr.bf16.mxu0 0
        %562 = vmatpush1.bf16.msra.mxu0 %v465
        %563 = vmatprep.subr.bf16.mxu0 0
        %564 = vmatpush1.bf16.msra.mxu0 %v466
        %565 = vmatprep.subr.bf16.mxu0 0
        %566 = vmatpush1.bf16.msra.mxu0 %v467
        %567 = vmatprep.subr.bf16.mxu0 0
        %568 = vmatpush1.bf16.msra.mxu0 %v468
        %569 = vmatprep.subr.bf16.mxu0 0
        %570 = vmatpush1.bf16.msra.mxu0 %v469
        %571 = vmatprep.subr.bf16.mxu0 0
        %572 = vmatpush1.bf16.msra.mxu0 %v470
        %573 = vmatprep.subr.bf16.mxu0 0
        %574 = vmatpush1.bf16.msra.mxu0 %v471
        %575 = vmatprep.subr.bf16.mxu0 0
        %576 = vmatpush1.bf16.msra.mxu0 %v472
        %577 = vmatprep.subr.bf16.mxu0 0
        %578 = vmatpush1.bf16.msra.mxu0 %v473
        %579 = vmatprep.mubr.bf16.mxu0 %v309
        %580 = vmatmul.mubr.bf16.gmra.mrb[0].mxu0 %v308
        %v581 = vpop.f32.mrb[0].mxu0
        %v582 = vadd.f32 %v541, %v581
        %v583 = vpop.f32.mrb[0].mxu0
        %v584 = vpop.f32.mrb[0].mxu0
        %v585 = vadd.f32 %v544, %v584
        %v586 = vpop.f32.mrb[0].mxu0
        %587 = vdwg.mxu0
        %v588 = vmax.f32 %v582, 0.0
        %v589 = vmax.f32 %v585, 0.0
        %s590 = scalar_lea.vmem [#allocation2], %s209
        %591 = vst [vmem:[%s590] sm:$0xff] %v588
        %592 = vst [vmem:[%s590 + $0x8] sm:$0xff] %v589
        %v593 = vlaneseq
        %v594 = vshrl.u32 %v593, 7
        %v595 = vadd.s32 %v594, 8
        %v596 = vstv %s209
        %v597 = vadd.s32 %v596, %v594
        %v598 = vadd.s32 %v596, %v595
        %vm599 = vcmp.lt.s32.totalorder %v597, 8
        %vm600 = vcmp.lt.s32.totalorder %v598, 8
        %v601 = vsel %vm599, 1, 0
        %v602 = vsel %vm600, 1, 0
        %vm603 = vcmp.eq.s32.totalorder %v601, 1
        %vm604 = vcmp.eq.s32.totalorder %v602, 1
        %v605 = vsel %vm603, %v588, 0.0
        %v606 = vsel %vm604, %v589, 0.0
        %v607 = vld [vmem:[#allocation3] sm:$0x1]
        %v608 = vadd.f32 %v605, %v606
        %v609 = vrot.slane %v608, 4
        %v610 = vadd.f32 %v608, %v609
        %v611 = vrot.slane %v610, 2
        %v612 = vadd.f32 %v610, %v611
        %v613 = vrot.slane %v612, 1
        %v614 = vadd.f32 %v612, %v613
        %v615 = vadd.f32 %v607, %v614
        %616 = vst [vmem:[#allocation3] sm:$0x1] %v615
        %v617 = vld [vmem:[#allocation4] sm:$0x1]
        %v618 = vmul.f32 %v605, %v605
        %v619 = vmul.f32 %v606, %v606
        %v620 = vadd.f32 %v618, %v619
        %v621 = vrot.slane %v620, 4
        %v622 = vadd.f32 %v620, %v621
        %v623 = vrot.slane %v622, 2
        %v624 = vadd.f32 %v622, %v623
        %v625 = vrot.slane %v624, 1
        %v626 = vadd.f32 %v624, %v625
        %v627 = vadd.f32 %v617, %v626
        %628 = vst [vmem:[#allocation4] sm:$0x1] %v627
      $region40: #{feature_extraction_forward.7} parent=31 // pred_fallthru
        _
      %p629 = scmp.eq.s32.totalorder %s18, 1
      // Predicated region
      $region41: #{feature_extraction_forward.7} parent=31 // pred_check
        %p630 = pneg %p629
      $region42: #{feature_extraction_forward.7} parent=31 // pred_check_branch
        %632 = sbr.rel (%p630) target = $region44
      $region43: #{feature_extraction_forward.7} parent=31 // pred_region
        %v633 = vld [vmem:[#allocation3] sm:$0x1]
        %v634 = vmul.f32 %v633, 0.125
        %v635 = vld [vmem:[#allocation4] sm:$0x1]
        %v636 = vmul.f32 %v635, 0.125
        %v637 = vmul.f32 %v634, %v634
        %v638 = vsub.f32 %v636, %v637
        %v639 = vadd.f32 %v638, 1e-05
        %v640 = vrsqrt.pop %v639
        %v641 = vld [vmem:[%s2 + $0x1] sm:$0x1]
        %v642 = vmul.f32 %v640, %v641
        %v643 = vld [vmem:[%s2 + $0x2] sm:$0x1]
        %v644 = vmul.f32 %v634, %v642
        %v645 = vsub.f32 %v643, %v644
        %s646 = scalar_lea.vmem [#allocation2], %s209
        %v647 = vld [vmem:[%s646] sm:$0xff]
        %v648 = vld [vmem:[%s646 + $0x8] sm:$0xff]
        %v650 = vlaneseq
        %v651 = vshrl.u32 %v650, 7
        %v652 = vsub.s32 0, %v651
        %v653 = vrot.slane %v642, %v652
        %v655 = vmul.f32 %v647, %v653
        %v656 = vmul.f32 %v648, %v653
        %v657 = vlaneseq
        %v658 = vshrl.u32 %v657, 7
        %v659 = vsub.s32 0, %v658
        %v660 = vrot.slane %v645, %v659
        %v661 = vadd.f32 %v655, %v660
        %v662 = vadd.f32 %v656, %v660
        %v663 = vpack.c.bf16 %v662, %v661
        %v665 = vunpack.c.l.b16 %v663
        %v666 = vunpack.c.h.b16 %v663
        %v667 = vpack.c.b16 %v665, %v665
        %v668 = vpack.c.b16 %v666, %v666
        %671 = vst [vmem:[%s205] sm:$0xf] %v667
        %672 = vst [vmem:[%s205 + $0x4] sm:$0xf] %v668
      $region44: #{feature_extraction_forward.7} parent=31 // pred_fallthru
        _
      %s673 = smul.u32 %s18, %s19
      %s674 = smul.u32 2, %s673
      %p675 = scmp.lt.s32.totalorder %s674, 1
      %s676 = scalar_select %p675, %s674, 1
      %s677 = smul.addr %s676, 4
      %s678 = scalar_lea.vmem %s3, %s677
      // Predicated region
      $region45: #{feature_extraction_forward.7} parent=31 // pred_check
        %p679 = pneg %p118
      $region46: #{feature_extraction_forward.7} parent=31 // pred_check_branch
        %681 = sbr.rel (%p679) target = $region48
      $region47: #{feature_extraction_forward.7} parent=31 // pred_region
        %s682 = smul.u32 %s18, %s19
        %s683 = smul.u32 2, %s682
      $region48: #{feature_extraction_forward.7} parent=31 // pred_fallthru
        _
    $region32: #{feature_extraction_forward.7} parent=5 // pred_fallthru
      _
    %p684 = scmp.le.s32.totalorder 2, %s9
    // Predicated region
    $region49: #{feature_extraction_forward.7} parent=5 // pred_check
      %p685 = pneg %p684
    $region50: #{feature_extraction_forward.7} parent=5 // pred_check_branch
      %687 = sbr.rel (%p685) target = $region52
    $region51: #{feature_extraction_forward.7} parent=5 // pred_region
      %s688 = ssub.s32 %s9, 2
      // Predicated region
      $region53: #{feature_extraction_forward.7} parent=51 // pred_check
        %p689 = pneg %p124
      $region54: #{feature_extraction_forward.7} parent=51 // pred_check_branch
        %691 = sbr.rel (%p689) target = $region56
      $region55: #{feature_extraction_forward.7} parent=51 // pred_region
        %s692 = smul.u32 %s20, %s21
        %s693 = smul.u32 2, %s692
        %p694 = scmp.lt.s32.totalorder %s693, 1
        %s695 = scalar_select %p694, %s693, 1
        %s696 = smul.addr %s695, 4
        %s697 = scalar_lea.vmem %s3, %s696
      $region56: #{feature_extraction_forward.7} parent=51 // pred_fallthru
        _
    $region52: #{feature_extraction_forward.7} parent=5 // pred_fallthru
      _
  $region6: #{feature_extraction_forward.7} parent=0 // loop_footer
    %s13 = sadd.s32 1, %s9
  $region7: #{feature_extraction_forward.7} parent=0 // loop_footer_branch
    %8 = sbr.rel target = $region3
  $region8: #{feature_extraction_forward.7} parent=0 // loop_exit
    _

// kernel: feature_extraction_forward.8
$region0: #{feature_extraction_forward.8}
  #allocation0 [shape = 'u32[]', space=smem, size = 0x4, offset = 0x4, fixed_abs, tag = 'smem constant byte address 0x4 - core index']
  #allocation1 [shape = 'u32[144,128]{1,0:T(1,128)}', space=vmem, size = 0x12000, scoped, tag = 'internal scratch']
  #allocation2 [shape = 'f32[16,128]{1,0:T(8,128)}', space=vmem, size = 0x2000, scoped, tag = 'scratch operand']
  #allocation3 [shape = 'f32[1,128]{1,0:T(1,128)}', space=vmem, size = 0x200, scoped, tag = 'scratch operand']
  #allocation4 [shape = 'f32[1,128]{1,0:T(1,128)}', space=vmem, size = 0x200, scoped, tag = 'scratch operand']
  %s0 = inlined_call_operand.vmem [shape: bf16[16,640], index: 0, kind: input, shape index: {}]
  %s1 = inlined_call_operand.vmem [shape: bf16[640,128], index: 1, kind: input, shape index: {}]
  %s2 = inlined_call_operand.vmem [shape: f32[8,128], index: 2, kind: input, shape index: {}]
  %s3 = inlined_call_operand.vmem [shape: bf16[16,128], index: 3, kind: output, shape index: {}]
  %s4 = sld [smem:[#allocation0]]
  $region57: #{feature_extraction_forward.8} parent=0
    _
  %s6 = ssub.s32 1, %s4
  %s7 = scalar_select 0, %s6, %s4
  loop: start=0, step=1, limit=4
  $region2: #{feature_extraction_forward.8} parent=0 // loop_pre_header
    _
  $region3: #{feature_extraction_forward.8} parent=0 // loop_header
    %s9 = sphi 0, %s13
    %p10 = scmp.ge.s32.totalorder %s9, 4
    %s16 = sphi 0, %s28
    %s17 = sphi 0, %s24
    %s18 = sphi 0, %s16
    %s19 = sphi 0, %s17
    %s20 = sphi 0, %s18
    %s21 = sphi 0, %s19
    %s35 = sphi 0, %s37
    %s38 = sphi 0, %s35
    %s39 = sphi 0, %s38
    %s55 = sphi 0, %s39
    %s59 = sphi 0, %s59
    %s61 = sphi 0, %s59
    %s62 = sphi 0, %s61
    %s76 = sphi 0, %s62
    %s80 = sphi 0, %s80
    %s82 = sphi 0, %s80
    %s83 = sphi 0, %s82
    %s97 = sphi 0, %s83
    %s105 = sphi 0, %s107
    %s108 = sphi 0, %s105
    %s109 = sphi 0, %s108
    %s125 = sphi 0, %s109
  $region4: #{feature_extraction_forward.8} parent=0 // loop_header_branch
    %12 = sbr.rel (%p10) target = $region8
  $region5: #{feature_extraction_forward.8} parent=0 // loop_body
    %s14 = ssub.s32 %s9, 1
    %s15 = ssub.s32 %s9, 2
    %s22 = sadd.s32 1, %s17
    %p23 = scmp.ge.s32.totalorder %s22, 1
    %s24 = scalar_select %p23, 0, %s22
    %s25 = sadd.s32 1, %s16
    %s26 = scalar_select %p23, %s25, %s16
    %p27 = scmp.ge.s32.totalorder %s26, 2
    %s28 = scalar_select %p27, 0, %s26
    %s29 = ssub.s32 1, %s16
    %s30 = smul.u32 %s29, %s17
    %s31 = ssub.s32 1, %s28
    %s32 = smul.u32 %s31, %s24
    %s33 = ssub.s32 %s30, %s32
    %p34 = scmp.eq.s32.totalorder %s33, 0
    %s36 = sadd.s32 %s35, 1
    %s37 = scalar_select %p34, %s35, %s36
    %p40 = pneg %p34
    %p41 = scmp.eq.s32.totalorder %s9, 1
    %p42 = por %p40, %p41
    %p43 = scmp.ne.s32.totalorder %s35, %s38
    %p44 = scmp.eq.s32.totalorder %s9, 0
    %p45 = por %p43, %p44
    %p46 = scmp.ne.s32.totalorder %s35, %s38
    %p47 = scmp.eq.s32.totalorder %s14, 1
    %p48 = por %p46, %p47
    %p49 = scmp.ne.s32.totalorder %s38, %s39
    %p50 = scmp.eq.s32.totalorder %s14, 0
    %p51 = por %p49, %p50
    %p52 = scmp.ne.s32.totalorder %s38, %s39
    %p53 = scmp.eq.s32.totalorder %s15, 1
    %p54 = por %p52, %p53
    %p56 = scmp.ne.s32.totalorder %s39, %s55
    %p57 = scmp.eq.s32.totalorder %s15, 0
    %p58 = por %p56, %p57
    %s60 = sadd.s32 %s59, 1
    %p63 = scmp.eq.s32.totalorder %s9, 1
    %p64 = scmp.ne.s32.totalorder %s59, %s61
    %p65 = scmp.eq.s32.totalorder %s9, 0
    %p66 = por %p64, %p65
    %p67 = scmp.ne.s32.totalorder %s59, %s61
    %p68 = scmp.eq.s32.totalorder %s14, 1
    %p69 = por %p67, %p68
    %p70 = scmp.ne.s32.totalorder %s61, %s62
    %p71 = scmp.eq.s32.totalorder %s14, 0
    %p72 = por %p70, %p71
    %p73 = scmp.ne.s32.totalorder %s61, %s62
    %p74 = scmp.eq.s32.totalorder %s15, 1
    %p75 = por %p73, %p74
    %p77 = scmp.ne.s32.totalorder %s62, %s76
    %p78 = scmp.eq.s32.totalorder %s15, 0
    %p79 = por %p77, %p78
    %s81 = sadd.s32 %s80, 1
    %p84 = scmp.eq.s32.totalorder %s9, 1
    %p85 = scmp.ne.s32.totalorder %s80, %s82
    %p86 = scmp.eq.s32.totalorder %s9, 0
    %p87 = por %p85, %p86
    %p88 = scmp.ne.s32.totalorder %s80, %s82
    %p89 = scmp.eq.s32.totalorder %s14, 1
    %p90 = por %p88, %p89
    %p91 = scmp.ne.s32.totalorder %s82, %s83
    %p92 = scmp.eq.s32.totalorder %s14, 0
    %p93 = por %p91, %p92
    %p94 = scmp.ne.s32.totalorder %s82, %s83
    %p95 = scmp.eq.s32.totalorder %s15, 1
    %p96 = por %p94, %p95
    %p98 = scmp.ne.s32.totalorder %s83, %s97
    %p99 = scmp.eq.s32.totalorder %s15, 0
    %p100 = por %p98, %p99
    %s101 = smul.u32 %s16, %s17
    %s102 = smul.u32 %s28, %s24
    %s103 = ssub.s32 %s101, %s102
    %p104 = scmp.eq.s32.totalorder %s103, 0
    %s106 = sadd.s32 %s105, 1
    %s107 = scalar_select %p104, %s105, %s106
    %p110 = pneg %p104
    %p111 = scmp.eq.s32.totalorder %s9, 1
    %p112 = por %p110, %p111
    %p113 = scmp.ne.s32.totalorder %s105, %s108
    %p114 = scmp.eq.s32.totalorder %s9, 0
    %p115 = por %p113, %p114
    %p116 = scmp.ne.s32.totalorder %s105, %s108
    %p117 = scmp.eq.s32.totalorder %s14, 1
    %p118 = por %p116, %p117
    %p119 = scmp.ne.s32.totalorder %s108, %s109
    %p120 = scmp.eq.s32.totalorder %s14, 0
    %p121 = por %p119, %p120
    %p122 = scmp.ne.s32.totalorder %s108, %s109
    %p123 = scmp.eq.s32.totalorder %s15, 1
    %p124 = por %p122, %p123
    %p126 = scmp.ne.s32.totalorder %s109, %s125
    %p127 = scmp.eq.s32.totalorder %s15, 0
    %p128 = por %p126, %p127
    %p129 = scmp.le.s32.totalorder 1, %s9
    %p130 = scmp.lt.s32.totalorder %s9, 3
    %p131 = pnand %p129, %p130
    %p132 = pneg %p131
    // Predicated region
    $region9: #{feature_extraction_forward.8} parent=5 // pred_check
      _
    $region10: #{feature_extraction_forward.8} parent=5 // pred_check_branch
      %134 = sbr.rel (%p131) target = $region12
    $region11: #{feature_extraction_forward.8} parent=5 // pred_region
      %s135 = ssub.s32 %s9, 1
      // Predicated region
      $region13: #{feature_extraction_forward.8} parent=11 // pred_check
        %p136 = pneg %p72
      $region14: #{feature_extraction_forward.8} parent=11 // pred_check_branch
        %138 = sbr.rel (%p136) target = $region16
      $region15: #{feature_extraction_forward.8} parent=11 // pred_region
        _
      $region16: #{feature_extraction_forward.8} parent=11 // pred_fallthru
        _
      // Predicated region
      $region17: #{feature_extraction_forward.8} parent=11 // pred_check
        %p139 = pneg %p93
      $region18: #{feature_extraction_forward.8} parent=11 // pred_check_branch
        %141 = sbr.rel (%p139) target = $region20
      $region19: #{feature_extraction_forward.8} parent=11 // pred_region
        _
      $region20: #{feature_extraction_forward.8} parent=11 // pred_fallthru
        _
    $region12: #{feature_extraction_forward.8} parent=5 // pred_fallthru
      _
    %p142 = scmp.lt.s32.totalorder %s9, 2
    // Predicated region
    $region21: #{feature_extraction_forward.8} parent=5 // pred_check
      %p143 = pneg %p142
    $region22: #{feature_extraction_forward.8} parent=5 // pred_check_branch
      %145 = sbr.rel (%p143) target = $region24
    $region23: #{feature_extraction_forward.8} parent=5 // pred_region
      // Predicated region
      $region25: #{feature_extraction_forward.8} parent=23 // pred_check
        %p146 = pneg %p45
      $region26: #{feature_extraction_forward.8} parent=23 // pred_check_branch
        %148 = sbr.rel (%p146) target = $region28
      $region27: #{feature_extraction_forward.8} parent=23 // pred_region
        %s149 = ssub.s32 1, %s16
        %s150 = smul.u32 %s149, %s17
        %s151 = smul.u32 2, %s150
        %p152 = scmp.lt.s32.totalorder %s151, 1
        %s153 = scalar_select %p152, %s151, 1
        %s154 = smul.addr %s153, 5
        %s155 = smul.addr %s154, 4
        %s156 = scalar_lea.vmem %s0, %s155
        %s157 = ssub.s32 1, %s16
        %s158 = smul.u32 %s157, %s17
        %s159 = smul.u32 2, %s158
      $region28: #{feature_extraction_forward.8} parent=23 // pred_fallthru
        _
    $region24: #{feature_extraction_forward.8} parent=5 // pred_fallthru
      _
    %p160 = scmp.le.s32.totalorder 1, %s9
    %p161 = scmp.lt.s32.totalorder %s9, 3
    %p162 = pnand %p160, %p161
    %p163 = pneg %p162
    // Predicated region
    $region29: #{feature_extraction_forward.8} parent=5 // pred_check
      _
    $region30: #{feature_extraction_forward.8} parent=5 // pred_check_branch
      %165 = sbr.rel (%p162) target = $region32
    $region31: #{feature_extraction_forward.8} parent=5 // pred_region
      %s166 = ssub.s32 %s9, 1
      %s167 = ssub.s32 1, %s18
      %s168 = smul.u32 %s167, %s19
      %s169 = smul.u32 2, %s168
      %p170 = scmp.lt.s32.totalorder %s169, 1
      %s171 = scalar_select %p170, %s169, 1
      %s172 = smul.addr %s171, 5
      %s173 = smul.addr %s172, 4
      %s174 = scalar_lea.vmem %s0, %s173
      %p175 = pneg %p51
      %p176 = pneg %p48
      %p177 = pneg %p72
      %p178 = pneg %p69
      %p179 = pneg %p93
      %p180 = pneg %p90
      %p181 = pneg %p121
      %p182 = pneg %p118
      %s183 = smul.u32 %s18, %s19
      %s184 = smul.u32 2, %s183
      %p185 = scmp.lt.s32.totalorder %s184, 1
      %s186 = scalar_select %p185, %s184, 1
      %s187 = smul.addr %s186, 4
      %s188 = scalar_lea.vmem %s3, %s187
      %s189 = ssub.s32 1, %s18
      %s190 = smul.u32 %s189, %s19
      %s191 = smul.u32 2, %s190
      %p192 = scmp.lt.s32.totalorder %s191, 1
      %s193 = scalar_select %p192, %s191, 1
      %s194 = smul.addr %s193, 5
      %s195 = smul.addr %s194, 4
      %s196 = scalar_lea.vmem %s0, %s195
      %s197 = ssub.s32 1, %s18
      %s198 = smul.u32 %s197, %s19
      %s199 = smul.u32 2, %s198
      %s200 = smul.u32 %s18, %s19
      %s201 = smul.u32 2, %s200
      %p202 = scmp.lt.s32.totalorder %s201, 1
      %s203 = scalar_select %p202, %s201, 1
      %s204 = smul.addr %s203, 4
      %s205 = scalar_lea.vmem %s3, %s204
      %s206 = smul.u32 %s18, %s19
      %s207 = smul.u32 2, %s206
      %s209 = smul.u32 %s19, 16
      %p210 = scmp.eq.s32.totalorder %s18, 0
      %p211 = scmp.eq.s32.totalorder %s19, 0
      %p212 = pnand %p210, %p211
      %p213 = pneg %p212
      // Predicated region
      $region33: #{feature_extraction_forward.8} parent=31 // pred_check
        _
      $region34: #{feature_extraction_forward.8} parent=31 // pred_check_branch
        %215 = sbr.rel (%p212) target = $region36
      $region35: #{feature_extraction_forward.8} parent=31 // pred_region
        %216 = vst [vmem:[#allocation3] sm:$0x1] 0.0
        %217 = vst [vmem:[#allocation4] sm:$0x1] 0.0
      $region36: #{feature_extraction_forward.8} parent=31 // pred_fallthru
        _
      // Predicated region
      $region37: #{feature_extraction_forward.8} parent=31 // pred_check
        %p218 = pneg %p210
      $region38: #{feature_extraction_forward.8} parent=31 // pred_check_branch
        %220 = sbr.rel (%p218) target = $region40
      $region39: #{feature_extraction_forward.8} parent=31 // pred_region
        %v221 = vld [vmem:[%s196] sm:$0xff]
        %v222 = vld [vmem:[%s196 + $0x8] sm:$0xff]
        %v223 = vld [vmem:[%s196 + $0x10] sm:$0xf]
        %v224 = vld [vmem:[%s196 + $0x14] sm:$0xff]
        %v225 = vld [vmem:[%s196 + $0x1c] sm:$0xff]
        %v226 = vld [vmem:[%s196 + $0x24] sm:$0xf]
        %v227 = vld [vmem:[%s1] sm:$0xf]
        %v228 = vld [vmem:[%s1 + $0x4] sm:$0xf]
        %v229 = vld [vmem:[%s1 + $0x8] sm:$0xf]
        %v230 = vld [vmem:[%s1 + $0xc] sm:$0xf]
        %v231 = vld [vmem:[%s1 + $0x10] sm:$0xf]
        %v232 = vld [vmem:[%s1 + $0x14] sm:$0xf]
        %v233 = vld [vmem:[%s1 + $0x18] sm:$0xf]
        %v234 = vld [vmem:[%s1 + $0x1c] sm:$0xf]
        %v235 = vld [vmem:[%s1 + $0x20] sm:$0xf]
        %v236 = vld [vmem:[%s1 + $0x24] sm:$0xf]
        %v237 = vld [vmem:[%s1 + $0x28] sm:$0xf]
        %v238 = vld [vmem:[%s1 + $0x2c] sm:$0xf]
        %v239 = vld [vmem:[%s1 + $0x30] sm:$0xf]
        %v240 = vld [vmem:[%s1 + $0x34] sm:$0xf]
        %v241 = vld [vmem:[%s1 + $0x38] sm:$0xf]
        %v242 = vld [vmem:[%s1 + $0x3c] sm:$0xf]
        %v243 = vld [vmem:[%s1 + $0x40] sm:$0xf]
        %v244 = vld [vmem:[%s1 + $0x44] sm:$0xf]
        %v245 = vld [vmem:[%s1 + $0x48] sm:$0xf]
        %v246 = vld [vmem:[%s1 + $0x4c] sm:$0xf]
        %v247 = vld [vmem:[%s1 + $0x50] sm:$0xf]
        %v248 = vld [vmem:[%s1 + $0x54] sm:$0xf]
        %v249 = vld [vmem:[%s1 + $0x58] sm:$0xf]
        %v250 = vld [vmem:[%s1 + $0x5c] sm:$0xf]
        %v251 = vld [vmem:[%s1 + $0x60] sm:$0xf]
        %v252 = vld [vmem:[%s1 + $0x64] sm:$0xf]
        %v253 = vld [vmem:[%s1 + $0x68] sm:$0xf]
        %v254 = vld [vmem:[%s1 + $0x6c] sm:$0xf]
        %v255 = vld [vmem:[%s1 + $0x70] sm:$0xf]
        %v256 = vld [vmem:[%s1 + $0x74] sm:$0xf]
        %v257 = vld [vmem:[%s1 + $0x78] sm:$0xf]
        %v258 = vld [vmem:[%s1 + $0x7c] sm:$0xf]
        %v259 = vld [vmem:[%s1 + $0x80] sm:$0xf]
        %v260 = vld [vmem:[%s1 + $0x84] sm:$0xf]
        %v261 = vld [vmem:[%s1 + $0x88] sm:$0xf]
        %v262 = vld [vmem:[%s1 + $0x8c] sm:$0xf]
        %v263 = vld [vmem:[%s1 + $0x90] sm:$0xf]
        %v264 = vld [vmem:[%s1 + $0x94] sm:$0xf]
        %v265 = vld [vmem:[%s1 + $0x98] sm:$0xf]
        %v266 = vld [vmem:[%s1 + $0x9c] sm:$0xf]
        %v267 = vld [vmem:[%s1 + $0xa0] sm:$0xf]
        %v268 = vld [vmem:[%s1 + $0xa4] sm:$0xf]
        %v269 = vld [vmem:[%s1 + $0xa8] sm:$0xf]
        %v270 = vld [vmem:[%s1 + $0xac] sm:$0xf]
        %v271 = vld [vmem:[%s1 + $0xb0] sm:$0xf]
        %v272 = vld [vmem:[%s1 + $0xb4] sm:$0xf]
        %v273 = vld [vmem:[%s1 + $0xb8] sm:$0xf]
        %v274 = vld [vmem:[%s1 + $0xbc] sm:$0xf]
        %v275 = vld [vmem:[%s1 + $0xc0] sm:$0xf]
        %v276 = vld [vmem:[%s1 + $0xc4] sm:$0xf]
        %v277 = vld [vmem:[%s1 + $0xc8] sm:$0xf]
        %v278 = vld [vmem:[%s1 + $0xcc] sm:$0xf]
        %v279 = vld [vmem:[%s1 + $0xd0] sm:$0xf]
        %v280 = vld [vmem:[%s1 + $0xd4] sm:$0xf]
        %v281 = vld [vmem:[%s1 + $0xd8] sm:$0xf]
        %v282 = vld [vmem:[%s1 + $0xdc] sm:$0xf]
        %v283 = vld [vmem:[%s1 + $0xe0] sm:$0xf]
        %v284 = vld [vmem:[%s1 + $0xe4] sm:$0xf]
        %v285 = vld [vmem:[%s1 + $0xe8] sm:$0xf]
        %v286 = vld [vmem:[%s1 + $0xec] sm:$0xf]
        %v287 = vld [vmem:[%s1 + $0xf0] sm:$0xf]
        %v288 = vld [vmem:[%s1 + $0xf4] sm:$0xf]
        %v289 = vld [vmem:[%s1 + $0xf8] sm:$0xf]
        %v290 = vld [vmem:[%s1 + $0xfc] sm:$0xf]
        %v291 = vld [vmem:[%s1 + $0x100] sm:$0xf]
        %v292 = vld [vmem:[%s1 + $0x104] sm:$0xf]
        %v293 = vld [vmem:[%s1 + $0x108] sm:$0xf]
        %v294 = vld [vmem:[%s1 + $0x10c] sm:$0xf]
        %v295 = vld [vmem:[%s1 + $0x110] sm:$0xf]
        %v296 = vld [vmem:[%s1 + $0x114] sm:$0xf]
        %v297 = vld [vmem:[%s1 + $0x118] sm:$0xf]
        %v298 = vld [vmem:[%s1 + $0x11c] sm:$0xf]
        %v299 = vld [vmem:[%s1 + $0x120] sm:$0xf]
        %v300 = vld [vmem:[%s1 + $0x124] sm:$0xf]
        %v301 = vld [vmem:[%s1 + $0x128] sm:$0xf]
        %v302 = vld [vmem:[%s1 + $0x12c] sm:$0xf]
        %v303 = vld [vmem:[%s1 + $0x130] sm:$0xf]
        %v304 = vld [vmem:[%s1 + $0x134] sm:$0xf]
        %v305 = vld [vmem:[%s1 + $0x138] sm:$0xf]
        %v306 = vld [vmem:[%s1 + $0x13c] sm:$0xf]
        %v307 = vld [vmem:[%s2] sm:$0x1]
        %v308 = vlaneseq
        %v309 = vshrl.u32 %v308, 7
        %v310 = vsub.s32 0, %v309
        %v311 = vrot.slane %v307, %v310
        %v318 = vunpack.c.l.b16 %v221
        %v319 = vunpack.c.h.b16 %v221
        %v320 = vunpack.c.l.b16 %v222
        %v321 = vunpack.c.h.b16 %v222
        %v322 = vunpack.c.l.b16 %v223
        %v323 = vunpack.c.l.b16 %v224
        %v324 = vunpack.c.h.b16 %v224
        %v325 = vunpack.c.l.b16 %v225
        %v326 = vunpack.c.h.b16 %v225
        %v327 = vunpack.c.l.b16 %v226
        %v328 = vpack.c.b16 %v323, %v318
        %v329 = vpack.c.b16 %v324, %v319
        %v330 = vpack.c.b16 %v325, %v320
        %v331 = vpack.c.b16 %v326, %v321
        %v332 = vpack.c.b16 %v327, %v322
        %v418 = vunpack.c.l.b16 %v227
        %v419 = vunpack.c.l.b16 %v228
        %v420 = vunpack.c.l.b16 %v229
        %v421 = vunpack.c.l.b16 %v230
        %v422 = vunpack.c.l.b16 %v231
        %v423 = vunpack.c.l.b16 %v232
        %v424 = vunpack.c.l.b16 %v233
        %v425 = vunpack.c.l.b16 %v234
        %v426 = vunpack.c.l.b16 %v235
        %v427 = vunpack.c.l.b16 %v236
        %v428 = vunpack.c.l.b16 %v237
        %v429 = vunpack.c.l.b16 %v238
        %v430 = vunpack.c.l.b16 %v239
        %v431 = vunpack.c.l.b16 %v240
        %v432 = vunpack.c.l.b16 %v241
        %v433 = vunpack.c.l.b16 %v242
        %v434 = vunpack.c.l.b16 %v243
        %v435 = vunpack.c.l.b16 %v244
        %v436 = vunpack.c.l.b16 %v245
        %v437 = vunpack.c.l.b16 %v246
        %v438 = vunpack.c.l.b16 %v247
        %v439 = vunpack.c.l.b16 %v248
        %v440 = vunpack.c.l.b16 %v249
        %v441 = vunpack.c.l.b16 %v250
        %v442 = vunpack.c.l.b16 %v251
        %v443 = vunpack.c.l.b16 %v252
        %v444 = vunpack.c.l.b16 %v253
        %v445 = vunpack.c.l.b16 %v254
        %v446 = vunpack.c.l.b16 %v255
        %v447 = vunpack.c.l.b16 %v256
        %v448 = vunpack.c.l.b16 %v257
        %v449 = vunpack.c.l.b16 %v258
        %v450 = vunpack.c.l.b16 %v259
        %v451 = vunpack.c.l.b16 %v260
        %v452 = vunpack.c.l.b16 %v261
        %v453 = vunpack.c.l.b16 %v262
        %v454 = vunpack.c.l.b16 %v263
        %v455 = vunpack.c.l.b16 %v264
        %v456 = vunpack.c.l.b16 %v265
        %v457 = vunpack.c.l.b16 %v266
        %v458 = vunpack.c.l.b16 %v267
        %v459 = vunpack.c.l.b16 %v268
        %v460 = vunpack.c.l.b16 %v269
        %v461 = vunpack.c.l.b16 %v270
        %v462 = vunpack.c.l.b16 %v271
        %v463 = vunpack.c.l.b16 %v272
        %v464 = vunpack.c.l.b16 %v273
        %v465 = vunpack.c.l.b16 %v274
        %v466 = vunpack.c.l.b16 %v275
        %v467 = vunpack.c.l.b16 %v276
        %v468 = vunpack.c.l.b16 %v277
        %v469 = vunpack.c.l.b16 %v278
        %v470 = vunpack.c.l.b16 %v279
        %v471 = vunpack.c.l.b16 %v280
        %v472 = vunpack.c.l.b16 %v281
        %v473 = vunpack.c.l.b16 %v282
        %v474 = vunpack.c.l.b16 %v283
        %v475 = vunpack.c.l.b16 %v284
        %v476 = vunpack.c.l.b16 %v285
        %v477 = vunpack.c.l.b16 %v286
        %v478 = vunpack.c.l.b16 %v287
        %v479 = vunpack.c.l.b16 %v288
        %v480 = vunpack.c.l.b16 %v289
        %v481 = vunpack.c.l.b16 %v290
        %v482 = vunpack.c.l.b16 %v291
        %v483 = vunpack.c.l.b16 %v292
        %v484 = vunpack.c.l.b16 %v293
        %v485 = vunpack.c.l.b16 %v294
        %v486 = vunpack.c.l.b16 %v295
        %v487 = vunpack.c.l.b16 %v296
        %v488 = vunpack.c.l.b16 %v297
        %v489 = vunpack.c.l.b16 %v298
        %v490 = vunpack.c.l.b16 %v299
        %v491 = vunpack.c.l.b16 %v300
        %v492 = vunpack.c.l.b16 %v301
        %v493 = vunpack.c.l.b16 %v302
        %v494 = vunpack.c.l.b16 %v303
        %v495 = vunpack.c.l.b16 %v304
        %v496 = vunpack.c.l.b16 %v305
        %v497 = vunpack.c.l.b16 %v306
        %v498 = vpack.c.b16 %v419, %v418
        %v499 = vpack.c.b16 %v421, %v420
        %v500 = vpack.c.b16 %v423, %v422
        %v501 = vpack.c.b16 %v425, %v424
        %v502 = vpack.c.b16 %v427, %v426
        %v503 = vpack.c.b16 %v429, %v428
        %v504 = vpack.c.b16 %v431, %v430
        %v505 = vpack.c.b16 %v433, %v432
        %v506 = vpack.c.b16 %v435, %v434
        %v507 = vpack.c.b16 %v437, %v436
        %v508 = vpack.c.b16 %v439, %v438
        %v509 = vpack.c.b16 %v441, %v440
        %v510 = vpack.c.b16 %v443, %v442
        %v511 = vpack.c.b16 %v445, %v444
        %v512 = vpack.c.b16 %v447, %v446
        %v513 = vpack.c.b16 %v449, %v448
        %v514 = vpack.c.b16 %v451, %v450
        %v515 = vpack.c.b16 %v453, %v452
        %v516 = vpack.c.b16 %v455, %v454
        %v517 = vpack.c.b16 %v457, %v456
        %v518 = vpack.c.b16 %v459, %v458
        %v519 = vpack.c.b16 %v461, %v460
        %v520 = vpack.c.b16 %v463, %v462
        %v521 = vpack.c.b16 %v465, %v464
        %v522 = vpack.c.b16 %v467, %v466
        %v523 = vpack.c.b16 %v469, %v468
        %v524 = vpack.c.b16 %v471, %v470
        %v525 = vpack.c.b16 %v473, %v472
        %v526 = vpack.c.b16 %v475, %v474
        %v527 = vpack.c.b16 %v477, %v476
        %v528 = vpack.c.b16 %v479, %v478
        %v529 = vpack.c.b16 %v481, %v480
        %v530 = vpack.c.b16 %v483, %v482
        %v531 = vpack.c.b16 %v485, %v484
        %v532 = vpack.c.b16 %v487, %v486
        %v533 = vpack.c.b16 %v489, %v488
        %v534 = vpack.c.b16 %v491, %v490
        %v535 = vpack.c.b16 %v493, %v492
        %v536 = vpack.c.b16 %v495, %v494
        %v537 = vpack.c.b16 %v497, %v496
        %578 = vmatprep.subr.bf16.mxu0 0
        %579 = vmatpush1.bf16.msra.mxu0 %v498
        %580 = vmatprep.subr.bf16.mxu0 0
        %581 = vmatpush1.bf16.msra.mxu0 %v499
        %582 = vmatprep.subr.bf16.mxu0 0
        %583 = vmatpush1.bf16.msra.mxu0 %v500
        %584 = vmatprep.subr.bf16.mxu0 0
        %585 = vmatpush1.bf16.msra.mxu0 %v501
        %586 = vmatprep.subr.bf16.mxu0 0
        %587 = vmatpush1.bf16.msra.mxu0 %v502
        %588 = vmatprep.subr.bf16.mxu0 0
        %589 = vmatpush1.bf16.msra.mxu0 %v503
        %590 = vmatprep.subr.bf16.mxu0 0
        %591 = vmatpush1.bf16.msra.mxu0 %v504
        %592 = vmatprep.subr.bf16.mxu0 0
        %593 = vmatpush1.bf16.msra.mxu0 %v505
        %594 = vmatprep.subr.bf16.mxu0 0
        %595 = vmatpush1.bf16.msra.mxu0 %v506
        %596 = vmatprep.subr.bf16.mxu0 0
        %597 = vmatpush1.bf16.msra.mxu0 %v507
        %598 = vmatprep.subr.bf16.mxu0 0
        %599 = vmatpush1.bf16.msra.mxu0 %v508
        %600 = vmatprep.subr.bf16.mxu0 0
        %601 = vmatpush1.bf16.msra.mxu0 %v509
        %602 = vmatprep.subr.bf16.mxu0 0
        %603 = vmatpush1.bf16.msra.mxu0 %v510
        %604 = vmatprep.subr.bf16.mxu0 0
        %605 = vmatpush1.bf16.msra.mxu0 %v511
        %606 = vmatprep.subr.bf16.mxu0 0
        %607 = vmatpush1.bf16.msra.mxu0 %v512
        %608 = vmatprep.subr.bf16.mxu0 0
        %609 = vmatpush1.bf16.msra.mxu0 %v513
        %610 = vmatprep.mubr.bf16.mxu0 %v329
        %611 = vmatmul.mubr.bf16.gmra.mrb[0].mxu0 %v328
        %v612 = vpop.f32.mrb[0].mxu0
        %v613 = vadd.f32 %v311, %v612
        %v614 = vpop.f32.mrb[0].mxu0
        %v615 = vpop.f32.mrb[0].mxu0
        %v616 = vadd.f32 %v311, %v615
        %v617 = vpop.f32.mrb[0].mxu0
        %618 = vdwg.mxu0
        %619 = vmatprep.subr.bf16.mxu0 0
        %620 = vmatpush1.bf16.msra.mxu0 %v514
        %621 = vmatprep.subr.bf16.mxu0 0
        %622 = vmatpush1.bf16.msra.mxu0 %v515
        %623 = vmatprep.subr.bf16.mxu0 0
        %624 = vmatpush1.bf16.msra.mxu0 %v516
        %625 = vmatprep.subr.bf16.mxu0 0
        %626 = vmatpush1.bf16.msra.mxu0 %v517
        %627 = vmatprep.subr.bf16.mxu0 0
        %628 = vmatpush1.bf16.msra.mxu0 %v518
        %629 = vmatprep.subr.bf16.mxu0 0
        %630 = vmatpush1.bf16.msra.mxu0 %v519
        %631 = vmatprep.subr.bf16.mxu0 0
        %632 = vmatpush1.bf16.msra.mxu0 %v520
        %633 = vmatprep.subr.bf16.mxu0 0
        %634 = vmatpush1.bf16.msra.mxu0 %v521
        %635 = vmatprep.subr.bf16.mxu0 0
        %636 = vmatpush1.bf16.msra.mxu0 %v522
        %637 = vmatprep.subr.bf16.mxu0 0
        %638 = vmatpush1.bf16.msra.mxu0 %v523
        %639 = vmatprep.subr.bf16.mxu0 0
        %640 = vmatpush1.bf16.msra.mxu0 %v524
        %641 = vmatprep.subr.bf16.mxu0 0
        %642 = vmatpush1.bf16.msra.mxu0 %v525
        %643 = vmatprep.subr.bf16.mxu0 0
        %644 = vmatpush1.bf16.msra.mxu0 %v526
        %645 = vmatprep.subr.bf16.mxu0 0
        %646 = vmatpush1.bf16.msra.mxu0 %v527
        %647 = vmatprep.subr.bf16.mxu0 0
        %648 = vmatpush1.bf16.msra.mxu0 %v528
        %649 = vmatprep.subr.bf16.mxu0 0
        %650 = vmatpush1.bf16.msra.mxu0 %v529
        %651 = vmatprep.mubr.bf16.mxu0 %v331
        %652 = vmatmul.mubr.bf16.gmra.mrb[0].mxu0 %v330
        %v653 = vpop.f32.mrb[0].mxu0
        %v654 = vadd.f32 %v613, %v653
        %v655 = vpop.f32.mrb[0].mxu0
        %v656 = vpop.f32.mrb[0].mxu0
        %v657 = vadd.f32 %v616, %v656
        %v658 = vpop.f32.mrb[0].mxu0
        %659 = vdwg.mxu0
        %660 = vmatprep.subr.bf16.mxu0 0
        %661 = vmatpush1.bf16.msra.mxu0 %v530
        %662 = vmatprep.subr.bf16.mxu0 0
        %663 = vmatpush1.bf16.msra.mxu0 %v531
        %664 = vmatprep.subr.bf16.mxu0 0
        %665 = vmatpush1.bf16.msra.mxu0 %v532
        %666 = vmatprep.subr.bf16.mxu0 0
        %667 = vmatpush1.bf16.msra.mxu0 %v533
        %668 = vmatprep.subr.bf16.mxu0 0
        %669 = vmatpush1.bf16.msra.mxu0 %v534
        %670 = vmatprep.subr.bf16.mxu0 0
        %671 = vmatpush1.bf16.msra.mxu0 %v535
        %672 = vmatprep.subr.bf16.mxu0 0
        %673 = vmatpush1.bf16.msra.mxu0 %v536
        %674 = vmatprep.subr.bf16.mxu0 0
        %675 = vmatpush1.bf16.msra.mxu0 %v537
        %676 = vmatprep.subr.bf16.mxu0 0
        %677 = vmatpush1.bf16.msra.mxu0 0
        %678 = vmatprep.subr.bf16.mxu0 0
        %679 = vmatpush1.bf16.msra.mxu0 0
        %680 = vmatprep.subr.bf16.mxu0 0
        %681 = vmatpush1.bf16.msra.mxu0 0
        %682 = vmatprep.subr.bf16.mxu0 0
        %683 = vmatpush1.bf16.msra.mxu0 0
        %684 = vmatprep.subr.bf16.mxu0 0
        %685 = vmatpush1.bf16.msra.mxu0 0
        %686 = vmatprep.subr.bf16.mxu0 0
        %687 = vmatpush1.bf16.msra.mxu0 0
        %688 = vmatprep.subr.bf16.mxu0 0
        %689 = vmatpush1.bf16.msra.mxu0 0
        %690 = vmatprep.subr.bf16.mxu0 0
        %691 = vmatpush1.bf16.msra.mxu0 0
        %692 = vmatprep.mubr.bf16.mxu0 0
        %693 = vmatmul.mubr.bf16.gmra.mrb[0].mxu0 %v332
        %v694 = vpop.f32.mrb[0].mxu0
        %v695 = vadd.f32 %v654, %v694
        %v696 = vpop.f32.mrb[0].mxu0
        %v697 = vpop.f32.mrb[0].mxu0
        %v698 = vadd.f32 %v657, %v697
        %v699 = vpop.f32.mrb[0].mxu0
        %700 = vdwg.mxu0
        %v701 = vmax.f32 %v695, 0.0
        %v702 = vmax.f32 %v698, 0.0
        %s703 = scalar_lea.vmem [#allocation2], %s209
        %704 = vst [vmem:[%s703] sm:$0xff] %v701
        %705 = vst [vmem:[%s703 + $0x8] sm:$0xff] %v702
        %v706 = vlaneseq
        %v707 = vshrl.u32 %v706, 7
        %v708 = vadd.s32 %v707, 8
        %v709 = vstv %s209
        %v710 = vadd.s32 %v709, %v707
        %v711 = vadd.s32 %v709, %v708
        %vm712 = vcmp.lt.s32.totalorder %v710, 8
        %vm713 = vcmp.lt.s32.totalorder %v711, 8
        %v714 = vsel %vm712, 1, 0
        %v715 = vsel %vm713, 1, 0
        %vm716 = vcmp.eq.s32.totalorder %v714, 1
        %vm717 = vcmp.eq.s32.totalorder %v715, 1
        %v718 = vsel %vm716, %v701, 0.0
        %v719 = vsel %vm717, %v702, 0.0
        %v720 = vld [vmem:[#allocation3] sm:$0x1]
        %v721 = vadd.f32 %v718, %v719
        %v722 = vrot.slane %v721, 4
        %v723 = vadd.f32 %v721, %v722
        %v724 = vrot.slane %v723, 2
        %v725 = vadd.f32 %v723, %v724
        %v726 = vrot.slane %v725, 1
        %v727 = vadd.f32 %v725, %v726
        %v728 = vadd.f32 %v720, %v727
        %729 = vst [vmem:[#allocation3] sm:$0x1] %v728
        %v730 = vld [vmem:[#allocation4] sm:$0x1]
        %v731 = vmul.f32 %v718, %v718
        %v732 = vmul.f32 %v719, %v719
        %v733 = vadd.f32 %v731, %v732
        %v734 = vrot.slane %v733, 4
        %v735 = vadd.f32 %v733, %v734
        %v736 = vrot.slane %v735, 2
        %v737 = vadd.f32 %v735, %v736
        %v738 = vrot.slane %v737, 1
        %v739 = vadd.f32 %v737, %v738
        %v740 = vadd.f32 %v730, %v739
        %741 = vst [vmem:[#allocation4] sm:$0x1] %v740
      $region40: #{feature_extraction_forward.8} parent=31 // pred_fallthru
        _
      %p742 = scmp.eq.s32.totalorder %s18, 1
      // Predicated region
      $region41: #{feature_extraction_forward.8} parent=31 // pred_check
        %p743 = pneg %p742
      $region42: #{feature_extraction_forward.8} parent=31 // pred_check_branch
        %745 = sbr.rel (%p743) target = $region44
      $region43: #{feature_extraction_forward.8} parent=31 // pred_region
        %v746 = vld [vmem:[#allocation3] sm:$0x1]
        %v747 = vmul.f32 %v746, 0.125
        %v748 = vld [vmem:[#allocation4] sm:$0x1]
        %v749 = vmul.f32 %v748, 0.125
        %v750 = vmul.f32 %v747, %v747
        %v751 = vsub.f32 %v749, %v750
        %v752 = vadd.f32 %v751, 1e-05
        %v753 = vrsqrt.pop %v752
        %v754 = vld [vmem:[%s2 + $0x1] sm:$0x1]
        %v755 = vmul.f32 %v753, %v754
        %v756 = vld [vmem:[%s2 + $0x2] sm:$0x1]
        %v757 = vmul.f32 %v747, %v755
        %v758 = vsub.f32 %v756, %v757
        %s759 = scalar_lea.vmem [#allocation2], %s209
        %v760 = vld [vmem:[%s759] sm:$0xff]
        %v761 = vld [vmem:[%s759 + $0x8] sm:$0xff]
        %v763 = vlaneseq
        %v764 = vshrl.u32 %v763, 7
        %v765 = vsub.s32 0, %v764
        %v766 = vrot.slane %v755, %v765
        %v768 = vmul.f32 %v760, %v766
        %v769 = vmul.f32 %v761, %v766
        %v770 = vlaneseq
        %v771 = vshrl.u32 %v770, 7
        %v772 = vsub.s32 0, %v771
        %v773 = vrot.slane %v758, %v772
        %v774 = vadd.f32 %v768, %v773
        %v775 = vadd.f32 %v769, %v773
        %v776 = vpack.c.bf16 %v775, %v774
        %v778 = vunpack.c.l.b16 %v776
        %v779 = vunpack.c.h.b16 %v776
        %v780 = vpack.c.b16 %v778, %v778
        %v781 = vpack.c.b16 %v779, %v779
        %784 = vst [vmem:[%s205] sm:$0xf] %v780
        %785 = vst [vmem:[%s205 + $0x4] sm:$0xf] %v781
      $region44: #{feature_extraction_forward.8} parent=31 // pred_fallthru
        _
      %s786 = smul.u32 %s18, %s19
      %s787 = smul.u32 2, %s786
      %p788 = scmp.lt.s32.totalorder %s787, 1
      %s789 = scalar_select %p788, %s787, 1
      %s790 = smul.addr %s789, 4
      %s791 = scalar_lea.vmem %s3, %s790
      // Predicated region
      $region45: #{feature_extraction_forward.8} parent=31 // pred_check
        %p792 = pneg %p118
      $region46: #{feature_extraction_forward.8} parent=31 // pred_check_branch
        %794 = sbr.rel (%p792) target = $region48
      $region47: #{feature_extraction_forward.8} parent=31 // pred_region
        %s795 = smul.u32 %s18, %s19
        %s796 = smul.u32 2, %s795
      $region48: #{feature_extraction_forward.8} parent=31 // pred_fallthru
        _
    $region32: #{feature_extraction_forward.8} parent=5 // pred_fallthru
      _
    %p797 = scmp.le.s32.totalorder 2, %s9
    // Predicated region
    $region49: #{feature_extraction_forward.8} parent=5 // pred_check
      %p798 = pneg %p797
    $region50: #{feature_extraction_forward.8} parent=5 // pred_check_branch
      %800 = sbr.rel (%p798) target = $region52
    $region51: #{feature_extraction_forward.8} parent=5 // pred_region
      %s801 = ssub.s32 %s9, 2
      // Predicated region
      $region53: #{feature_extraction_forward.8} parent=51 // pred_check
        %p802 = pneg %p124
      $region54: #{feature_extraction_forward.8} parent=51 // pred_check_branch
        %804 = sbr.rel (%p802) target = $region56
      $region55: #{feature_extraction_forward.8} parent=51 // pred_region
        %s805 = smul.u32 %s20, %s21
        %s806 = smul.u32 2, %s805
        %p807 = scmp.lt.s32.totalorder %s806, 1
        %s808 = scalar_select %p807, %s806, 1
        %s809 = smul.addr %s808, 4
        %s810 = scalar_lea.vmem %s3, %s809
      $region56: #{feature_extraction_forward.8} parent=51 // pred_fallthru
        _
    $region52: #{feature_extraction_forward.8} parent=5 // pred_fallthru
      _
  $region6: #{feature_extraction_forward.8} parent=0 // loop_footer
    %s13 = sadd.s32 1, %s9
  $region7: #{feature_extraction_forward.8} parent=0 // loop_footer_branch
    %8 = sbr.rel target = $region3
  $region8: #{feature_extraction_forward.8} parent=0 // loop_exit
    _

// kernel: feature_extraction_forward.9
$region0: #{feature_extraction_forward.9}
  #allocation0 [shape = 'u32[]', space=smem, size = 0x4, offset = 0x4, fixed_abs, tag = 'smem constant byte address 0x4 - core index']
  #allocation1 [shape = 'u32[144,128]{1,0:T(1,128)}', space=vmem, size = 0x12000, scoped, tag = 'internal scratch']
  %s0 = inlined_call_operand.vmem [shape: bf16[16,640], index: 0, kind: input, shape index: {}]
  %s1 = inlined_call_operand.vmem [shape: bf16[640,128], index: 1, kind: input, shape index: {}]
  %s2 = inlined_call_operand.vmem [shape: f32[8,128], index: 2, kind: input, shape index: {}]
  %s3 = inlined_call_operand.vmem [shape: f32[16,128], index: 3, kind: output, shape index: {}]
  %s4 = sld [smem:[#allocation0]]
  $region22: #{feature_extraction_forward.9} parent=0
    _
  %s6 = ssub.s32 1, %s4
  %s7 = scalar_select 0, %s6, %s4
  // Predicated region
  $region2: #{feature_extraction_forward.9} parent=0 // pred_check
    _
  $region3: #{feature_extraction_forward.9} parent=0 // pred_check_branch
    %9 = sbr.rel (0) target = $region5
  $region4: #{feature_extraction_forward.9} parent=0 // pred_region
    _
  $region5: #{feature_extraction_forward.9} parent=0 // pred_fallthru
    _
  // Predicated region
  $region6: #{feature_extraction_forward.9} parent=0 // pred_check
    _
  $region7: #{feature_extraction_forward.9} parent=0 // pred_check_branch
    %11 = sbr.rel (0) target = $region9
  $region8: #{feature_extraction_forward.9} parent=0 // pred_region
    _
  $region9: #{feature_extraction_forward.9} parent=0 // pred_fallthru
    _
  // Predicated region
  $region10: #{feature_extraction_forward.9} parent=0 // pred_check
    _
  $region11: #{feature_extraction_forward.9} parent=0 // pred_check_branch
    %13 = sbr.rel (0) target = $region13
  $region12: #{feature_extraction_forward.9} parent=0 // pred_region
    _
  $region13: #{feature_extraction_forward.9} parent=0 // pred_fallthru
    _
  %v15 = vld [vmem:[%s0] sm:$0xff]
  %v16 = vld [vmem:[%s0 + $0x8] sm:$0xff]
  %v17 = vld [vmem:[%s0 + $0x10] sm:$0xf]
  %v18 = vld [vmem:[%s0 + $0x14] sm:$0xff]
  %v19 = vld [vmem:[%s0 + $0x1c] sm:$0xff]
  %v20 = vld [vmem:[%s0 + $0x24] sm:$0xf]
  %v21 = vld [vmem:[%s1] sm:$0xf]
  %v22 = vld [vmem:[%s1 + $0x4] sm:$0xf]
  %v23 = vld [vmem:[%s1 + $0x8] sm:$0xf]
  %v24 = vld [vmem:[%s1 + $0xc] sm:$0xf]
  %v25 = vld [vmem:[%s1 + $0x10] sm:$0xf]
  %v26 = vld [vmem:[%s1 + $0x14] sm:$0xf]
  %v27 = vld [vmem:[%s1 + $0x18] sm:$0xf]
  %v28 = vld [vmem:[%s1 + $0x1c] sm:$0xf]
  %v29 = vld [vmem:[%s1 + $0x20] sm:$0xf]
  %v30 = vld [vmem:[%s1 + $0x24] sm:$0xf]
  %v31 = vld [vmem:[%s1 + $0x28] sm:$0xf]
  %v32 = vld [vmem:[%s1 + $0x2c] sm:$0xf]
  %v33 = vld [vmem:[%s1 + $0x30] sm:$0xf]
  %v34 = vld [vmem:[%s1 + $0x34] sm:$0xf]
  %v35 = vld [vmem:[%s1 + $0x38] sm:$0xf]
  %v36 = vld [vmem:[%s1 + $0x3c] sm:$0xf]
  %v37 = vld [vmem:[%s1 + $0x40] sm:$0xf]
  %v38 = vld [vmem:[%s1 + $0x44] sm:$0xf]
  %v39 = vld [vmem:[%s1 + $0x48] sm:$0xf]
  %v40 = vld [vmem:[%s1 + $0x4c] sm:$0xf]
  %v41 = vld [vmem:[%s1 + $0x50] sm:$0xf]
  %v42 = vld [vmem:[%s1 + $0x54] sm:$0xf]
  %v43 = vld [vmem:[%s1 + $0x58] sm:$0xf]
  %v44 = vld [vmem:[%s1 + $0x5c] sm:$0xf]
  %v45 = vld [vmem:[%s1 + $0x60] sm:$0xf]
  %v46 = vld [vmem:[%s1 + $0x64] sm:$0xf]
  %v47 = vld [vmem:[%s1 + $0x68] sm:$0xf]
  %v48 = vld [vmem:[%s1 + $0x6c] sm:$0xf]
  %v49 = vld [vmem:[%s1 + $0x70] sm:$0xf]
  %v50 = vld [vmem:[%s1 + $0x74] sm:$0xf]
  %v51 = vld [vmem:[%s1 + $0x78] sm:$0xf]
  %v52 = vld [vmem:[%s1 + $0x7c] sm:$0xf]
  %v53 = vld [vmem:[%s1 + $0x80] sm:$0xf]
  %v54 = vld [vmem:[%s1 + $0x84] sm:$0xf]
  %v55 = vld [vmem:[%s1 + $0x88] sm:$0xf]
  %v56 = vld [vmem:[%s1 + $0x8c] sm:$0xf]
  %v57 = vld [vmem:[%s1 + $0x90] sm:$0xf]
  %v58 = vld [vmem:[%s1 + $0x94] sm:$0xf]
  %v59 = vld [vmem:[%s1 + $0x98] sm:$0xf]
  %v60 = vld [vmem:[%s1 + $0x9c] sm:$0xf]
  %v61 = vld [vmem:[%s1 + $0xa0] sm:$0xf]
  %v62 = vld [vmem:[%s1 + $0xa4] sm:$0xf]
  %v63 = vld [vmem:[%s1 + $0xa8] sm:$0xf]
  %v64 = vld [vmem:[%s1 + $0xac] sm:$0xf]
  %v65 = vld [vmem:[%s1 + $0xb0] sm:$0xf]
  %v66 = vld [vmem:[%s1 + $0xb4] sm:$0xf]
  %v67 = vld [vmem:[%s1 + $0xb8] sm:$0xf]
  %v68 = vld [vmem:[%s1 + $0xbc] sm:$0xf]
  %v69 = vld [vmem:[%s1 + $0xc0] sm:$0xf]
  %v70 = vld [vmem:[%s1 + $0xc4] sm:$0xf]
  %v71 = vld [vmem:[%s1 + $0xc8] sm:$0xf]
  %v72 = vld [vmem:[%s1 + $0xcc] sm:$0xf]
  %v73 = vld [vmem:[%s1 + $0xd0] sm:$0xf]
  %v74 = vld [vmem:[%s1 + $0xd4] sm:$0xf]
  %v75 = vld [vmem:[%s1 + $0xd8] sm:$0xf]
  %v76 = vld [vmem:[%s1 + $0xdc] sm:$0xf]
  %v77 = vld [vmem:[%s1 + $0xe0] sm:$0xf]
  %v78 = vld [vmem:[%s1 + $0xe4] sm:$0xf]
  %v79 = vld [vmem:[%s1 + $0xe8] sm:$0xf]
  %v80 = vld [vmem:[%s1 + $0xec] sm:$0xf]
  %v81 = vld [vmem:[%s1 + $0xf0] sm:$0xf]
  %v82 = vld [vmem:[%s1 + $0xf4] sm:$0xf]
  %v83 = vld [vmem:[%s1 + $0xf8] sm:$0xf]
  %v84 = vld [vmem:[%s1 + $0xfc] sm:$0xf]
  %v85 = vld [vmem:[%s1 + $0x100] sm:$0xf]
  %v86 = vld [vmem:[%s1 + $0x104] sm:$0xf]
  %v87 = vld [vmem:[%s1 + $0x108] sm:$0xf]
  %v88 = vld [vmem:[%s1 + $0x10c] sm:$0xf]
  %v89 = vld [vmem:[%s1 + $0x110] sm:$0xf]
  %v90 = vld [vmem:[%s1 + $0x114] sm:$0xf]
  %v91 = vld [vmem:[%s1 + $0x118] sm:$0xf]
  %v92 = vld [vmem:[%s1 + $0x11c] sm:$0xf]
  %v93 = vld [vmem:[%s1 + $0x120] sm:$0xf]
  %v94 = vld [vmem:[%s1 + $0x124] sm:$0xf]
  %v95 = vld [vmem:[%s1 + $0x128] sm:$0xf]
  %v96 = vld [vmem:[%s1 + $0x12c] sm:$0xf]
  %v97 = vld [vmem:[%s1 + $0x130] sm:$0xf]
  %v98 = vld [vmem:[%s1 + $0x134] sm:$0xf]
  %v99 = vld [vmem:[%s1 + $0x138] sm:$0xf]
  %v100 = vld [vmem:[%s1 + $0x13c] sm:$0xf]
  %v101 = vld [vmem:[%s2] sm:$0x1]
  %v102 = vlaneseq
  %v103 = vshrl.u32 %v102, 7
  %v104 = vsub.s32 0, %v103
  %v105 = vrot.slane %v101, %v104
  %v112 = vunpack.c.l.b16 %v15
  %v113 = vunpack.c.h.b16 %v15
  %v114 = vunpack.c.l.b16 %v16
  %v115 = vunpack.c.h.b16 %v16
  %v116 = vunpack.c.l.b16 %v17
  %v117 = vunpack.c.l.b16 %v18
  %v118 = vunpack.c.h.b16 %v18
  %v119 = vunpack.c.l.b16 %v19
  %v120 = vunpack.c.h.b16 %v19
  %v121 = vunpack.c.l.b16 %v20
  %v122 = vpack.c.b16 %v117, %v112
  %v123 = vpack.c.b16 %v118, %v113
  %v124 = vpack.c.b16 %v119, %v114
  %v125 = vpack.c.b16 %v120, %v115
  %v126 = vpack.c.b16 %v121, %v116
  %v212 = vunpack.c.l.b16 %v21
  %v213 = vunpack.c.l.b16 %v22
  %v214 = vunpack.c.l.b16 %v23
  %v215 = vunpack.c.l.b16 %v24
  %v216 = vunpack.c.l.b16 %v25
  %v217 = vunpack.c.l.b16 %v26
  %v218 = vunpack.c.l.b16 %v27
  %v219 = vunpack.c.l.b16 %v28
  %v220 = vunpack.c.l.b16 %v29
  %v221 = vunpack.c.l.b16 %v30
  %v222 = vunpack.c.l.b16 %v31
  %v223 = vunpack.c.l.b16 %v32
  %v224 = vunpack.c.l.b16 %v33
  %v225 = vunpack.c.l.b16 %v34
  %v226 = vunpack.c.l.b16 %v35
  %v227 = vunpack.c.l.b16 %v36
  %v228 = vunpack.c.l.b16 %v37
  %v229 = vunpack.c.l.b16 %v38
  %v230 = vunpack.c.l.b16 %v39
  %v231 = vunpack.c.l.b16 %v40
  %v232 = vunpack.c.l.b16 %v41
  %v233 = vunpack.c.l.b16 %v42
  %v234 = vunpack.c.l.b16 %v43
  %v235 = vunpack.c.l.b16 %v44
  %v236 = vunpack.c.l.b16 %v45
  %v237 = vunpack.c.l.b16 %v46
  %v238 = vunpack.c.l.b16 %v47
  %v239 = vunpack.c.l.b16 %v48
  %v240 = vunpack.c.l.b16 %v49
  %v241 = vunpack.c.l.b16 %v50
  %v242 = vunpack.c.l.b16 %v51
  %v243 = vunpack.c.l.b16 %v52
  %v244 = vunpack.c.l.b16 %v53
  %v245 = vunpack.c.l.b16 %v54
  %v246 = vunpack.c.l.b16 %v55
  %v247 = vunpack.c.l.b16 %v56
  %v248 = vunpack.c.l.b16 %v57
  %v249 = vunpack.c.l.b16 %v58
  %v250 = vunpack.c.l.b16 %v59
  %v251 = vunpack.c.l.b16 %v60
  %v252 = vunpack.c.l.b16 %v61
  %v253 = vunpack.c.l.b16 %v62
  %v254 = vunpack.c.l.b16 %v63
  %v255 = vunpack.c.l.b16 %v64
  %v256 = vunpack.c.l.b16 %v65
  %v257 = vunpack.c.l.b16 %v66
  %v258 = vunpack.c.l.b16 %v67
  %v259 = vunpack.c.l.b16 %v68
  %v260 = vunpack.c.l.b16 %v69
  %v261 = vunpack.c.l.b16 %v70
  %v262 = vunpack.c.l.b16 %v71
  %v263 = vunpack.c.l.b16 %v72
  %v264 = vunpack.c.l.b16 %v73
  %v265 = vunpack.c.l.b16 %v74
  %v266 = vunpack.c.l.b16 %v75
  %v267 = vunpack.c.l.b16 %v76
  %v268 = vunpack.c.l.b16 %v77
  %v269 = vunpack.c.l.b16 %v78
  %v270 = vunpack.c.l.b16 %v79
  %v271 = vunpack.c.l.b16 %v80
  %v272 = vunpack.c.l.b16 %v81
  %v273 = vunpack.c.l.b16 %v82
  %v274 = vunpack.c.l.b16 %v83
  %v275 = vunpack.c.l.b16 %v84
  %v276 = vunpack.c.l.b16 %v85
  %v277 = vunpack.c.l.b16 %v86
  %v278 = vunpack.c.l.b16 %v87
  %v279 = vunpack.c.l.b16 %v88
  %v280 = vunpack.c.l.b16 %v89
  %v281 = vunpack.c.l.b16 %v90
  %v282 = vunpack.c.l.b16 %v91
  %v283 = vunpack.c.l.b16 %v92
  %v284 = vunpack.c.l.b16 %v93
  %v285 = vunpack.c.l.b16 %v94
  %v286 = vunpack.c.l.b16 %v95
  %v287 = vunpack.c.l.b16 %v96
  %v288 = vunpack.c.l.b16 %v97
  %v289 = vunpack.c.l.b16 %v98
  %v290 = vunpack.c.l.b16 %v99
  %v291 = vunpack.c.l.b16 %v100
  %v292 = vpack.c.b16 %v213, %v212
  %v293 = vpack.c.b16 %v215, %v214
  %v294 = vpack.c.b16 %v217, %v216
  %v295 = vpack.c.b16 %v219, %v218
  %v296 = vpack.c.b16 %v221, %v220
  %v297 = vpack.c.b16 %v223, %v222
  %v298 = vpack.c.b16 %v225, %v224
  %v299 = vpack.c.b16 %v227, %v226
  %v300 = vpack.c.b16 %v229, %v228
  %v301 = vpack.c.b16 %v231, %v230
  %v302 = vpack.c.b16 %v233, %v232
  %v303 = vpack.c.b16 %v235, %v234
  %v304 = vpack.c.b16 %v237, %v236
  %v305 = vpack.c.b16 %v239, %v238
  %v306 = vpack.c.b16 %v241, %v240
  %v307 = vpack.c.b16 %v243, %v242
  %v308 = vpack.c.b16 %v245, %v244
  %v309 = vpack.c.b16 %v247, %v246
  %v310 = vpack.c.b16 %v249, %v248
  %v311 = vpack.c.b16 %v251, %v250
  %v312 = vpack.c.b16 %v253, %v252
  %v313 = vpack.c.b16 %v255, %v254
  %v314 = vpack.c.b16 %v257, %v256
  %v315 = vpack.c.b16 %v259, %v258
  %v316 = vpack.c.b16 %v261, %v260
  %v317 = vpack.c.b16 %v263, %v262
  %v318 = vpack.c.b16 %v265, %v264
  %v319 = vpack.c.b16 %v267, %v266
  %v320 = vpack.c.b16 %v269, %v268
  %v321 = vpack.c.b16 %v271, %v270
  %v322 = vpack.c.b16 %v273, %v272
  %v323 = vpack.c.b16 %v275, %v274
  %v324 = vpack.c.b16 %v277, %v276
  %v325 = vpack.c.b16 %v279, %v278
  %v326 = vpack.c.b16 %v281, %v280
  %v327 = vpack.c.b16 %v283, %v282
  %v328 = vpack.c.b16 %v285, %v284
  %v329 = vpack.c.b16 %v287, %v286
  %v330 = vpack.c.b16 %v289, %v288
  %v331 = vpack.c.b16 %v291, %v290
  %372 = vmatprep.subr.bf16.mxu0 0
  %373 = vmatpush1.bf16.msra.mxu0 %v292
  %374 = vmatprep.subr.bf16.mxu0 0
  %375 = vmatpush1.bf16.msra.mxu0 %v293
  %376 = vmatprep.subr.bf16.mxu0 0
  %377 = vmatpush1.bf16.msra.mxu0 %v294
  %378 = vmatprep.subr.bf16.mxu0 0
  %379 = vmatpush1.bf16.msra.mxu0 %v295
  %380 = vmatprep.subr.bf16.mxu0 0
  %381 = vmatpush1.bf16.msra.mxu0 %v296
  %382 = vmatprep.subr.bf16.mxu0 0
  %383 = vmatpush1.bf16.msra.mxu0 %v297
  %384 = vmatprep.subr.bf16.mxu0 0
  %385 = vmatpush1.bf16.msra.mxu0 %v298
  %386 = vmatprep.subr.bf16.mxu0 0
  %387 = vmatpush1.bf16.msra.mxu0 %v299
  %388 = vmatprep.subr.bf16.mxu0 0
  %389 = vmatpush1.bf16.msra.mxu0 %v300
  %390 = vmatprep.subr.bf16.mxu0 0
  %391 = vmatpush1.bf16.msra.mxu0 %v301
  %392 = vmatprep.subr.bf16.mxu0 0
  %393 = vmatpush1.bf16.msra.mxu0 %v302
  %394 = vmatprep.subr.bf16.mxu0 0
  %395 = vmatpush1.bf16.msra.mxu0 %v303
  %396 = vmatprep.subr.bf16.mxu0 0
  %397 = vmatpush1.bf16.msra.mxu0 %v304
  %398 = vmatprep.subr.bf16.mxu0 0
  %399 = vmatpush1.bf16.msra.mxu0 %v305
  %400 = vmatprep.subr.bf16.mxu0 0
  %401 = vmatpush1.bf16.msra.mxu0 %v306
  %402 = vmatprep.subr.bf16.mxu0 0
  %403 = vmatpush1.bf16.msra.mxu0 %v307
  %404 = vmatprep.mubr.bf16.mxu0 %v123
  %405 = vmatmul.mubr.bf16.gmra.mrb[0].mxu0 %v122
  %v406 = vpop.f32.mrb[0].mxu0
  %v407 = vadd.f32 %v105, %v406
  %v408 = vpop.f32.mrb[0].mxu0
  %v409 = vpop.f32.mrb[0].mxu0
  %v410 = vadd.f32 %v105, %v409
  %v411 = vpop.f32.mrb[0].mxu0
  %412 = vdwg.mxu0
  %413 = vmatprep.subr.bf16.mxu0 0
  %414 = vmatpush1.bf16.msra.mxu0 %v308
  %415 = vmatprep.subr.bf16.mxu0 0
  %416 = vmatpush1.bf16.msra.mxu0 %v309
  %417 = vmatprep.subr.bf16.mxu0 0
  %418 = vmatpush1.bf16.msra.mxu0 %v310
  %419 = vmatprep.subr.bf16.mxu0 0
  %420 = vmatpush1.bf16.msra.mxu0 %v311
  %421 = vmatprep.subr.bf16.mxu0 0
  %422 = vmatpush1.bf16.msra.mxu0 %v312
  %423 = vmatprep.subr.bf16.mxu0 0
  %424 = vmatpush1.bf16.msra.mxu0 %v313
  %425 = vmatprep.subr.bf16.mxu0 0
  %426 = vmatpush1.bf16.msra.mxu0 %v314
  %427 = vmatprep.subr.bf16.mxu0 0
  %428 = vmatpush1.bf16.msra.mxu0 %v315
  %429 = vmatprep.subr.bf16.mxu0 0
  %430 = vmatpush1.bf16.msra.mxu0 %v316
  %431 = vmatprep.subr.bf16.mxu0 0
  %432 = vmatpush1.bf16.msra.mxu0 %v317
  %433 = vmatprep.subr.bf16.mxu0 0
  %434 = vmatpush1.bf16.msra.mxu0 %v318
  %435 = vmatprep.subr.bf16.mxu0 0
  %436 = vmatpush1.bf16.msra.mxu0 %v319
  %437 = vmatprep.subr.bf16.mxu0 0
  %438 = vmatpush1.bf16.msra.mxu0 %v320
  %439 = vmatprep.subr.bf16.mxu0 0
  %440 = vmatpush1.bf16.msra.mxu0 %v321
  %441 = vmatprep.subr.bf16.mxu0 0
  %442 = vmatpush1.bf16.msra.mxu0 %v322
  %443 = vmatprep.subr.bf16.mxu0 0
  %444 = vmatpush1.bf16.msra.mxu0 %v323
  %445 = vmatprep.mubr.bf16.mxu0 %v125
  %446 = vmatmul.mubr.bf16.gmra.mrb[0].mxu0 %v124
  %v447 = vpop.f32.mrb[0].mxu0
  %v448 = vadd.f32 %v407, %v447
  %v449 = vpop.f32.mrb[0].mxu0
  %v450 = vpop.f32.mrb[0].mxu0
  %v451 = vadd.f32 %v410, %v450
  %v452 = vpop.f32.mrb[0].mxu0
  %453 = vdwg.mxu0
  %454 = vmatprep.subr.bf16.mxu0 0
  %455 = vmatpush1.bf16.msra.mxu0 %v324
  %456 = vmatprep.subr.bf16.mxu0 0
  %457 = vmatpush1.bf16.msra.mxu0 %v325
  %458 = vmatprep.subr.bf16.mxu0 0
  %459 = vmatpush1.bf16.msra.mxu0 %v326
  %460 = vmatprep.subr.bf16.mxu0 0
  %461 = vmatpush1.bf16.msra.mxu0 %v327
  %462 = vmatprep.subr.bf16.mxu0 0
  %463 = vmatpush1.bf16.msra.mxu0 %v328
  %464 = vmatprep.subr.bf16.mxu0 0
  %465 = vmatpush1.bf16.msra.mxu0 %v329
  %466 = vmatprep.subr.bf16.mxu0 0
  %467 = vmatpush1.bf16.msra.mxu0 %v330
  %468 = vmatprep.subr.bf16.mxu0 0
  %469 = vmatpush1.bf16.msra.mxu0 %v331
  %470 = vmatprep.subr.bf16.mxu0 0
  %471 = vmatpush1.bf16.msra.mxu0 0
  %472 = vmatprep.subr.bf16.mxu0 0
  %473 = vmatpush1.bf16.msra.mxu0 0
  %474 = vmatprep.subr.bf16.mxu0 0
  %475 = vmatpush1.bf16.msra.mxu0 0
  %476 = vmatprep.subr.bf16.mxu0 0
  %477 = vmatpush1.bf16.msra.mxu0 0
  %478 = vmatprep.subr.bf16.mxu0 0
  %479 = vmatpush1.bf16.msra.mxu0 0
  %480 = vmatprep.subr.bf16.mxu0 0
  %481 = vmatpush1.bf16.msra.mxu0 0
  %482 = vmatprep.subr.bf16.mxu0 0
  %483 = vmatpush1.bf16.msra.mxu0 0
  %484 = vmatprep.subr.bf16.mxu0 0
  %485 = vmatpush1.bf16.msra.mxu0 0
  %486 = vmatprep.mubr.bf16.mxu0 0
  %487 = vmatmul.mubr.bf16.gmra.mrb[0].mxu0 %v126
  %v488 = vpop.f32.mrb[0].mxu0
  %v489 = vadd.f32 %v448, %v488
  %v490 = vpop.f32.mrb[0].mxu0
  %v491 = vpop.f32.mrb[0].mxu0
  %v492 = vadd.f32 %v451, %v491
  %v493 = vpop.f32.mrb[0].mxu0
  %494 = vdwg.mxu0
  %v495 = vmax.f32 %v489, 0.0
  %v496 = vmax.f32 %v492, 0.0
  %497 = vst [vmem:[%s3] sm:$0xff] %v495
  %498 = vst [vmem:[%s3 + $0x8] sm:$0xff] %v496
  // Predicated region
  $region14: #{feature_extraction_forward.9} parent=0 // pred_check
    _
  $region15: #{feature_extraction_forward.9} parent=0 // pred_check_branch
    %500 = sbr.rel (0) target = $region17
  $region16: #{feature_extraction_forward.9} parent=0 // pred_region
    _
  $region17: #{feature_extraction_forward.9} parent=0 // pred_fallthru
    _
  // Predicated region
  $region18: #{feature_extraction_forward.9} parent=0 // pred_check
    _
  $region19: #{feature_extraction_forward.9} parent=0 // pred_check_branch
    %502 = sbr.rel (0) target = $region21
  $region20: #{feature_extraction_forward.9} parent=0 // pred_region
    _
  $region21: #{feature_extraction_forward.9} parent=0 // pred_fallthru
    _

</llo_original>
